<compile_context>
chip_gen: v5e
topology: v5e:2x2
jax: 0.10.0
libtpu: 0.0.40
codegen_flags: <defaults>
</compile_context>

<pallas_src>
import functools

import jax
import jax.numpy as jnp
from jax.experimental import pallas as pl
from jax.experimental.pallas import tpu as pltpu

EPS = 1e-5                      # nn.BatchNorm2d default eps
_VMEM_LIMIT = 48 * 1024 * 1024  # explicit scoped-VMEM budget (all generations)

# Row-tile candidates, largest first (512-1024 hits ~85% of HBM roofline on
# v6e for mem-bound passes).  At tiny demo shapes we deliberately keep >=2
# grid steps so the per-tile stats-partial reduction path is exercised.
_TILE_M_CANDIDATES = (1024, 512, 256, 128, 64, 32, 16, 8)


def _pick_tile_m(m):
    divisors = [t for t in _TILE_M_CANDIDATES if m % t == 0]
    for t in divisors:
        if m // t >= 2:
            return t
    return divisors[0] if divisors else m


# ---------------------------------------------------------------------------
# Pass-A kernels: matmul(s) + per-tile per-channel sum / sum-of-squares
# (partials: one stats block per grid step -> grid axis stays "parallel")
# ---------------------------------------------------------------------------
def _matmul_stats_kernel(x_ref, w_ref, y_ref, stats_ref):
    y = jnp.dot(x_ref[...], w_ref[...], preferred_element_type=jnp.float32)
    y_ref[...] = y.astype(y_ref.dtype)
    stats_ref[...] = jnp.concatenate(
        [jnp.sum(y, axis=0, keepdims=True),
         jnp.sum(y * y, axis=0, keepdims=True)], axis=0)[None]


def _dual_matmul_stats_kernel(y2_ref, sc2_ref, sh2_ref, w3_ref,
                              xsk_ref, ws_ref,
                              y3_ref, ysk_ref, stats_ref):
    # layer2's BN + ReLU is applied in-kernel (no extra HBM round trip), then
    # the layer3 and skip 1x1 convs run as two matmuls on the same row tile.
    a2 = jnp.maximum(
        y2_ref[...].astype(jnp.float32) * sc2_ref[...] + sh2_ref[...], 0.0)
    y3 = jnp.dot(a2.astype(jnp.bfloat16), w3_ref[...],
                 preferred_element_type=jnp.float32)
    ysk = jnp.dot(xsk_ref[...], ws_ref[...],
                  preferred_element_type=jnp.float32)
    y3_ref[...] = y3.astype(y3_ref.dtype)
    ysk_ref[...] = ysk.astype(ysk_ref.dtype)
    stats_ref[...] = jnp.concatenate(
        [jnp.sum(y3, axis=0, keepdims=True),
         jnp.sum(y3 * y3, axis=0, keepdims=True),
         jnp.sum(ysk, axis=0, keepdims=True),
         jnp.sum(ysk * ysk, axis=0, keepdims=True)], axis=0)[None]


def _conv3x3_fused_kernel(*refs, stride, h_in, w_in, ho, wo, n_phases):
    # One image per grid step.  Inputs are the un-normalized layer1 output
    # split into stride-phase views of the zero-padded image; layer1's BN
    # affine + ReLU is fused here.  The zero halo must map to zero *post*-ReLU
    # activations, so it is masked with iota row/col tests (cheap VPU work
    # hidden under the MXU matmuls).
    phase_refs = refs[:n_phases]
    sc_ref, sh_ref, w_ref = refs[n_phases:n_phases + 3]
    y_ref, stats_ref = refs[n_phases + 3:n_phases + 5]
    acc_ref = refs[n_phases + 5]

    s = stride
    sc = sc_ref[...].reshape(1, 1, -1)
    sh = sh_ref[...].reshape(1, 1, -1)

    affined = {}
    for py in range(s):
        for px in range(s):
            p = phase_refs[py * s + px][0]               # (hp, wp, c) bf16
            hp, wp, _ = p.shape
            v = jnp.maximum(p.astype(jnp.float32) * sc + sh, 0.0)
            ri = py + s * jax.lax.broadcasted_iota(jnp.int32, (hp, wp, 1), 0)
            ci = px + s * jax.lax.broadcasted_iota(jnp.int32, (hp, wp, 1), 1)
            valid = (ri >= 1) & (ri <= h_in) & (ci >= 1) & (ci <= w_in)
            affined[(py, px)] = jnp.where(valid, v, 0.0).astype(jnp.bfloat16)

    acc_ref[...] = jnp.zeros_like(acc_ref)
    # 3 matmuls of K = 3*Cmid (horizontal taps concatenated along K) instead
    # of 9 matmuls of K = Cmid: better MXU K-occupancy, fewer VPU adds.
    for dy in range(3):
        taps = []
        for dx in range(3):
            a = affined[(dy % s, dx % s)]
            oy, ox = dy // s, dx // s
            taps.append(a[oy:oy + ho, ox:ox + wo, :].reshape(ho * wo, -1))
        xk = jnp.concatenate(taps, axis=-1)
        acc_ref[...] += jnp.dot(xk, w_ref[dy],
                                preferred_element_type=jnp.float32)

    acc = acc_ref[...]
    y_ref[...] = acc.reshape(1, ho, wo, -1).astype(y_ref.dtype)
    stats_ref[...] = jnp.concatenate(
        [jnp.sum(acc, axis=0, keepdims=True),
         jnp.sum(acc * acc, axis=0, keepdims=True)], axis=0)[None]


# ---------------------------------------------------------------------------
# Pass-B kernel: final per-tile affine (folded BN) + residual add + ReLU
# ---------------------------------------------------------------------------
def _dual_affine_add_relu_kernel(y3_ref, ysk_ref, sc3_ref, sh3_ref,
                                 scs_ref, shs_ref, o_ref):
    v = (y3_ref[...].astype(jnp.float32) * sc3_ref[...] + sh3_ref[...]
         + ysk_ref[...].astype(jnp.float32) * scs_ref[...] + shs_ref[...])
    o_ref[...] = jnp.maximum(v, 0.0).astype(o_ref.dtype)


# ---------------------------------------------------------------------------
# pallas_call wrappers
# ---------------------------------------------------------------------------
def matmul_stats(x2d_bf16, w_bf16):
    m, k = x2d_bf16.shape
    c = w_bf16.shape[1]
    tm = _pick_tile_m(m)
    nt = m // tm
    return pl.pallas_call(
        _matmul_stats_kernel,
        grid=(nt,),
        in_specs=[pl.BlockSpec((tm, k), lambda i: (i, 0)),
                  pl.BlockSpec((k, c), lambda i: (0, 0))],
        out_specs=(pl.BlockSpec((tm, c), lambda i: (i, 0)),
                   pl.BlockSpec((1, 2, c), lambda i: (i, 0, 0))),
        out_shape=(jax.ShapeDtypeStruct((m, c), jnp.bfloat16),
                   jax.ShapeDtypeStruct((nt, 2, c), jnp.float32)),
        compiler_params=pltpu.CompilerParams(
            dimension_semantics=("parallel",),
            vmem_limit_bytes=_VMEM_LIMIT),
    )(x2d_bf16, w_bf16)


def conv3x3_fused_stats(y1_nhwc_bf16, sc1, sh1, w2k_bf16, stride):
    assert stride in (1, 2), "ResNet 3x3 conv uses stride 1 or 2"
    n, h, w, c = y1_nhwc_bf16.shape
    cout = w2k_bf16.shape[-1]
    s = stride
    if s == 2:
        # Odd spatial dims would give unequal per-phase shapes; fail loudly.
        assert h % 2 == 0 and w % 2 == 0, "stride-2 path requires even H/W"
    ho = (h + 2 - 3) // s + 1
    wo = (w + 2 - 3) // s + 1
    hop = ho + (2 // s)
    wop = wo + (2 // s)

    yp = jnp.pad(y1_nhwc_bf16, ((0, 0), (1, 1), (1, 1), (0, 0)))
    phases = [yp[:, py::s, px::s, :][:, :hop, :wop, :]
              for py in range(s) for px in range(s)]
    n_ph = s * s

    kernel = functools.partial(_conv3x3_fused_kernel, stride=s,
                               h_in=h, w_in=w, ho=ho, wo=wo, n_phases=n_ph)
    phase_spec = pl.BlockSpec((1, hop, wop, c), lambda i: (i, 0, 0, 0))
    chan_spec = pl.BlockSpec((1, c), lambda i: (0, 0))
    y, stats = pl.pallas_call(
        kernel,
        grid=(n,),
        in_specs=[phase_spec] * n_ph
                 + [chan_spec, chan_spec,
                    pl.BlockSpec((3, 3 * c, cout), lambda i: (0, 0, 0))],
        out_specs=(pl.BlockSpec((1, ho, wo, cout), lambda i: (i, 0, 0, 0)),
                   pl.BlockSpec((1, 2, cout), lambda i: (i, 0, 0))),
        out_shape=(jax.ShapeDtypeStruct((n, ho, wo, cout), jnp.bfloat16),
                   jax.ShapeDtypeStruct((n, 2, cout), jnp.float32)),
        scratch_shapes=[pltpu.VMEM((ho * wo, cout), jnp.float32)],
        compiler_params=pltpu.CompilerParams(
            dimension_semantics=("parallel",),
            vmem_limit_bytes=_VMEM_LIMIT),
    )(*phases, sc1, sh1, w2k_bf16)
    return y, stats, ho, wo


def dual_matmul_stats(y2_bf16, scale2, shift2, w3_bf16, xsk_bf16, ws_bf16):
    m, cmid = y2_bf16.shape
    cin = xsk_bf16.shape[1]
    cout = w3_bf16.shape[1]
    tm = _pick_tile_m(m)
    nt = m // tm
    return pl.pallas_call(
        _dual_matmul_stats_kernel,
        grid=(nt,),
        in_specs=[pl.BlockSpec((tm, cmid), lambda i: (i, 0)),
                  pl.BlockSpec((1, cmid), lambda i: (0, 0)),
                  pl.BlockSpec((1, cmid), lambda i: (0, 0)),
                  pl.BlockSpec((cmid, cout), lambda i: (0, 0)),
                  pl.BlockSpec((tm, cin), lambda i: (i, 0)),
                  pl.BlockSpec((cin, cout), lambda i: (0, 0))],
        out_specs=(pl.BlockSpec((tm, cout), lambda i: (i, 0)),
                   pl.BlockSpec((tm, cout), lambda i: (i, 0)),
                   pl.BlockSpec((1, 4, cout), lambda i: (i, 0, 0))),
        out_shape=(jax.ShapeDtypeStruct((m, cout), jnp.bfloat16),
                   jax.ShapeDtypeStruct((m, cout), jnp.bfloat16),
                   jax.ShapeDtypeStruct((nt, 4, cout), jnp.float32)),
        compiler_params=pltpu.CompilerParams(
            dimension_semantics=("parallel",),
            vmem_limit_bytes=_VMEM_LIMIT),
    )(y2_bf16, scale2, shift2, w3_bf16, xsk_bf16, ws_bf16)


def dual_affine_add_relu(y3, ysk, sc3, sh3, scs, shs):
    m, c = y3.shape
    tm = _pick_tile_m(m)
    return pl.pallas_call(
        _dual_affine_add_relu_kernel,
        grid=(m // tm,),
        in_specs=[pl.BlockSpec((tm, c), lambda i: (i, 0)),
                  pl.BlockSpec((tm, c), lambda i: (i, 0))]
                 + [pl.BlockSpec((1, c), lambda i: (0, 0))] * 4,
        out_specs=pl.BlockSpec((tm, c), lambda i: (i, 0)),
        out_shape=jax.ShapeDtypeStruct((m, c), jnp.float32),
        compiler_params=pltpu.CompilerParams(
            dimension_semantics=("parallel",),
            vmem_limit_bytes=_VMEM_LIMIT),
    )(y3, ysk, sc3, sh3, scs, shs)


# ---------------------------------------------------------------------------
# Plain-JAX glue: stats -> (scale, shift)
# ---------------------------------------------------------------------------
def _bn_scale_shift(stats, gamma, beta, m):
    """Combine batch stats with gamma/beta into a single per-channel FMA."""
    # TODO(synk): E[x^2]-E[x]^2 in f32 can cancel at very large production row
    # counts; a compensated / two-pass mean would be more robust there.
    mean = stats[0] / m
    var = jnp.maximum(stats[1] / m - mean * mean, 0.0)   # biased (training)
    scale = gamma * jax.lax.rsqrt(var + EPS)
    shift = beta - mean * scale
    return scale.reshape(1, -1), shift.reshape(1, -1)


def resid_block(x_nchw, params, stride):
    """Forward pass of the bottleneck ResidBlock (skip_block=True)."""
    (w1, b1, g1, be1, w2, b2, g2, be2, w3, b3, g3, be3,
     ws, bs, gs, bes) = params
    # Conv biases cancel exactly under batch-statistics BatchNorm -> unused.
    del b1, b2, b3, bs

    n, cin, h, w = x_nchw.shape
    cmid = w1.shape[1]
    cout = w3.shape[1]

    x = jnp.transpose(x_nchw, (0, 2, 3, 1))              # NCHW -> NHWC
    x2d = x.reshape(n * h * w, cin).astype(jnp.bfloat16)  # bf16 HBM feed

    # bf16 weights for the MXU; 3x3 weights packed as (3, 3*Cin, Cout) so the
    # kernel can run 3 K-packed matmuls per image.
    w1b = w1.astype(jnp.bfloat16)
    w2k = w2.astype(jnp.bfloat16).reshape(3, 3 * w2.shape[2], w2.shape[3])
    w3b = w3.astype(jnp.bfloat16)
    wsb = ws.astype(jnp.bfloat16)

    # -- layer1: 1x1 conv + per-tile BN stats partials ---------------------
    y1, st1 = matmul_stats(x2d, w1b)
    sc1, sh1 = _bn_scale_shift(st1.sum(axis=0), g1, be1, n * h * w)

    # -- layer2: 3x3 conv (stride, pad=1); layer1 BN+ReLU fused in-kernel ---
    y1_nhwc = y1.reshape(n, h, w, cmid)
    y2, st2, ho, wo = conv3x3_fused_stats(y1_nhwc, sc1, sh1, w2k, stride)
    m3 = n * ho * wo
    sc2, sh2 = _bn_scale_shift(st2.sum(axis=0), g2, be2, m3)

    # -- layer3 + skip: fused dual 1x1 conv (layer2 BN+ReLU in-kernel) ------
    xsk = x[:, ::stride, ::stride, :].reshape(m3, cin).astype(jnp.bfloat16)
    y2_2d = y2.reshape(m3, cmid)
    y3, ysk, st3s = dual_matmul_stats(y2_2d, sc2, sh2, w3b, xsk, wsb)
    st3 = st3s.sum(axis=0)
    sc3, sh3 = _bn_scale_shift(st3[0:2], g3, be3, m3)
    scs, shs = _bn_scale_shift(st3[2:4], gs, bes, m3)

    out = dual_affine_add_relu(y3, ysk, sc3, sh3, scs, shs)
    out = out.reshape(n, ho, wo, cout)
    return jnp.transpose(out, (0, 3, 1, 2))              # NHWC -> NCHW


# ---------------------------------------------------------------------------
# Pure-JAX f32 reference (lax.conv, with biases) for a correctness check
# ---------------------------------------------------------------------------
def _ref_forward(x, params, stride):
    (w1, b1, g1, be1, w2, b2, g2, be2, w3, b3, g3, be3,
     ws, bs, gs, bes) = params

    def conv(x, w_oihw, b, s, p):
        y = jax.lax.conv_general_dilated(
            x, w_oihw, (s, s), [(p, p), (p, p)],
            dimension_numbers=("NCHW", "OIHW", "NCHW"))
        return y + b.reshape(1, -1, 1, 1)

    def bn(x, g, b):
        mean = jnp.mean(x, axis=(0, 2, 3), keepdims=True)
        var = jnp.mean((x - mean) ** 2, axis=(0, 2, 3), keepdims=True)
        return ((x - mean) * jax.lax.rsqrt(var + EPS) * g.reshape(1, -1, 1, 1)
                + b.reshape(1, -1, 1, 1))

    cin, cmid = w1.shape
    cout = w3.shape[1]
    y = jax.nn.relu(bn(conv(x, w1.T.reshape(cmid, cin, 1, 1), b1, 1, 0), g1, be1))
    y = jax.nn.relu(bn(conv(y, jnp.transpose(w2, (3, 2, 0, 1)), b2, stride, 1), g2, be2))
    y = bn(conv(y, w3.T.reshape(cout, cmid, 1, 1), b3, 1, 0), g3, be3)
    sk = bn(conv(x, ws.T.reshape(cout, cin, 1, 1), bs, stride, 0), gs, bes)
    return jax.nn.relu(y + sk)


# ---------------------------------------------------------------------------
if __name__ == "__main__":
    N, Cin, H, W = 2, 4, 16, 16
    Cmid, expansion, stride = 8, 2, 2
    Cout = Cmid * expansion

    key = jax.random.PRNGKey(0)
    ks = jax.random.split(key, 9)
    x = jax.random.normal(ks[0], (N, Cin, H, W), jnp.float32)   # NCHW input

    # Parameter shapes mirror the PyTorch module (convs keep their biases).
    w1 = 0.1 * jax.random.normal(ks[1], (Cin, Cmid), jnp.float32)          # 1x1
    b1 = 0.1 * jax.random.normal(ks[2], (Cmid,), jnp.float32)
    w2 = 0.1 * jax.random.normal(ks[3], (3, 3, Cmid, Cmid), jnp.float32)   # 3x3 (kh,kw,Cin,Cout)
    b2 = 0.1 * jax.random.normal(ks[4], (Cmid,), jnp.float32)
    w3 = 0.1 * jax.random.normal(ks[5], (Cmid, Cout), jnp.float32)         # 1x1
    b3 = 0.1 * jax.random.normal(ks[6], (Cout,), jnp.float32)
    ws = 0.1 * jax.random.normal(ks[7], (Cin, Cout), jnp.float32)          # skip 1x1
    bs = 0.1 * jax.random.normal(ks[8], (Cout,), jnp.float32)
    # BatchNorm2d default init: weight=1, bias=0 (training-mode batch stats).
    g1, be1 = jnp.ones((Cmid,)), jnp.zeros((Cmid,))
    g2, be2 = jnp.ones((Cmid,)), jnp.zeros((Cmid,))
    g3, be3 = jnp.ones((Cout,)), jnp.zeros((Cout,))
    gs, bes = jnp.ones((Cout,)), jnp.zeros((Cout,))

    params = (w1, b1, g1, be1, w2, b2, g2, be2, w3, b3, g3, be3,
              ws, bs, gs, bes)

    fwd = jax.jit(functools.partial(resid_block, stride=stride))
    out = jax.block_until_ready(fwd(x, params))

    ref = jax.block_until_ready(_ref_forward(x, params, stride))
    assert out.shape == (N, Cout, H // stride, W // stride), out.shape
    # Tolerance reflects the deliberate bf16 MXU feeds AND bf16 HBM storage of
    # the intermediates (f32 accumulation / statistics throughout).
    assert jnp.allclose(out, ref, atol=1e-1, rtol=5e-2), float(
        jnp.max(jnp.abs(out - ref)))

    print("KERNEL_OK")
</pallas_src>

<mosaic_0001>
module attributes {stable_mosaic.version = 11 : i64} {
  func.func @_matmul_stats_kernel(%arg0: i32, %arg1: memref<256x4xbf16, #tpu.memory_space<vmem>>, %arg2: memref<4x8xbf16, #tpu.memory_space<vmem>>, %arg3: memref<256x8xbf16, #tpu.memory_space<vmem>>, %arg4: memref<1x2x8xf32, #tpu.memory_space<vmem>>) attributes {dimension_semantics = [#tpu.dimension_semantics<parallel>], iteration_bounds = array<i64: 2>, scalar_prefetch = 0 : i64, scratch_operands = 0 : i64, tpu.core_type = #tpu.core_type<tc>, window_params = [{transform_indices = @transform_0, window_bounds = array<i64: 256, 4>}, {pipeline_mode = #tpu.pipeline_mode<synchronous>, transform_indices = @transform_1, window_bounds = array<i64: 4, 8>}, {transform_indices = @transform_2, window_bounds = array<i64: 256, 8>}, {transform_indices = @transform_3, window_bounds = array<i64: 1, 2, 8>}]} {
    %c0 = arith.constant 0 : index
    %c0_0 = arith.constant 0 : index
    %0 = vector.load %arg1[%c0, %c0_0] : memref<256x4xbf16, #tpu.memory_space<vmem>>, vector<256x4xbf16>
    %c0_1 = arith.constant 0 : index
    %c0_2 = arith.constant 0 : index
    %1 = vector.load %arg2[%c0_1, %c0_2] : memref<4x8xbf16, #tpu.memory_space<vmem>>, vector<4x8xbf16>
    %cst = arith.constant dense<0.000000e+00> : vector<256x8xf32>
    %2 = tpu.matmul %0, %1, %cst {dimension_numbers = #tpu.dot_dimension_numbers<[1], [0], [0], [1], [0, 0, 1, 1], [], []>} : vector<256x4xbf16>, vector<4x8xbf16>, vector<256x8xf32> -> vector<256x8xf32>
    %3 = arith.truncf %2 : vector<256x8xf32> to vector<256x8xbf16>
    %c0_3 = arith.constant 0 : index
    %c0_4 = arith.constant 0 : index
    %4 = vector.load %arg3[%c0_3, %c0_4] : memref<256x8xbf16, #tpu.memory_space<vmem>>, vector<256x8xbf16>
    tpu.vector_store %arg3[%c0_3, %c0_4], %3 {strides = array<i32>} : memref<256x8xbf16, #tpu.memory_space<vmem>>, vector<256x8xbf16>,
    %cst_5 = arith.constant dense<0.000000e+00> : vector<8xf32>
    %5 = vector.multi_reduction <add>, %2, %cst_5 [0] : vector<256x8xf32> to vector<8xf32>
    %6 = vector.shape_cast %5 : vector<8xf32> to vector<1x8xf32>
    %7 = arith.mulf %2, %2 : vector<256x8xf32>
    %cst_6 = arith.constant dense<0.000000e+00> : vector<8xf32>
    %8 = vector.multi_reduction <add>, %7, %cst_6 [0] : vector<256x8xf32> to vector<8xf32>
    %9 = vector.shape_cast %8 : vector<8xf32> to vector<1x8xf32>
    %10 = tpu.concatenate %6, %9 in 0 : vector<1x8xf32>, vector<1x8xf32> -> vector<2x8xf32>
    %11 = vector.shape_cast %10 : vector<2x8xf32> to vector<1x2x8xf32>
    %c0_7 = arith.constant 0 : index
    %c0_8 = arith.constant 0 : index
    %c0_9 = arith.constant 0 : index
    %12 = vector.load %arg4[%c0_7, %c0_8, %c0_9] : memref<1x2x8xf32, #tpu.memory_space<vmem>>, vector<1x2x8xf32>
    tpu.vector_store %arg4[%c0_7, %c0_8, %c0_9], %11 {strides = array<i32>} : memref<1x2x8xf32, #tpu.memory_space<vmem>>, vector<1x2x8xf32>,
    return
  }
  func.func @transform_0(%arg0: i32) -> (i32, i32) {
    %c0_i32 = arith.constant 0 : i32
    %c0_i32_0 = arith.constant 0 : i32
    return %arg0, %c0_i32 : i32, i32
  }
  func.func @transform_1(%arg0: i32) -> (i32, i32) {
    %c0_i32 = arith.constant 0 : i32
    %c0_i32_0 = arith.constant 0 : i32
    %c0_i32_1 = arith.constant 0 : i32
    return %c0_i32, %c0_i32_0 : i32, i32
  }
  func.func @transform_2(%arg0: i32) -> (i32, i32) {
    %c0_i32 = arith.constant 0 : i32
    %c0_i32_0 = arith.constant 0 : i32
    return %arg0, %c0_i32 : i32, i32
  }
  func.func @transform_3(%arg0: i32) -> (i32, i32, i32) {
    %c0_i32 = arith.constant 0 : i32
    %c0_i32_0 = arith.constant 0 : i32
    %c0_i32_1 = arith.constant 0 : i32
    return %arg0, %c0_i32, %c0_i32_0 : i32, i32, i32
  }
}

module attributes {stable_mosaic.version = 11 : i64} {
  func.func @_conv3x3_fused_kernel(%arg0: i32, %arg1: memref<1x9x9x8xbf16, #tpu.memory_space<vmem>>, %arg2: memref<1x9x9x8xbf16, #tpu.memory_space<vmem>>, %arg3: memref<1x9x9x8xbf16, #tpu.memory_space<vmem>>, %arg4: memref<1x9x9x8xbf16, #tpu.memory_space<vmem>>, %arg5: memref<1x8xf32, #tpu.memory_space<vmem>>, %arg6: memref<1x8xf32, #tpu.memory_space<vmem>>, %arg7: memref<3x24x8xbf16, #tpu.memory_space<vmem>>, %arg8: memref<1x8x8x8xbf16, #tpu.memory_space<vmem>>, %arg9: memref<1x2x8xf32, #tpu.memory_space<vmem>>, %arg10: memref<64x8xf32, #tpu.memory_space<vmem>>) attributes {dimension_semantics = [#tpu.dimension_semantics<parallel>], iteration_bounds = array<i64: 2>, scalar_prefetch = 0 : i64, scratch_operands = 1 : i64, tpu.core_type = #tpu.core_type<tc>, window_params = [{transform_indices = @transform_0, window_bounds = array<i64: 1, 9, 9, 8>}, {transform_indices = @transform_1, window_bounds = array<i64: 1, 9, 9, 8>}, {transform_indices = @transform_2, window_bounds = array<i64: 1, 9, 9, 8>}, {transform_indices = @transform_3, window_bounds = array<i64: 1, 9, 9, 8>}, {pipeline_mode = #tpu.pipeline_mode<synchronous>, transform_indices = @transform_4, window_bounds = array<i64: 1, 8>}, {pipeline_mode = #tpu.pipeline_mode<synchronous>, transform_indices = @transform_5, window_bounds = array<i64: 1, 8>}, {pipeline_mode = #tpu.pipeline_mode<synchronous>, transform_indices = @transform_6, window_bounds = array<i64: 3, 24, 8>}, {transform_indices = @transform_7, window_bounds = array<i64: 1, 8, 8, 8>}, {transform_indices = @transform_8, window_bounds = array<i64: 1, 2, 8>}]} {
    %c0 = arith.constant 0 : index
    %c0_0 = arith.constant 0 : index
    %0 = vector.load %arg5[%c0, %c0_0] : memref<1x8xf32, #tpu.memory_space<vmem>>, vector<1x8xf32>
    %1 = vector.shape_cast %0 : vector<1x8xf32> to vector<1x1x8xf32>
    %c0_1 = arith.constant 0 : index
    %c0_2 = arith.constant 0 : index
    %2 = vector.load %arg6[%c0_1, %c0_2] : memref<1x8xf32, #tpu.memory_space<vmem>>, vector<1x8xf32>
    %3 = vector.shape_cast %2 : vector<1x8xf32> to vector<1x1x8xf32>
    %c0_3 = arith.constant 0 : index
    %c0_4 = arith.constant 0 : index
    %c0_5 = arith.constant 0 : index
    %c0_6 = arith.constant 0 : index
    %4 = vector.load %arg1[%c0_3, %c0_4, %c0_5, %c0_6] : memref<1x9x9x8xbf16, #tpu.memory_space<vmem>>, vector<1x9x9x8xbf16>
    %5 = vector.shape_cast %4 : vector<1x9x9x8xbf16> to vector<9x9x8xbf16>
    %6 = arith.extf %5 : vector<9x9x8xbf16> to vector<9x9x8xf32>
    %7 = vector.broadcast %1 : vector<1x1x8xf32> to vector<9x9x8xf32>
    %8 = arith.mulf %6, %7 : vector<9x9x8xf32>
    %9 = vector.broadcast %3 : vector<1x1x8xf32> to vector<9x9x8xf32>
    %10 = arith.addf %8, %9 : vector<9x9x8xf32>
    %cst = arith.constant 0.000000e+00 : f32
    %11 = vector.broadcast %cst : f32 to vector<9x9x8xf32>
    %12 = arith.maximumf %10, %11 : vector<9x9x8xf32>
    %13 = tpu.iota {dimensions = array<i32: 0>} : vector<9x9x1xi32>
    %c2_i32 = arith.constant 2 : i32
    %14 = vector.broadcast %c2_i32 : i32 to vector<9x9x1xi32>
    %15 = arith.muli %14, %13 : vector<9x9x1xi32>
    %c0_i32 = arith.constant 0 : i32
    %16 = vector.broadcast %c0_i32 : i32 to vector<9x9x1xi32>
    %17 = arith.addi %16, %15 : vector<9x9x1xi32>
    %18 = tpu.iota {dimensions = array<i32: 1>} : vector<9x9x1xi32>
    %c2_i32_7 = arith.constant 2 : i32
    %19 = vector.broadcast %c2_i32_7 : i32 to vector<9x9x1xi32>
    %20 = arith.muli %19, %18 : vector<9x9x1xi32>
    %c0_i32_8 = arith.constant 0 : i32
    %21 = vector.broadcast %c0_i32_8 : i32 to vector<9x9x1xi32>
    %22 = arith.addi %21, %20 : vector<9x9x1xi32>
    %c1_i32 = arith.constant 1 : i32
    %23 = vector.broadcast %c1_i32 : i32 to vector<9x9x1xi32>
    %24 = arith.cmpi sge, %17, %23 : vector<9x9x1xi32>
    %c16_i32 = arith.constant 16 : i32
    %25 = vector.broadcast %c16_i32 : i32 to vector<9x9x1xi32>
    %26 = arith.cmpi sle, %17, %25 : vector<9x9x1xi32>
    %27 = arith.andi %24, %26 : vector<9x9x1xi1>
    %c1_i32_9 = arith.constant 1 : i32
    %28 = vector.broadcast %c1_i32_9 : i32 to vector<9x9x1xi32>
    %29 = arith.cmpi sge, %22, %28 : vector<9x9x1xi32>
    %30 = arith.andi %27, %29 : vector<9x9x1xi1>
    %c16_i32_10 = arith.constant 16 : i32
    %31 = vector.broadcast %c16_i32_10 : i32 to vector<9x9x1xi32>
    %32 = arith.cmpi sle, %22, %31 : vector<9x9x1xi32>
    %33 = arith.andi %30, %32 : vector<9x9x1xi1>
    %cst_11 = arith.constant 0.000000e+00 : f32
    %34 = vector.shape_cast %33 : vector<9x9x1xi1> to vector<9x9x1xi1>
    %35 = vector.broadcast %34 : vector<9x9x1xi1> to vector<9x9x8xi1>
    %36 = vector.broadcast %cst_11 : f32 to vector<9x9x8xf32>
    %37 = arith.select %35, %12, %36 : vector<9x9x8xi1>, vector<9x9x8xf32>
    %38 = arith.truncf %37 : vector<9x9x8xf32> to vector<9x9x8xbf16>
    %c0_12 = arith.constant 0 : index
    %c0_13 = arith.constant 0 : index
    %c0_14 = arith.constant 0 : index
    %c0_15 = arith.constant 0 : index
    %39 = vector.load %arg2[%c0_12, %c0_13, %c0_14, %c0_15] : memref<1x9x9x8xbf16, #tpu.memory_space<vmem>>, vector<1x9x9x8xbf16>
    %40 = vector.shape_cast %39 : vector<1x9x9x8xbf16> to vector<9x9x8xbf16>
    %41 = arith.extf %40 : vector<9x9x8xbf16> to vector<9x9x8xf32>
    %42 = vector.broadcast %1 : vector<1x1x8xf32> to vector<9x9x8xf32>
    %43 = arith.mulf %41, %42 : vector<9x9x8xf32>
    %44 = vector.broadcast %3 : vector<1x1x8xf32> to vector<9x9x8xf32>
    %45 = arith.addf %43, %44 : vector<9x9x8xf32>
    %cst_16 = arith.constant 0.000000e+00 : f32
    %46 = vector.broadcast %cst_16 : f32 to vector<9x9x8xf32>
    %47 = arith.maximumf %45, %46 : vector<9x9x8xf32>
    %48 = tpu.iota {dimensions = array<i32: 0>} : vector<9x9x1xi32>
    %c2_i32_17 = arith.constant 2 : i32
    %49 = vector.broadcast %c2_i32_17 : i32 to vector<9x9x1xi32>
    %50 = arith.muli %49, %48 : vector<9x9x1xi32>
    %c0_i32_18 = arith.constant 0 : i32
    %51 = vector.broadcast %c0_i32_18 : i32 to vector<9x9x1xi32>
    %52 = arith.addi %51, %50 : vector<9x9x1xi32>
    %53 = tpu.iota {dimensions = array<i32: 1>} : vector<9x9x1xi32>
    %c2_i32_19 = arith.constant 2 : i32
    %54 = vector.broadcast %c2_i32_19 : i32 to vector<9x9x1xi32>
    %55 = arith.muli %54, %53 : vector<9x9x1xi32>
    %c1_i32_20 = arith.constant 1 : i32
    %56 = vector.broadcast %c1_i32_20 : i32 to vector<9x9x1xi32>
    %57 = arith.addi %56, %55 : vector<9x9x1xi32>
    %c1_i32_21 = arith.constant 1 : i32
    %58 = vector.broadcast %c1_i32_21 : i32 to vector<9x9x1xi32>
    %59 = arith.cmpi sge, %52, %58 : vector<9x9x1xi32>
    %c16_i32_22 = arith.constant 16 : i32
    %60 = vector.broadcast %c16_i32_22 : i32 to vector<9x9x1xi32>
    %61 = arith.cmpi sle, %52, %60 : vector<9x9x1xi32>
    %62 = arith.andi %59, %61 : vector<9x9x1xi1>
    %c1_i32_23 = arith.constant 1 : i32
    %63 = vector.broadcast %c1_i32_23 : i32 to vector<9x9x1xi32>
    %64 = arith.cmpi sge, %57, %63 : vector<9x9x1xi32>
    %65 = arith.andi %62, %64 : vector<9x9x1xi1>
    %c16_i32_24 = arith.constant 16 : i32
    %66 = vector.broadcast %c16_i32_24 : i32 to vector<9x9x1xi32>
    %67 = arith.cmpi sle, %57, %66 : vector<9x9x1xi32>
    %68 = arith.andi %65, %67 : vector<9x9x1xi1>
    %cst_25 = arith.constant 0.000000e+00 : f32
    %69 = vector.shape_cast %68 : vector<9x9x1xi1> to vector<9x9x1xi1>
    %70 = vector.broadcast %69 : vector<9x9x1xi1> to vector<9x9x8xi1>
    %71 = vector.broadcast %cst_25 : f32 to vector<9x9x8xf32>
    %72 = arith.select %70, %47, %71 : vector<9x9x8xi1>, vector<9x9x8xf32>
    %73 = arith.truncf %72 : vector<9x9x8xf32> to vector<9x9x8xbf16>
    %c0_26 = arith.constant 0 : index
    %c0_27 = arith.constant 0 : index
    %c0_28 = arith.constant 0 : index
    %c0_29 = arith.constant 0 : index
    %74 = vector.load %arg3[%c0_26, %c0_27, %c0_28, %c0_29] : memref<1x9x9x8xbf16, #tpu.memory_space<vmem>>, vector<1x9x9x8xbf16>
    %75 = vector.shape_cast %74 : vector<1x9x9x8xbf16> to vector<9x9x8xbf16>
    %76 = arith.extf %75 : vector<9x9x8xbf16> to vector<9x9x8xf32>
    %77 = vector.broadcast %1 : vector<1x1x8xf32> to vector<9x9x8xf32>
    %78 = arith.mulf %76, %77 : vector<9x9x8xf32>
    %79 = vector.broadcast %3 : vector<1x1x8xf32> to vector<9x9x8xf32>
    %80 = arith.addf %78, %79 : vector<9x9x8xf32>
    %cst_30 = arith.constant 0.000000e+00 : f32
    %81 = vector.broadcast %cst_30 : f32 to vector<9x9x8xf32>
    %82 = arith.maximumf %80, %81 : vector<9x9x8xf32>
    %83 = tpu.iota {dimensions = array<i32: 0>} : vector<9x9x1xi32>
    %c2_i32_31 = arith.constant 2 : i32
    %84 = vector.broadcast %c2_i32_31 : i32 to vector<9x9x1xi32>
    %85 = arith.muli %84, %83 : vector<9x9x1xi32>
    %c1_i32_32 = arith.constant 1 : i32
    %86 = vector.broadcast %c1_i32_32 : i32 to vector<9x9x1xi32>
    %87 = arith.addi %86, %85 : vector<9x9x1xi32>
    %88 = tpu.iota {dimensions = array<i32: 1>} : vector<9x9x1xi32>
    %c2_i32_33 = arith.constant 2 : i32
    %89 = vector.broadcast %c2_i32_33 : i32 to vector<9x9x1xi32>
    %90 = arith.muli %89, %88 : vector<9x9x1xi32>
    %c0_i32_34 = arith.constant 0 : i32
    %91 = vector.broadcast %c0_i32_34 : i32 to vector<9x9x1xi32>
    %92 = arith.addi %91, %90 : vector<9x9x1xi32>
    %c1_i32_35 = arith.constant 1 : i32
    %93 = vector.broadcast %c1_i32_35 : i32 to vector<9x9x1xi32>
    %94 = arith.cmpi sge, %87, %93 : vector<9x9x1xi32>
    %c16_i32_36 = arith.constant 16 : i32
    %95 = vector.broadcast %c16_i32_36 : i32 to vector<9x9x1xi32>
    %96 = arith.cmpi sle, %87, %95 : vector<9x9x1xi32>
    %97 = arith.andi %94, %96 : vector<9x9x1xi1>
    %c1_i32_37 = arith.constant 1 : i32
    %98 = vector.broadcast %c1_i32_37 : i32 to vector<9x9x1xi32>
    %99 = arith.cmpi sge, %92, %98 : vector<9x9x1xi32>
    %100 = arith.andi %97, %99 : vector<9x9x1xi1>
    %c16_i32_38 = arith.constant 16 : i32
    %101 = vector.broadcast %c16_i32_38 : i32 to vector<9x9x1xi32>
    %102 = arith.cmpi sle, %92, %101 : vector<9x9x1xi32>
    %103 = arith.andi %100, %102 : vector<9x9x1xi1>
    %cst_39 = arith.constant 0.000000e+00 : f32
    %104 = vector.shape_cast %103 : vector<9x9x1xi1> to vector<9x9x1xi1>
    %105 = vector.broadcast %104 : vector<9x9x1xi1> to vector<9x9x8xi1>
    %106 = vector.broadcast %cst_39 : f32 to vector<9x9x8xf32>
    %107 = arith.select %105, %82, %106 : vector<9x9x8xi1>, vector<9x9x8xf32>
    %108 = arith.truncf %107 : vector<9x9x8xf32> to vector<9x9x8xbf16>
    %c0_40 = arith.constant 0 : index
    %c0_41 = arith.constant 0 : index
    %c0_42 = arith.constant 0 : index
    %c0_43 = arith.constant 0 : index
    %109 = vector.load %arg4[%c0_40, %c0_41, %c0_42, %c0_43] : memref<1x9x9x8xbf16, #tpu.memory_space<vmem>>, vector<1x9x9x8xbf16>
    %110 = vector.shape_cast %109 : vector<1x9x9x8xbf16> to vector<9x9x8xbf16>
    %111 = arith.extf %110 : vector<9x9x8xbf16> to vector<9x9x8xf32>
    %112 = vector.broadcast %1 : vector<1x1x8xf32> to vector<9x9x8xf32>
    %113 = arith.mulf %111, %112 : vector<9x9x8xf32>
    %114 = vector.broadcast %3 : vector<1x1x8xf32> to vector<9x9x8xf32>
    %115 = arith.addf %113, %114 : vector<9x9x8xf32>
    %cst_44 = arith.constant 0.000000e+00 : f32
    %116 = vector.broadcast %cst_44 : f32 to vector<9x9x8xf32>
    %117 = arith.maximumf %115, %116 : vector<9x9x8xf32>
    %118 = tpu.iota {dimensions = array<i32: 0>} : vector<9x9x1xi32>
    %c2_i32_45 = arith.constant 2 : i32
    %119 = vector.broadcast %c2_i32_45 : i32 to vector<9x9x1xi32>
    %120 = arith.muli %119, %118 : vector<9x9x1xi32>
    %c1_i32_46 = arith.constant 1 : i32
    %121 = vector.broadcast %c1_i32_46 : i32 to vector<9x9x1xi32>
    %122 = arith.addi %121, %120 : vector<9x9x1xi32>
    %123 = tpu.iota {dimensions = array<i32: 1>} : vector<9x9x1xi32>
    %c2_i32_47 = arith.constant 2 : i32
    %124 = vector.broadcast %c2_i32_47 : i32 to vector<9x9x1xi32>
    %125 = arith.muli %124, %123 : vector<9x9x1xi32>
    %c1_i32_48 = arith.constant 1 : i32
    %126 = vector.broadcast %c1_i32_48 : i32 to vector<9x9x1xi32>
    %127 = arith.addi %126, %125 : vector<9x9x1xi32>
    %c1_i32_49 = arith.constant 1 : i32
    %128 = vector.broadcast %c1_i32_49 : i32 to vector<9x9x1xi32>
    %129 = arith.cmpi sge, %122, %128 : vector<9x9x1xi32>
    %c16_i32_50 = arith.constant 16 : i32
    %130 = vector.broadcast %c16_i32_50 : i32 to vector<9x9x1xi32>
    %131 = arith.cmpi sle, %122, %130 : vector<9x9x1xi32>
    %132 = arith.andi %129, %131 : vector<9x9x1xi1>
    %c1_i32_51 = arith.constant 1 : i32
    %133 = vector.broadcast %c1_i32_51 : i32 to vector<9x9x1xi32>
    %134 = arith.cmpi sge, %127, %133 : vector<9x9x1xi32>
    %135 = arith.andi %132, %134 : vector<9x9x1xi1>
    %c16_i32_52 = arith.constant 16 : i32
    %136 = vector.broadcast %c16_i32_52 : i32 to vector<9x9x1xi32>
    %137 = arith.cmpi sle, %127, %136 : vector<9x9x1xi32>
    %138 = arith.andi %135, %137 : vector<9x9x1xi1>
    %cst_53 = arith.constant 0.000000e+00 : f32
    %139 = vector.shape_cast %138 : vector<9x9x1xi1> to vector<9x9x1xi1>
    %140 = vector.broadcast %139 : vector<9x9x1xi1> to vector<9x9x8xi1>
    %141 = vector.broadcast %cst_53 : f32 to vector<9x9x8xf32>
    %142 = arith.select %140, %117, %141 : vector<9x9x8xi1>, vector<9x9x8xf32>
    %143 = arith.truncf %142 : vector<9x9x8xf32> to vector<9x9x8xbf16>
    %cst_54 = arith.constant 0.000000e+00 : f32
    %144 = vector.broadcast %cst_54 : f32 to vector<64x8xf32>
    %c0_55 = arith.constant 0 : index
    %c0_56 = arith.constant 0 : index
    %145 = vector.load %arg10[%c0_55, %c0_56] : memref<64x8xf32, #tpu.memory_space<vmem>>, vector<64x8xf32>
    tpu.vector_store %arg10[%c0_55, %c0_56], %144 {strides = array<i32>} : memref<64x8xf32, #tpu.memory_space<vmem>>, vector<64x8xf32>,
    %146 = vector.extract_strided_slice %38 {offsets = [0, 0, 0], sizes = [8, 8, 8], strides = [1, 1, 1]} : vector<9x9x8xbf16> to vector<8x8x8xbf16>
    %147 = vector.shape_cast %146 : vector<8x8x8xbf16> to vector<64x8xbf16>
    %148 = vector.extract_strided_slice %73 {offsets = [0, 0, 0], sizes = [8, 8, 8], strides = [1, 1, 1]} : vector<9x9x8xbf16> to vector<8x8x8xbf16>
    %149 = vector.shape_cast %148 : vector<8x8x8xbf16> to vector<64x8xbf16>
    %150 = vector.extract_strided_slice %38 {offsets = [0, 1, 0], sizes = [8, 8, 8], strides = [1, 1, 1]} : vector<9x9x8xbf16> to vector<8x8x8xbf16>
    %151 = vector.shape_cast %150 : vector<8x8x8xbf16> to vector<64x8xbf16>
    %152 = tpu.concatenate %147, %149, %151 in 1 : vector<64x8xbf16>, vector<64x8xbf16>, vector<64x8xbf16> -> vector<64x24xbf16>
    %c0_57 = arith.constant 0 : index
    %c0_58 = arith.constant 0 : index
    %153 = vector.load %arg10[%c0_57, %c0_58] : memref<64x8xf32, #tpu.memory_space<vmem>>, vector<64x8xf32>
    %c0_59 = arith.constant 0 : index
    %c0_60 = arith.constant 0 : index
    %c0_61 = arith.constant 0 : index
    %154 = vector.load %arg7[%c0_59, %c0_60, %c0_61] : memref<3x24x8xbf16, #tpu.memory_space<vmem>>, vector<1x24x8xbf16>
    %155 = vector.shape_cast %154 : vector<1x24x8xbf16> to vector<24x8xbf16>
    %cst_62 = arith.constant dense<0.000000e+00> : vector<64x8xf32>
    %156 = tpu.matmul %152, %155, %cst_62 {dimension_numbers = #tpu.dot_dimension_numbers<[1], [0], [0], [1], [0, 0, 1, 1], [], []>} : vector<64x24xbf16>, vector<24x8xbf16>, vector<64x8xf32> -> vector<64x8xf32>
    %157 = arith.addf %153, %156 : vector<64x8xf32>
    %c0_63 = arith.constant 0 : index
    %c0_64 = arith.constant 0 : index
    %158 = vector.load %arg10[%c0_63, %c0_64] : memref<64x8xf32, #tpu.memory_space<vmem>>, vector<64x8xf32>
    tpu.vector_store %arg10[%c0_63, %c0_64], %157 {strides = array<i32>} : memref<64x8xf32, #tpu.memory_space<vmem>>, vector<64x8xf32>,
    %159 = vector.extract_strided_slice %108 {offsets = [0, 0, 0], sizes = [8, 8, 8], strides = [1, 1, 1]} : vector<9x9x8xbf16> to vector<8x8x8xbf16>
    %160 = vector.shape_cast %159 : vector<8x8x8xbf16> to vector<64x8xbf16>
    %161 = vector.extract_strided_slice %143 {offsets = [0, 0, 0], sizes = [8, 8, 8], strides = [1, 1, 1]} : vector<9x9x8xbf16> to vector<8x8x8xbf16>
    %162 = vector.shape_cast %161 : vector<8x8x8xbf16> to vector<64x8xbf16>
    %163 = vector.extract_strided_slice %108 {offsets = [0, 1, 0], sizes = [8, 8, 8], strides = [1, 1, 1]} : vector<9x9x8xbf16> to vector<8x8x8xbf16>
    %164 = vector.shape_cast %163 : vector<8x8x8xbf16> to vector<64x8xbf16>
    %165 = tpu.concatenate %160, %162, %164 in 1 : vector<64x8xbf16>, vector<64x8xbf16>, vector<64x8xbf16> -> vector<64x24xbf16>
    %c0_65 = arith.constant 0 : index
    %c0_66 = arith.constant 0 : index
    %166 = vector.load %arg10[%c0_65, %c0_66] : memref<64x8xf32, #tpu.memory_space<vmem>>, vector<64x8xf32>
    %c1 = arith.constant 1 : index
    %c0_67 = arith.constant 0 : index
    %c0_68 = arith.constant 0 : index
    %167 = vector.load %arg7[%c1, %c0_67, %c0_68] : memref<3x24x8xbf16, #tpu.memory_space<vmem>>, vector<1x24x8xbf16>
    %168 = vector.shape_cast %167 : vector<1x24x8xbf16> to vector<24x8xbf16>
    %cst_69 = arith.constant dense<0.000000e+00> : vector<64x8xf32>
    %169 = tpu.matmul %165, %168, %cst_69 {dimension_numbers = #tpu.dot_dimension_numbers<[1], [0], [0], [1], [0, 0, 1, 1], [], []>} : vector<64x24xbf16>, vector<24x8xbf16>, vector<64x8xf32> -> vector<64x8xf32>
    %170 = arith.addf %166, %169 : vector<64x8xf32>
    %c0_70 = arith.constant 0 : index
    %c0_71 = arith.constant 0 : index
    %171 = vector.load %arg10[%c0_70, %c0_71] : memref<64x8xf32, #tpu.memory_space<vmem>>, vector<64x8xf32>
    tpu.vector_store %arg10[%c0_70, %c0_71], %170 {strides = array<i32>} : memref<64x8xf32, #tpu.memory_space<vmem>>, vector<64x8xf32>,
    %172 = vector.extract_strided_slice %38 {offsets = [1, 0, 0], sizes = [8, 8, 8], strides = [1, 1, 1]} : vector<9x9x8xbf16> to vector<8x8x8xbf16>
    %173 = vector.shape_cast %172 : vector<8x8x8xbf16> to vector<64x8xbf16>
    %174 = vector.extract_strided_slice %73 {offsets = [1, 0, 0], sizes = [8, 8, 8], strides = [1, 1, 1]} : vector<9x9x8xbf16> to vector<8x8x8xbf16>
    %175 = vector.shape_cast %174 : vector<8x8x8xbf16> to vector<64x8xbf16>
    %176 = vector.extract_strided_slice %38 {offsets = [1, 1, 0], sizes = [8, 8, 8], strides = [1, 1, 1]} : vector<9x9x8xbf16> to vector<8x8x8xbf16>
    %177 = vector.shape_cast %176 : vector<8x8x8xbf16> to vector<64x8xbf16>
    %178 = tpu.concatenate %173, %175, %177 in 1 : vector<64x8xbf16>, vector<64x8xbf16>, vector<64x8xbf16> -> vector<64x24xbf16>
    %c0_72 = arith.constant 0 : index
    %c0_73 = arith.constant 0 : index
    %179 = vector.load %arg10[%c0_72, %c0_73] : memref<64x8xf32, #tpu.memory_space<vmem>>, vector<64x8xf32>
    %c2 = arith.constant 2 : index
    %c0_74 = arith.constant 0 : index
    %c0_75 = arith.constant 0 : index
    %180 = vector.load %arg7[%c2, %c0_74, %c0_75] : memref<3x24x8xbf16, #tpu.memory_space<vmem>>, vector<1x24x8xbf16>
    %181 = vector.shape_cast %180 : vector<1x24x8xbf16> to vector<24x8xbf16>
    %cst_76 = arith.constant dense<0.000000e+00> : vector<64x8xf32>
    %182 = tpu.matmul %178, %181, %cst_76 {dimension_numbers = #tpu.dot_dimension_numbers<[1], [0], [0], [1], [0, 0, 1, 1], [], []>} : vector<64x24xbf16>, vector<24x8xbf16>, vector<64x8xf32> -> vector<64x8xf32>
    %183 = arith.addf %179, %182 : vector<64x8xf32>
    %c0_77 = arith.constant 0 : index
    %c0_78 = arith.constant 0 : index
    %184 = vector.load %arg10[%c0_77, %c0_78] : memref<64x8xf32, #tpu.memory_space<vmem>>, vector<64x8xf32>
    tpu.vector_store %arg10[%c0_77, %c0_78], %183 {strides = array<i32>} : memref<64x8xf32, #tpu.memory_space<vmem>>, vector<64x8xf32>,
    %c0_79 = arith.constant 0 : index
    %c0_80 = arith.constant 0 : index
    %185 = vector.load %arg10[%c0_79, %c0_80] : memref<64x8xf32, #tpu.memory_space<vmem>>, vector<64x8xf32>
    %186 = vector.shape_cast %185 : vector<64x8xf32> to vector<1x8x8x8xf32>
    %187 = arith.truncf %186 : vector<1x8x8x8xf32> to vector<1x8x8x8xbf16>
    %c0_81 = arith.constant 0 : index
    %c0_82 = arith.constant 0 : index
    %c0_83 = arith.constant 0 : index
    %c0_84 = arith.constant 0 : index
    %188 = vector.load %arg8[%c0_81, %c0_82, %c0_83, %c0_84] : memref<1x8x8x8xbf16, #tpu.memory_space<vmem>>, vector<1x8x8x8xbf16>
    tpu.vector_store %arg8[%c0_81, %c0_82, %c0_83, %c0_84], %187 {strides = array<i32>} : memref<1x8x8x8xbf16, #tpu.memory_space<vmem>>, vector<1x8x8x8xbf16>,
    %cst_85 = arith.constant dense<0.000000e+00> : vector<8xf32>
    %189 = vector.multi_reduction <add>, %185, %cst_85 [0] : vector<64x8xf32> to vector<8xf32>
    %190 = vector.shape_cast %189 : vector<8xf32> to vector<1x8xf32>
    %191 = arith.mulf %185, %185 : vector<64x8xf32>
    %cst_86 = arith.constant dense<0.000000e+00> : vector<8xf32>
    %192 = vector.multi_reduction <add>, %191, %cst_86 [0] : vector<64x8xf32> to vector<8xf32>
    %193 = vector.shape_cast %192 : vector<8xf32> to vector<1x8xf32>
    %194 = tpu.concatenate %190, %193 in 0 : vector<1x8xf32>, vector<1x8xf32> -> vector<2x8xf32>
    %195 = vector.shape_cast %194 : vector<2x8xf32> to vector<1x2x8xf32>
    %c0_87 = arith.constant 0 : index
    %c0_88 = arith.constant 0 : index
    %c0_89 = arith.constant 0 : index
    %196 = vector.load %arg9[%c0_87, %c0_88, %c0_89] : memref<1x2x8xf32, #tpu.memory_space<vmem>>, vector<1x2x8xf32>
    tpu.vector_store %arg9[%c0_87, %c0_88, %c0_89], %195 {strides = array<i32>} : memref<1x2x8xf32, #tpu.memory_space<vmem>>, vector<1x2x8xf32>,
    return
  }
  func.func @transform_0(%arg0: i32) -> (i32, i32, i32, i32) {
    %c0_i32 = arith.constant 0 : i32
    %c0_i32_0 = arith.constant 0 : i32
    %c0_i32_1 = arith.constant 0 : i32
    %c0_i32_2 = arith.constant 0 : i32
    return %arg0, %c0_i32, %c0_i32_0, %c0_i32_1 : i32, i32, i32, i32
  }
  func.func @transform_1(%arg0: i32) -> (i32, i32, i32, i32) {
    %c0_i32 = arith.constant 0 : i32
    %c0_i32_0 = arith.constant 0 : i32
    %c0_i32_1 = arith.constant 0 : i32
    %c0_i32_2 = arith.constant 0 : i32
    return %arg0, %c0_i32, %c0_i32_0, %c0_i32_1 : i32, i32, i32, i32
  }
  func.func @transform_2(%arg0: i32) -> (i32, i32, i32, i32) {
    %c0_i32 = arith.constant 0 : i32
    %c0_i32_0 = arith.constant 0 : i32
    %c0_i32_1 = arith.constant 0 : i32
    %c0_i32_2 = arith.constant 0 : i32
    return %arg0, %c0_i32, %c0_i32_0, %c0_i32_1 : i32, i32, i32, i32
  }
  func.func @transform_3(%arg0: i32) -> (i32, i32, i32, i32) {
    %c0_i32 = arith.constant 0 : i32
    %c0_i32_0 = arith.constant 0 : i32
    %c0_i32_1 = arith.constant 0 : i32
    %c0_i32_2 = arith.constant 0 : i32
    return %arg0, %c0_i32, %c0_i32_0, %c0_i32_1 : i32, i32, i32, i32
  }
  func.func @transform_4(%arg0: i32) -> (i32, i32) {
    %c0_i32 = arith.constant 0 : i32
    %c0_i32_0 = arith.constant 0 : i32
    %c0_i32_1 = arith.constant 0 : i32
    return %c0_i32, %c0_i32_0 : i32, i32
  }
  func.func @transform_5(%arg0: i32) -> (i32, i32) {
    %c0_i32 = arith.constant 0 : i32
    %c0_i32_0 = arith.constant 0 : i32
    %c0_i32_1 = arith.constant 0 : i32
    return %c0_i32, %c0_i32_0 : i32, i32
  }
  func.func @transform_6(%arg0: i32) -> (i32, i32, i32) {
    %c0_i32 = arith.constant 0 : i32
    %c0_i32_0 = arith.constant 0 : i32
    %c0_i32_1 = arith.constant 0 : i32
    %c0_i32_2 = arith.constant 0 : i32
    return %c0_i32, %c0_i32_0, %c0_i32_1 : i32, i32, i32
  }
  func.func @transform_7(%arg0: i32) -> (i32, i32, i32, i32) {
    %c0_i32 = arith.constant 0 : i32
    %c0_i32_0 = arith.constant 0 : i32
    %c0_i32_1 = arith.constant 0 : i32
    %c0_i32_2 = arith.constant 0 : i32
    return %arg0, %c0_i32, %c0_i32_0, %c0_i32_1 : i32, i32, i32, i32
  }
  func.func @transform_8(%arg0: i32) -> (i32, i32, i32) {
    %c0_i32 = arith.constant 0 : i32
    %c0_i32_0 = arith.constant 0 : i32
    %c0_i32_1 = arith.constant 0 : i32
    return %arg0, %c0_i32, %c0_i32_0 : i32, i32, i32
  }
}

module attributes {stable_mosaic.version = 11 : i64} {
  func.func @_dual_matmul_stats_kernel(%arg0: i32, %arg1: memref<64x8xbf16, #tpu.memory_space<vmem>>, %arg2: memref<1x8xf32, #tpu.memory_space<vmem>>, %arg3: memref<1x8xf32, #tpu.memory_space<vmem>>, %arg4: memref<8x16xbf16, #tpu.memory_space<vmem>>, %arg5: memref<64x4xbf16, #tpu.memory_space<vmem>>, %arg6: memref<4x16xbf16, #tpu.memory_space<vmem>>, %arg7: memref<64x16xbf16, #tpu.memory_space<vmem>>, %arg8: memref<64x16xbf16, #tpu.memory_space<vmem>>, %arg9: memref<1x4x16xf32, #tpu.memory_space<vmem>>) attributes {dimension_semantics = [#tpu.dimension_semantics<parallel>], iteration_bounds = array<i64: 2>, scalar_prefetch = 0 : i64, scratch_operands = 0 : i64, tpu.core_type = #tpu.core_type<tc>, window_params = [{transform_indices = @transform_0, window_bounds = array<i64: 64, 8>}, {pipeline_mode = #tpu.pipeline_mode<synchronous>, transform_indices = @transform_1, window_bounds = array<i64: 1, 8>}, {pipeline_mode = #tpu.pipeline_mode<synchronous>, transform_indices = @transform_2, window_bounds = array<i64: 1, 8>}, {pipeline_mode = #tpu.pipeline_mode<synchronous>, transform_indices = @transform_3, window_bounds = array<i64: 8, 16>}, {transform_indices = @transform_4, window_bounds = array<i64: 64, 4>}, {pipeline_mode = #tpu.pipeline_mode<synchronous>, transform_indices = @transform_5, window_bounds = array<i64: 4, 16>}, {transform_indices = @transform_6, window_bounds = array<i64: 64, 16>}, {transform_indices = @transform_7, window_bounds = array<i64: 64, 16>}, {transform_indices = @transform_8, window_bounds = array<i64: 1, 4, 16>}]} {
    %c0 = arith.constant 0 : index
    %c0_0 = arith.constant 0 : index
    %0 = vector.load %arg1[%c0, %c0_0] : memref<64x8xbf16, #tpu.memory_space<vmem>>, vector<64x8xbf16>
    %1 = arith.extf %0 : vector<64x8xbf16> to vector<64x8xf32>
    %c0_1 = arith.constant 0 : index
    %c0_2 = arith.constant 0 : index
    %2 = vector.load %arg2[%c0_1, %c0_2] : memref<1x8xf32, #tpu.memory_space<vmem>>, vector<1x8xf32>
    %3 = vector.broadcast %2 : vector<1x8xf32> to vector<64x8xf32>
    %4 = arith.mulf %1, %3 : vector<64x8xf32>
    %c0_3 = arith.constant 0 : index
    %c0_4 = arith.constant 0 : index
    %5 = vector.load %arg3[%c0_3, %c0_4] : memref<1x8xf32, #tpu.memory_space<vmem>>, vector<1x8xf32>
    %6 = vector.broadcast %5 : vector<1x8xf32> to vector<64x8xf32>
    %7 = arith.addf %4, %6 : vector<64x8xf32>
    %cst = arith.constant 0.000000e+00 : f32
    %8 = vector.broadcast %cst : f32 to vector<64x8xf32>
    %9 = arith.maximumf %7, %8 : vector<64x8xf32>
    %10 = arith.truncf %9 : vector<64x8xf32> to vector<64x8xbf16>
    %c0_5 = arith.constant 0 : index
    %c0_6 = arith.constant 0 : index
    %11 = vector.load %arg4[%c0_5, %c0_6] : memref<8x16xbf16, #tpu.memory_space<vmem>>, vector<8x16xbf16>
    %cst_7 = arith.constant dense<0.000000e+00> : vector<64x16xf32>
    %12 = tpu.matmul %10, %11, %cst_7 {dimension_numbers = #tpu.dot_dimension_numbers<[1], [0], [0], [1], [0, 0, 1, 1], [], []>} : vector<64x8xbf16>, vector<8x16xbf16>, vector<64x16xf32> -> vector<64x16xf32>
    %c0_8 = arith.constant 0 : index
    %c0_9 = arith.constant 0 : index
    %13 = vector.load %arg5[%c0_8, %c0_9] : memref<64x4xbf16, #tpu.memory_space<vmem>>, vector<64x4xbf16>
    %c0_10 = arith.constant 0 : index
    %c0_11 = arith.constant 0 : index
    %14 = vector.load %arg6[%c0_10, %c0_11] : memref<4x16xbf16, #tpu.memory_space<vmem>>, vector<4x16xbf16>
    %cst_12 = arith.constant dense<0.000000e+00> : vector<64x16xf32>
    %15 = tpu.matmul %13, %14, %cst_12 {dimension_numbers = #tpu.dot_dimension_numbers<[1], [0], [0], [1], [0, 0, 1, 1], [], []>} : vector<64x4xbf16>, vector<4x16xbf16>, vector<64x16xf32> -> vector<64x16xf32>
    %16 = arith.truncf %12 : vector<64x16xf32> to vector<64x16xbf16>
    %c0_13 = arith.constant 0 : index
    %c0_14 = arith.constant 0 : index
    %17 = vector.load %arg7[%c0_13, %c0_14] : memref<64x16xbf16, #tpu.memory_space<vmem>>, vector<64x16xbf16>
    tpu.vector_store %arg7[%c0_13, %c0_14], %16 {strides = array<i32>} : memref<64x16xbf16, #tpu.memory_space<vmem>>, vector<64x16xbf16>,
    %18 = arith.truncf %15 : vector<64x16xf32> to vector<64x16xbf16>
    %c0_15 = arith.constant 0 : index
    %c0_16 = arith.constant 0 : index
    %19 = vector.load %arg8[%c0_15, %c0_16] : memref<64x16xbf16, #tpu.memory_space<vmem>>, vector<64x16xbf16>
    tpu.vector_store %arg8[%c0_15, %c0_16], %18 {strides = array<i32>} : memref<64x16xbf16, #tpu.memory_space<vmem>>, vector<64x16xbf16>,
    %cst_17 = arith.constant dense<0.000000e+00> : vector<16xf32>
    %20 = vector.multi_reduction <add>, %12, %cst_17 [0] : vector<64x16xf32> to vector<16xf32>
    %21 = vector.shape_cast %20 : vector<16xf32> to vector<1x16xf32>
    %22 = arith.mulf %12, %12 : vector<64x16xf32>
    %cst_18 = arith.constant dense<0.000000e+00> : vector<16xf32>
    %23 = vector.multi_reduction <add>, %22, %cst_18 [0] : vector<64x16xf32> to vector<16xf32>
    %24 = vector.shape_cast %23 : vector<16xf32> to vector<1x16xf32>
    %cst_19 = arith.constant dense<0.000000e+00> : vector<16xf32>
    %25 = vector.multi_reduction <add>, %15, %cst_19 [0] : vector<64x16xf32> to vector<16xf32>
    %26 = vector.shape_cast %25 : vector<16xf32> to vector<1x16xf32>
    %27 = arith.mulf %15, %15 : vector<64x16xf32>
    %cst_20 = arith.constant dense<0.000000e+00> : vector<16xf32>
    %28 = vector.multi_reduction <add>, %27, %cst_20 [0] : vector<64x16xf32> to vector<16xf32>
    %29 = vector.shape_cast %28 : vector<16xf32> to vector<1x16xf32>
    %30 = tpu.concatenate %21, %24, %26, %29 in 0 : vector<1x16xf32>, vector<1x16xf32>, vector<1x16xf32>, vector<1x16xf32> -> vector<4x16xf32>
    %31 = vector.shape_cast %30 : vector<4x16xf32> to vector<1x4x16xf32>
    %c0_21 = arith.constant 0 : index
    %c0_22 = arith.constant 0 : index
    %c0_23 = arith.constant 0 : index
    %32 = vector.load %arg9[%c0_21, %c0_22, %c0_23] : memref<1x4x16xf32, #tpu.memory_space<vmem>>, vector<1x4x16xf32>
    tpu.vector_store %arg9[%c0_21, %c0_22, %c0_23], %31 {strides = array<i32>} : memref<1x4x16xf32, #tpu.memory_space<vmem>>, vector<1x4x16xf32>,
    return
  }
  func.func @transform_0(%arg0: i32) -> (i32, i32) {
    %c0_i32 = arith.constant 0 : i32
    %c0_i32_0 = arith.constant 0 : i32
    return %arg0, %c0_i32 : i32, i32
  }
  func.func @transform_1(%arg0: i32) -> (i32, i32) {
    %c0_i32 = arith.constant 0 : i32
    %c0_i32_0 = arith.constant 0 : i32
    %c0_i32_1 = arith.constant 0 : i32
    return %c0_i32, %c0_i32_0 : i32, i32
  }
  func.func @transform_2(%arg0: i32) -> (i32, i32) {
    %c0_i32 = arith.constant 0 : i32
    %c0_i32_0 = arith.constant 0 : i32
    %c0_i32_1 = arith.constant 0 : i32
    return %c0_i32, %c0_i32_0 : i32, i32
  }
  func.func @transform_3(%arg0: i32) -> (i32, i32) {
    %c0_i32 = arith.constant 0 : i32
    %c0_i32_0 = arith.constant 0 : i32
    %c0_i32_1 = arith.constant 0 : i32
    return %c0_i32, %c0_i32_0 : i32, i32
  }
  func.func @transform_4(%arg0: i32) -> (i32, i32) {
    %c0_i32 = arith.constant 0 : i32
    %c0_i32_0 = arith.constant 0 : i32
    return %arg0, %c0_i32 : i32, i32
  }
  func.func @transform_5(%arg0: i32) -> (i32, i32) {
    %c0_i32 = arith.constant 0 : i32
    %c0_i32_0 = arith.constant 0 : i32
    %c0_i32_1 = arith.constant 0 : i32
    return %c0_i32, %c0_i32_0 : i32, i32
  }
  func.func @transform_6(%arg0: i32) -> (i32, i32) {
    %c0_i32 = arith.constant 0 : i32
    %c0_i32_0 = arith.constant 0 : i32
    return %arg0, %c0_i32 : i32, i32
  }
  func.func @transform_7(%arg0: i32) -> (i32, i32) {
    %c0_i32 = arith.constant 0 : i32
    %c0_i32_0 = arith.constant 0 : i32
    return %arg0, %c0_i32 : i32, i32
  }
  func.func @transform_8(%arg0: i32) -> (i32, i32, i32) {
    %c0_i32 = arith.constant 0 : i32
    %c0_i32_0 = arith.constant 0 : i32
    %c0_i32_1 = arith.constant 0 : i32
    return %arg0, %c0_i32, %c0_i32_0 : i32, i32, i32
  }
}

module attributes {stable_mosaic.version = 11 : i64} {
  func.func @_dual_affine_add_relu_kernel(%arg0: i32, %arg1: memref<64x16xbf16, #tpu.memory_space<vmem>>, %arg2: memref<64x16xbf16, #tpu.memory_space<vmem>>, %arg3: memref<1x16xf32, #tpu.memory_space<vmem>>, %arg4: memref<1x16xf32, #tpu.memory_space<vmem>>, %arg5: memref<1x16xf32, #tpu.memory_space<vmem>>, %arg6: memref<1x16xf32, #tpu.memory_space<vmem>>, %arg7: memref<64x16xf32, #tpu.memory_space<vmem>>) attributes {dimension_semantics = [#tpu.dimension_semantics<parallel>], iteration_bounds = array<i64: 2>, scalar_prefetch = 0 : i64, scratch_operands = 0 : i64, tpu.core_type = #tpu.core_type<tc>, window_params = [{transform_indices = @transform_0, window_bounds = array<i64: 64, 16>}, {transform_indices = @transform_1, window_bounds = array<i64: 64, 16>}, {pipeline_mode = #tpu.pipeline_mode<synchronous>, transform_indices = @transform_2, window_bounds = array<i64: 1, 16>}, {pipeline_mode = #tpu.pipeline_mode<synchronous>, transform_indices = @transform_3, window_bounds = array<i64: 1, 16>}, {pipeline_mode = #tpu.pipeline_mode<synchronous>, transform_indices = @transform_4, window_bounds = array<i64: 1, 16>}, {pipeline_mode = #tpu.pipeline_mode<synchronous>, transform_indices = @transform_5, window_bounds = array<i64: 1, 16>}, {transform_indices = @transform_6, window_bounds = array<i64: 64, 16>}]} {
    %c0 = arith.constant 0 : index
    %c0_0 = arith.constant 0 : index
    %0 = vector.load %arg1[%c0, %c0_0] : memref<64x16xbf16, #tpu.memory_space<vmem>>, vector<64x16xbf16>
    %1 = arith.extf %0 : vector<64x16xbf16> to vector<64x16xf32>
    %c0_1 = arith.constant 0 : index
    %c0_2 = arith.constant 0 : index
    %2 = vector.load %arg3[%c0_1, %c0_2] : memref<1x16xf32, #tpu.memory_space<vmem>>, vector<1x16xf32>
    %3 = vector.broadcast %2 : vector<1x16xf32> to vector<64x16xf32>
    %4 = arith.mulf %1, %3 : vector<64x16xf32>
    %c0_3 = arith.constant 0 : index
    %c0_4 = arith.constant 0 : index
    %5 = vector.load %arg4[%c0_3, %c0_4] : memref<1x16xf32, #tpu.memory_space<vmem>>, vector<1x16xf32>
    %6 = vector.broadcast %5 : vector<1x16xf32> to vector<64x16xf32>
    %7 = arith.addf %4, %6 : vector<64x16xf32>
    %c0_5 = arith.constant 0 : index
    %c0_6 = arith.constant 0 : index
    %8 = vector.load %arg2[%c0_5, %c0_6] : memref<64x16xbf16, #tpu.memory_space<vmem>>, vector<64x16xbf16>
    %9 = arith.extf %8 : vector<64x16xbf16> to vector<64x16xf32>
    %c0_7 = arith.constant 0 : index
    %c0_8 = arith.constant 0 : index
    %10 = vector.load %arg5[%c0_7, %c0_8] : memref<1x16xf32, #tpu.memory_space<vmem>>, vector<1x16xf32>
    %11 = vector.broadcast %10 : vector<1x16xf32> to vector<64x16xf32>
    %12 = arith.mulf %9, %11 : vector<64x16xf32>
    %13 = arith.addf %7, %12 : vector<64x16xf32>
    %c0_9 = arith.constant 0 : index
    %c0_10 = arith.constant 0 : index
    %14 = vector.load %arg6[%c0_9, %c0_10] : memref<1x16xf32, #tpu.memory_space<vmem>>, vector<1x16xf32>
    %15 = vector.broadcast %14 : vector<1x16xf32> to vector<64x16xf32>
    %16 = arith.addf %13, %15 : vector<64x16xf32>
    %cst = arith.constant 0.000000e+00 : f32
    %17 = vector.broadcast %cst : f32 to vector<64x16xf32>
    %18 = arith.maximumf %16, %17 : vector<64x16xf32>
    %c0_11 = arith.constant 0 : index
    %c0_12 = arith.constant 0 : index
    %19 = vector.load %arg7[%c0_11, %c0_12] : memref<64x16xf32, #tpu.memory_space<vmem>>, vector<64x16xf32>
    tpu.vector_store %arg7[%c0_11, %c0_12], %18 {strides = array<i32>} : memref<64x16xf32, #tpu.memory_space<vmem>>, vector<64x16xf32>,
    return
  }
  func.func @transform_0(%arg0: i32) -> (i32, i32) {
    %c0_i32 = arith.constant 0 : i32
    %c0_i32_0 = arith.constant 0 : i32
    return %arg0, %c0_i32 : i32, i32
  }
  func.func @transform_1(%arg0: i32) -> (i32, i32) {
    %c0_i32 = arith.constant 0 : i32
    %c0_i32_0 = arith.constant 0 : i32
    return %arg0, %c0_i32 : i32, i32
  }
  func.func @transform_2(%arg0: i32) -> (i32, i32) {
    %c0_i32 = arith.constant 0 : i32
    %c0_i32_0 = arith.constant 0 : i32
    %c0_i32_1 = arith.constant 0 : i32
    return %c0_i32, %c0_i32_0 : i32, i32
  }
  func.func @transform_3(%arg0: i32) -> (i32, i32) {
    %c0_i32 = arith.constant 0 : i32
    %c0_i32_0 = arith.constant 0 : i32
    %c0_i32_1 = arith.constant 0 : i32
    return %c0_i32, %c0_i32_0 : i32, i32
  }
  func.func @transform_4(%arg0: i32) -> (i32, i32) {
    %c0_i32 = arith.constant 0 : i32
    %c0_i32_0 = arith.constant 0 : i32
    %c0_i32_1 = arith.constant 0 : i32
    return %c0_i32, %c0_i32_0 : i32, i32
  }
  func.func @transform_5(%arg0: i32) -> (i32, i32) {
    %c0_i32 = arith.constant 0 : i32
    %c0_i32_0 = arith.constant 0 : i32
    %c0_i32_1 = arith.constant 0 : i32
    return %c0_i32, %c0_i32_0 : i32, i32
  }
  func.func @transform_6(%arg0: i32) -> (i32, i32) {
    %c0_i32 = arith.constant 0 : i32
    %c0_i32_0 = arith.constant 0 : i32
    return %arg0, %c0_i32 : i32, i32
  }
}

</mosaic_0001>

<llo_original>
// kernel: resid_block.4
$region0: #{resid_block.4}
  #allocation0 [shape = 'u32[]', space=smem, size = 0x4, offset = 0x4, fixed_abs, tag = 'smem constant byte address 0x4 - core index']
  #allocation1 [shape = 'u32[72,128]{1,0:T(1,128)}', space=vmem, size = 0x9000, scoped, tag = 'internal scratch']
  %s0 = inlined_call_operand.vmem [shape: bf16[512,4], index: 0, kind: input, shape index: {}]
  %s1 = inlined_call_operand.vmem [shape: bf16[4,8], index: 1, kind: input, shape index: {}]
  %s2 = inlined_call_operand.vmem [shape: bf16[512,8], index: 2, kind: output, shape index: {0}]
  %s3 = inlined_call_operand.vmem [shape: f32[2,2,8], index: 3, kind: output, shape index: {1}]
  %4 = xla_tuple %s2, %s3
  %s5 = sld [smem:[#allocation0]]
  $region49: #{resid_block.4} parent=0
    _
  %s7 = ssub.s32 1, %s5
  %s8 = scalar_select 0, %s7, %s5
  loop: start=0, step=1, limit=4
  $region2: #{resid_block.4} parent=0 // loop_pre_header
    _
  $region3: #{resid_block.4} parent=0 // loop_header
    %s10 = sphi 0, %s14
    %p11 = scmp.ge.s32.totalorder %s10, 4
    %s20 = sphi 0, %s22
    %s23 = sphi 0, %s20
    %s24 = sphi 0, %s23
    %s40 = sphi 0, %s24
    %s44 = sphi 0, %s44
    %s46 = sphi 0, %s44
    %s47 = sphi 0, %s46
    %s61 = sphi 0, %s47
    %s67 = sphi 0, %s69
    %s70 = sphi 0, %s67
    %s71 = sphi 0, %s70
    %s87 = sphi 0, %s71
    %s93 = sphi 0, %s95
    %s96 = sphi 0, %s93
    %s97 = sphi 0, %s96
    %s113 = sphi 0, %s97
  $region4: #{resid_block.4} parent=0 // loop_header_branch
    %13 = sbr.rel (%p11) target = $region8
  $region5: #{resid_block.4} parent=0 // loop_body
    %s15 = ssub.s32 %s10, 1
    %s16 = ssub.s32 %s10, 2
    %s17 = sadd.s32 %s10, 1
    %s18 = ssub.s32 %s10, %s17
    %p19 = scmp.eq.s32.totalorder %s18, 0
    %s21 = sadd.s32 %s20, 1
    %s22 = scalar_select %p19, %s20, %s21
    %p25 = pneg %p19
    %p26 = scmp.eq.s32.totalorder %s10, 1
    %p27 = por %p25, %p26
    %p28 = scmp.ne.s32.totalorder %s20, %s23
    %p29 = scmp.eq.s32.totalorder %s10, 0
    %p30 = por %p28, %p29
    %p31 = scmp.ne.s32.totalorder %s20, %s23
    %p32 = scmp.eq.s32.totalorder %s15, 1
    %p33 = por %p31, %p32
    %p34 = scmp.ne.s32.totalorder %s23, %s24
    %p35 = scmp.eq.s32.totalorder %s15, 0
    %p36 = por %p34, %p35
    %p37 = scmp.ne.s32.totalorder %s23, %s24
    %p38 = scmp.eq.s32.totalorder %s16, 1
    %p39 = por %p37, %p38
    %p41 = scmp.ne.s32.totalorder %s24, %s40
    %p42 = scmp.eq.s32.totalorder %s16, 0
    %p43 = por %p41, %p42
    %s45 = sadd.s32 %s44, 1
    %p48 = scmp.eq.s32.totalorder %s10, 1
    %p49 = scmp.ne.s32.totalorder %s44, %s46
    %p50 = scmp.eq.s32.totalorder %s10, 0
    %p51 = por %p49, %p50
    %p52 = scmp.ne.s32.totalorder %s44, %s46
    %p53 = scmp.eq.s32.totalorder %s15, 1
    %p54 = por %p52, %p53
    %p55 = scmp.ne.s32.totalorder %s46, %s47
    %p56 = scmp.eq.s32.totalorder %s15, 0
    %p57 = por %p55, %p56
    %p58 = scmp.ne.s32.totalorder %s46, %s47
    %p59 = scmp.eq.s32.totalorder %s16, 1
    %p60 = por %p58, %p59
    %p62 = scmp.ne.s32.totalorder %s47, %s61
    %p63 = scmp.eq.s32.totalorder %s16, 0
    %p64 = por %p62, %p63
    %s65 = ssub.s32 %s10, %s17
    %p66 = scmp.eq.s32.totalorder %s65, 0
    %s68 = sadd.s32 %s67, 1
    %s69 = scalar_select %p66, %s67, %s68
    %p72 = pneg %p66
    %p73 = scmp.eq.s32.totalorder %s10, 1
    %p74 = por %p72, %p73
    %p75 = scmp.ne.s32.totalorder %s67, %s70
    %p76 = scmp.eq.s32.totalorder %s10, 0
    %p77 = por %p75, %p76
    %p78 = scmp.ne.s32.totalorder %s67, %s70
    %p79 = scmp.eq.s32.totalorder %s15, 1
    %p80 = por %p78, %p79
    %p81 = scmp.ne.s32.totalorder %s70, %s71
    %p82 = scmp.eq.s32.totalorder %s15, 0
    %p83 = por %p81, %p82
    %p84 = scmp.ne.s32.totalorder %s70, %s71
    %p85 = scmp.eq.s32.totalorder %s16, 1
    %p86 = por %p84, %p85
    %p88 = scmp.ne.s32.totalorder %s71, %s87
    %p89 = scmp.eq.s32.totalorder %s16, 0
    %p90 = por %p88, %p89
    %s91 = ssub.s32 %s10, %s17
    %p92 = scmp.eq.s32.totalorder %s91, 0
    %s94 = sadd.s32 %s93, 1
    %s95 = scalar_select %p92, %s93, %s94
    %p98 = pneg %p92
    %p99 = scmp.eq.s32.totalorder %s10, 1
    %p100 = por %p98, %p99
    %p101 = scmp.ne.s32.totalorder %s93, %s96
    %p102 = scmp.eq.s32.totalorder %s10, 0
    %p103 = por %p101, %p102
    %p104 = scmp.ne.s32.totalorder %s93, %s96
    %p105 = scmp.eq.s32.totalorder %s15, 1
    %p106 = por %p104, %p105
    %p107 = scmp.ne.s32.totalorder %s96, %s97
    %p108 = scmp.eq.s32.totalorder %s15, 0
    %p109 = por %p107, %p108
    %p110 = scmp.ne.s32.totalorder %s96, %s97
    %p111 = scmp.eq.s32.totalorder %s16, 1
    %p112 = por %p110, %p111
    %p114 = scmp.ne.s32.totalorder %s97, %s113
    %p115 = scmp.eq.s32.totalorder %s16, 0
    %p116 = por %p114, %p115
    %p117 = scmp.le.s32.totalorder 1, %s10
    %p118 = scmp.lt.s32.totalorder %s10, 3
    %p119 = pnand %p117, %p118
    %p120 = pneg %p119
    // Predicated region
    $region9: #{resid_block.4} parent=5 // pred_check
      _
    $region10: #{resid_block.4} parent=5 // pred_check_branch
      %122 = sbr.rel (%p119) target = $region12
    $region11: #{resid_block.4} parent=5 // pred_region
      %s123 = ssub.s32 %s10, 1
      // Predicated region
      $region13: #{resid_block.4} parent=11 // pred_check
        %p124 = pneg %p57
      $region14: #{resid_block.4} parent=11 // pred_check_branch
        %126 = sbr.rel (%p124) target = $region16
      $region15: #{resid_block.4} parent=11 // pred_region
        _
      $region16: #{resid_block.4} parent=11 // pred_fallthru
        _
    $region12: #{resid_block.4} parent=5 // pred_fallthru
      _
    %p127 = scmp.lt.s32.totalorder %s10, 2
    // Predicated region
    $region17: #{resid_block.4} parent=5 // pred_check
      %p128 = pneg %p127
    $region18: #{resid_block.4} parent=5 // pred_check_branch
      %130 = sbr.rel (%p128) target = $region20
    $region19: #{resid_block.4} parent=5 // pred_region
      // Predicated region
      $region21: #{resid_block.4} parent=19 // pred_check
        %p131 = pneg %p30
      $region22: #{resid_block.4} parent=19 // pred_check_branch
        %133 = sbr.rel (%p131) target = $region24
      $region23: #{resid_block.4} parent=19 // pred_region
        %s134 = smul.u32 32, %s10
        %p135 = scmp.lt.s32.totalorder %s134, 63
        %s136 = scalar_select %p135, %s134, 63
        %s137 = smul.addr %s136, 4
        %s138 = scalar_lea.vmem %s0, %s137
        %s139 = smul.u32 32, %s10
      $region24: #{resid_block.4} parent=19 // pred_fallthru
        _
    $region20: #{resid_block.4} parent=5 // pred_fallthru
      _
    %p140 = scmp.le.s32.totalorder 1, %s10
    %p141 = scmp.lt.s32.totalorder %s10, 3
    %p142 = pnand %p140, %p141
    %p143 = pneg %p142
    // Predicated region
    $region25: #{resid_block.4} parent=5 // pred_check
      _
    $region26: #{resid_block.4} parent=5 // pred_check_branch
      %145 = sbr.rel (%p142) target = $region28
    $region27: #{resid_block.4} parent=5 // pred_region
      %s146 = ssub.s32 %s10, 1
      %s147 = smul.u32 32, %s15
      %p148 = scmp.lt.s32.totalorder %s147, 63
      %s149 = scalar_select %p148, %s147, 63
      %s150 = smul.addr %s149, 4
      %s151 = scalar_lea.vmem %s0, %s150
      %p152 = pneg %p36
      %p153 = pneg %p33
      %p154 = pneg %p57
      %p155 = pneg %p54
      %p156 = pneg %p83
      %p157 = pneg %p80
      %s158 = smul.u32 32, %s15
      %p159 = scmp.lt.s32.totalorder %s158, 63
      %s160 = scalar_select %p159, %s158, 63
      %s161 = smul.addr %s160, 4
      %s162 = scalar_lea.vmem %s2, %s161
      %p163 = pneg %p109
      %p164 = pneg %p106
      %p165 = scmp.lt.s32.totalorder %s15, 1
      %s166 = scalar_select %p165, %s15, 1
      %s167 = smul.addr %s166, 2
      %s168 = scalar_lea.vmem %s3, %s167
      %s169 = smul.u32 32, %s15
      %p170 = scmp.lt.s32.totalorder %s169, 63
      %s171 = scalar_select %p170, %s169, 63
      %s172 = smul.addr %s171, 4
      %s173 = scalar_lea.vmem %s0, %s172
      %s174 = smul.u32 32, %s15
      %s175 = smul.u32 32, %s15
      %p176 = scmp.lt.s32.totalorder %s175, 63
      %s177 = scalar_select %p176, %s175, 63
      %s178 = smul.addr %s177, 4
      %s179 = scalar_lea.vmem %s2, %s178
      %s180 = smul.u32 32, %s15
      %p181 = scmp.lt.s32.totalorder %s15, 1
      %s182 = scalar_select %p181, %s15, 1
      %s183 = smul.addr %s182, 2
      %s184 = scalar_lea.vmem %s3, %s183
      %v186 = vld [vmem:[%s173] sm:$0xf]
      %v187 = vld [vmem:[%s173 + $0x4] sm:$0xf]
      %v188 = vld [vmem:[%s173 + $0x8] sm:$0xf]
      %v189 = vld [vmem:[%s173 + $0xc] sm:$0xf]
      %v190 = vld [vmem:[%s173 + $0x10] sm:$0xf]
      %v191 = vld [vmem:[%s173 + $0x14] sm:$0xf]
      %v192 = vld [vmem:[%s173 + $0x18] sm:$0xf]
      %v193 = vld [vmem:[%s173 + $0x1c] sm:$0xf]
      %v194 = vld [vmem:[%s173 + $0x20] sm:$0xf]
      %v195 = vld [vmem:[%s173 + $0x24] sm:$0xf]
      %v196 = vld [vmem:[%s173 + $0x28] sm:$0xf]
      %v197 = vld [vmem:[%s173 + $0x2c] sm:$0xf]
      %v198 = vld [vmem:[%s173 + $0x30] sm:$0xf]
      %v199 = vld [vmem:[%s173 + $0x34] sm:$0xf]
      %v200 = vld [vmem:[%s173 + $0x38] sm:$0xf]
      %v201 = vld [vmem:[%s173 + $0x3c] sm:$0xf]
      %v202 = vld [vmem:[%s173 + $0x40] sm:$0xf]
      %v203 = vld [vmem:[%s173 + $0x44] sm:$0xf]
      %v204 = vld [vmem:[%s173 + $0x48] sm:$0xf]
      %v205 = vld [vmem:[%s173 + $0x4c] sm:$0xf]
      %v206 = vld [vmem:[%s173 + $0x50] sm:$0xf]
      %v207 = vld [vmem:[%s173 + $0x54] sm:$0xf]
      %v208 = vld [vmem:[%s173 + $0x58] sm:$0xf]
      %v209 = vld [vmem:[%s173 + $0x5c] sm:$0xf]
      %v210 = vld [vmem:[%s173 + $0x60] sm:$0xf]
      %v211 = vld [vmem:[%s173 + $0x64] sm:$0xf]
      %v212 = vld [vmem:[%s173 + $0x68] sm:$0xf]
      %v213 = vld [vmem:[%s173 + $0x6c] sm:$0xf]
      %v214 = vld [vmem:[%s173 + $0x70] sm:$0xf]
      %v215 = vld [vmem:[%s173 + $0x74] sm:$0xf]
      %v216 = vld [vmem:[%s173 + $0x78] sm:$0xf]
      %v217 = vld [vmem:[%s173 + $0x7c] sm:$0xf]
      %v218 = vld [vmem:[%s1] sm:$0x3]
      %v251 = vunpack.c.l.b16 %v186
      %v252 = vunpack.c.l.b16 %v187
      %v253 = vunpack.c.l.b16 %v188
      %v254 = vunpack.c.l.b16 %v189
      %v255 = vunpack.c.l.b16 %v190
      %v256 = vunpack.c.l.b16 %v191
      %v257 = vunpack.c.l.b16 %v192
      %v258 = vunpack.c.l.b16 %v193
      %v259 = vunpack.c.l.b16 %v194
      %v260 = vunpack.c.l.b16 %v195
      %v261 = vunpack.c.l.b16 %v196
      %v262 = vunpack.c.l.b16 %v197
      %v263 = vunpack.c.l.b16 %v198
      %v264 = vunpack.c.l.b16 %v199
      %v265 = vunpack.c.l.b16 %v200
      %v266 = vunpack.c.l.b16 %v201
      %v267 = vunpack.c.l.b16 %v202
      %v268 = vunpack.c.l.b16 %v203
      %v269 = vunpack.c.l.b16 %v204
      %v270 = vunpack.c.l.b16 %v205
      %v271 = vunpack.c.l.b16 %v206
      %v272 = vunpack.c.l.b16 %v207
      %v273 = vunpack.c.l.b16 %v208
      %v274 = vunpack.c.l.b16 %v209
      %v275 = vunpack.c.l.b16 %v210
      %v276 = vunpack.c.l.b16 %v211
      %v277 = vunpack.c.l.b16 %v212
      %v278 = vunpack.c.l.b16 %v213
      %v279 = vunpack.c.l.b16 %v214
      %v280 = vunpack.c.l.b16 %v215
      %v281 = vunpack.c.l.b16 %v216
      %v282 = vunpack.c.l.b16 %v217
      %v283 = vpack.c.b16 %v252, %v251
      %v284 = vpack.c.b16 %v254, %v253
      %v285 = vpack.c.b16 %v256, %v255
      %v286 = vpack.c.b16 %v258, %v257
      %v287 = vpack.c.b16 %v260, %v259
      %v288 = vpack.c.b16 %v262, %v261
      %v289 = vpack.c.b16 %v264, %v263
      %v290 = vpack.c.b16 %v266, %v265
      %v291 = vpack.c.b16 %v268, %v267
      %v292 = vpack.c.b16 %v270, %v269
      %v293 = vpack.c.b16 %v272, %v271
      %v294 = vpack.c.b16 %v274, %v273
      %v295 = vpack.c.b16 %v276, %v275
      %v296 = vpack.c.b16 %v278, %v277
      %v297 = vpack.c.b16 %v280, %v279
      %v298 = vpack.c.b16 %v282, %v281
      %vm299 = vcmask 31744
      %v301 = vsel %vm299, %v283, 0
      %v304 = vsel %vm299, %v284, 0
      %v307 = vsel %vm299, %v285, 0
      %v310 = vsel %vm299, %v286, 0
      %v313 = vsel %vm299, %v287, 0
      %v316 = vsel %vm299, %v288, 0
      %v319 = vsel %vm299, %v289, 0
      %v322 = vsel %vm299, %v290, 0
      %v325 = vsel %vm299, %v291, 0
      %v328 = vsel %vm299, %v292, 0
      %v331 = vsel %vm299, %v293, 0
      %v334 = vsel %vm299, %v294, 0
      %v337 = vsel %vm299, %v295, 0
      %v340 = vsel %vm299, %v296, 0
      %v343 = vsel %vm299, %v297, 0
      %v346 = vsel %vm299, %v298, 0
      %vm348 = vcmask 1041408
      %v350 = vsel %vm348, %v218, 0
      %352 = vmatpush.bf16.msra.mxu0 0
      %353 = vmatpush.bf16.msra.mxu0 0
      %354 = vmatpush.bf16.msra.mxu0 0
      %355 = vmatpush.bf16.msra.mxu0 0
      %356 = vmatpush.bf16.msra.mxu0 0
      %357 = vmatpush.bf16.msra.mxu0 0
      %358 = vmatpush.bf16.msra.mxu0 0
      %359 = vmatpush.bf16.msra.mxu0 %v350
      %360 = vmatmul.bf16.gmra.mxu0 %v301
      %v361 = vpop.f32.mrf.mxu0
      %v362 = vadd.f32 0.0, %v361
      %v363 = vpop.f32.mrf.mxu0
      %v364 = vadd.f32 0.0, %v363
      %365 = vmatmul.bf16.gmra.mxu0 %v304
      %v366 = vpop.f32.mrf.mxu0
      %v367 = vadd.f32 0.0, %v366
      %v368 = vpop.f32.mrf.mxu0
      %v369 = vadd.f32 0.0, %v368
      %370 = vmatmul.bf16.gmra.mxu0 %v307
      %v371 = vpop.f32.mrf.mxu0
      %v372 = vadd.f32 0.0, %v371
      %v373 = vpop.f32.mrf.mxu0
      %v374 = vadd.f32 0.0, %v373
      %375 = vmatmul.bf16.gmra.mxu0 %v310
      %v376 = vpop.f32.mrf.mxu0
      %v377 = vadd.f32 0.0, %v376
      %v378 = vpop.f32.mrf.mxu0
      %v379 = vadd.f32 0.0, %v378
      %380 = vmatmul.bf16.gmra.mxu0 %v313
      %v381 = vpop.f32.mrf.mxu0
      %v382 = vadd.f32 0.0, %v381
      %v383 = vpop.f32.mrf.mxu0
      %v384 = vadd.f32 0.0, %v383
      %385 = vmatmul.bf16.gmra.mxu0 %v316
      %v386 = vpop.f32.mrf.mxu0
      %v387 = vadd.f32 0.0, %v386
      %v388 = vpop.f32.mrf.mxu0
      %v389 = vadd.f32 0.0, %v388
      %390 = vmatmul.bf16.gmra.mxu0 %v319
      %v391 = vpop.f32.mrf.mxu0
      %v392 = vadd.f32 0.0, %v391
      %v393 = vpop.f32.mrf.mxu0
      %v394 = vadd.f32 0.0, %v393
      %395 = vmatmul.bf16.gmra.mxu0 %v322
      %v396 = vpop.f32.mrf.mxu0
      %v397 = vadd.f32 0.0, %v396
      %v398 = vpop.f32.mrf.mxu0
      %v399 = vadd.f32 0.0, %v398
      %400 = vmatmul.bf16.gmra.mxu0 %v325
      %v401 = vpop.f32.mrf.mxu0
      %v402 = vadd.f32 0.0, %v401
      %v403 = vpop.f32.mrf.mxu0
      %v404 = vadd.f32 0.0, %v403
      %405 = vmatmul.bf16.gmra.mxu0 %v328
      %v406 = vpop.f32.mrf.mxu0
      %v407 = vadd.f32 0.0, %v406
      %v408 = vpop.f32.mrf.mxu0
      %v409 = vadd.f32 0.0, %v408
      %410 = vmatmul.bf16.gmra.mxu0 %v331
      %v411 = vpop.f32.mrf.mxu0
      %v412 = vadd.f32 0.0, %v411
      %v413 = vpop.f32.mrf.mxu0
      %v414 = vadd.f32 0.0, %v413
      %415 = vmatmul.bf16.gmra.mxu0 %v334
      %v416 = vpop.f32.mrf.mxu0
      %v417 = vadd.f32 0.0, %v416
      %v418 = vpop.f32.mrf.mxu0
      %v419 = vadd.f32 0.0, %v418
      %420 = vmatmul.bf16.gmra.mxu0 %v337
      %v421 = vpop.f32.mrf.mxu0
      %v422 = vadd.f32 0.0, %v421
      %v423 = vpop.f32.mrf.mxu0
      %v424 = vadd.f32 0.0, %v423
      %425 = vmatmul.bf16.gmra.mxu0 %v340
      %v426 = vpop.f32.mrf.mxu0
      %v427 = vadd.f32 0.0, %v426
      %v428 = vpop.f32.mrf.mxu0
      %v429 = vadd.f32 0.0, %v428
      %430 = vmatmul.bf16.gmra.mxu0 %v343
      %v431 = vpop.f32.mrf.mxu0
      %v432 = vadd.f32 0.0, %v431
      %v433 = vpop.f32.mrf.mxu0
      %v434 = vadd.f32 0.0, %v433
      %435 = vmatmul.bf16.gmra.mxu0 %v346
      %v436 = vpop.f32.mrf.mxu0
      %v437 = vadd.f32 0.0, %v436
      %v438 = vpop.f32.mrf.mxu0
      %v439 = vadd.f32 0.0, %v438
      %440 = vdwg.mxu0
      %v441 = vpack.c.bf16 %v362, %v362
      %v442 = vpack.c.bf16 %v364, %v364
      %v443 = vpack.c.bf16 %v367, %v367
      %v444 = vpack.c.bf16 %v369, %v369
      %v445 = vpack.c.bf16 %v372, %v372
      %v446 = vpack.c.bf16 %v374, %v374
      %v447 = vpack.c.bf16 %v377, %v377
      %v448 = vpack.c.bf16 %v379, %v379
      %v449 = vpack.c.bf16 %v382, %v382
      %v450 = vpack.c.bf16 %v384, %v384
      %v451 = vpack.c.bf16 %v387, %v387
      %v452 = vpack.c.bf16 %v389, %v389
      %v453 = vpack.c.bf16 %v392, %v392
      %v454 = vpack.c.bf16 %v394, %v394
      %v455 = vpack.c.bf16 %v397, %v397
      %v456 = vpack.c.bf16 %v399, %v399
      %v457 = vpack.c.bf16 %v402, %v402
      %v458 = vpack.c.bf16 %v404, %v404
      %v459 = vpack.c.bf16 %v407, %v407
      %v460 = vpack.c.bf16 %v409, %v409
      %v461 = vpack.c.bf16 %v412, %v412
      %v462 = vpack.c.bf16 %v414, %v414
      %v463 = vpack.c.bf16 %v417, %v417
      %v464 = vpack.c.bf16 %v419, %v419
      %v465 = vpack.c.bf16 %v422, %v422
      %v466 = vpack.c.bf16 %v424, %v424
      %v467 = vpack.c.bf16 %v427, %v427
      %v468 = vpack.c.bf16 %v429, %v429
      %v469 = vpack.c.bf16 %v432, %v432
      %v470 = vpack.c.bf16 %v434, %v434
      %v471 = vpack.c.bf16 %v437, %v437
      %v472 = vpack.c.bf16 %v439, %v439
      %vm473 = vcmask 60416
      %474 = vst.msk [vmem:[%s179] sm:$0xf] %vm473, %v441
      %475 = vst.msk [vmem:[%s179 + $0x4] sm:$0xf] %vm473, %v442
      %476 = vst.msk [vmem:[%s179 + $0x8] sm:$0xf] %vm473, %v443
      %477 = vst.msk [vmem:[%s179 + $0xc] sm:$0xf] %vm473, %v444
      %478 = vst.msk [vmem:[%s179 + $0x10] sm:$0xf] %vm473, %v445
      %479 = vst.msk [vmem:[%s179 + $0x14] sm:$0xf] %vm473, %v446
      %480 = vst.msk [vmem:[%s179 + $0x18] sm:$0xf] %vm473, %v447
      %481 = vst.msk [vmem:[%s179 + $0x1c] sm:$0xf] %vm473, %v448
      %482 = vst.msk [vmem:[%s179 + $0x20] sm:$0xf] %vm473, %v449
      %483 = vst.msk [vmem:[%s179 + $0x24] sm:$0xf] %vm473, %v450
      %484 = vst.msk [vmem:[%s179 + $0x28] sm:$0xf] %vm473, %v451
      %485 = vst.msk [vmem:[%s179 + $0x2c] sm:$0xf] %vm473, %v452
      %486 = vst.msk [vmem:[%s179 + $0x30] sm:$0xf] %vm473, %v453
      %487 = vst.msk [vmem:[%s179 + $0x34] sm:$0xf] %vm473, %v454
      %488 = vst.msk [vmem:[%s179 + $0x38] sm:$0xf] %vm473, %v455
      %489 = vst.msk [vmem:[%s179 + $0x3c] sm:$0xf] %vm473, %v456
      %490 = vst.msk [vmem:[%s179 + $0x40] sm:$0xf] %vm473, %v457
      %491 = vst.msk [vmem:[%s179 + $0x44] sm:$0xf] %vm473, %v458
      %492 = vst.msk [vmem:[%s179 + $0x48] sm:$0xf] %vm473, %v459
      %493 = vst.msk [vmem:[%s179 + $0x4c] sm:$0xf] %vm473, %v460
      %494 = vst.msk [vmem:[%s179 + $0x50] sm:$0xf] %vm473, %v461
      %495 = vst.msk [vmem:[%s179 + $0x54] sm:$0xf] %vm473, %v462
      %496 = vst.msk [vmem:[%s179 + $0x58] sm:$0xf] %vm473, %v463
      %497 = vst.msk [vmem:[%s179 + $0x5c] sm:$0xf] %vm473, %v464
      %498 = vst.msk [vmem:[%s179 + $0x60] sm:$0xf] %vm473, %v465
      %499 = vst.msk [vmem:[%s179 + $0x64] sm:$0xf] %vm473, %v466
      %500 = vst.msk [vmem:[%s179 + $0x68] sm:$0xf] %vm473, %v467
      %501 = vst.msk [vmem:[%s179 + $0x6c] sm:$0xf] %vm473, %v468
      %502 = vst.msk [vmem:[%s179 + $0x70] sm:$0xf] %vm473, %v469
      %503 = vst.msk [vmem:[%s179 + $0x74] sm:$0xf] %vm473, %v470
      %504 = vst.msk [vmem:[%s179 + $0x78] sm:$0xf] %vm473, %v471
      %505 = vst.msk [vmem:[%s179 + $0x7c] sm:$0xf] %vm473, %v472
      %vm506 = vcmask 64512
      %v507 = vsel %vm506, %v362, 0.0
      %v508 = vsel %vm506, %v364, 0.0
      %v509 = vadd.f32 %v507, %v508
      %v510 = vsel %vm506, %v367, 0.0
      %v511 = vadd.f32 %v509, %v510
      %v512 = vsel %vm506, %v369, 0.0
      %v513 = vadd.f32 %v511, %v512
      %v514 = vsel %vm506, %v372, 0.0
      %v515 = vadd.f32 %v513, %v514
      %v516 = vsel %vm506, %v374, 0.0
      %v517 = vadd.f32 %v515, %v516
      %v518 = vsel %vm506, %v377, 0.0
      %v519 = vadd.f32 %v517, %v518
      %v520 = vsel %vm506, %v379, 0.0
      %v521 = vadd.f32 %v519, %v520
      %v522 = vsel %vm506, %v382, 0.0
      %v523 = vadd.f32 %v521, %v522
      %v524 = vsel %vm506, %v384, 0.0
      %v525 = vadd.f32 %v523, %v524
      %v526 = vsel %vm506, %v387, 0.0
      %v527 = vadd.f32 %v525, %v526
      %v528 = vsel %vm506, %v389, 0.0
      %v529 = vadd.f32 %v527, %v528
      %v530 = vsel %vm506, %v392, 0.0
      %v531 = vadd.f32 %v529, %v530
      %v532 = vsel %vm506, %v394, 0.0
      %v533 = vadd.f32 %v531, %v532
      %v534 = vsel %vm506, %v397, 0.0
      %v535 = vadd.f32 %v533, %v534
      %v536 = vsel %vm506, %v399, 0.0
      %v537 = vadd.f32 %v535, %v536
      %v538 = vsel %vm506, %v402, 0.0
      %v539 = vadd.f32 %v537, %v538
      %v540 = vsel %vm506, %v404, 0.0
      %v541 = vadd.f32 %v539, %v540
      %v542 = vsel %vm506, %v407, 0.0
      %v543 = vadd.f32 %v541, %v542
      %v544 = vsel %vm506, %v409, 0.0
      %v545 = vadd.f32 %v543, %v544
      %v546 = vsel %vm506, %v412, 0.0
      %v547 = vadd.f32 %v545, %v546
      %v548 = vsel %vm506, %v414, 0.0
      %v549 = vadd.f32 %v547, %v548
      %v550 = vsel %vm506, %v417, 0.0
      %v551 = vadd.f32 %v549, %v550
      %v552 = vsel %vm506, %v419, 0.0
      %v553 = vadd.f32 %v551, %v552
      %v554 = vsel %vm506, %v422, 0.0
      %v555 = vadd.f32 %v553, %v554
      %v556 = vsel %vm506, %v424, 0.0
      %v557 = vadd.f32 %v555, %v556
      %v558 = vsel %vm506, %v427, 0.0
      %v559 = vadd.f32 %v557, %v558
      %v560 = vsel %vm506, %v429, 0.0
      %v561 = vadd.f32 %v559, %v560
      %v562 = vsel %vm506, %v432, 0.0
      %v563 = vadd.f32 %v561, %v562
      %v564 = vsel %vm506, %v434, 0.0
      %v565 = vadd.f32 %v563, %v564
      %v566 = vsel %vm506, %v437, 0.0
      %v567 = vadd.f32 %v565, %v566
      %v568 = vsel %vm506, %v439, 0.0
      %v569 = vadd.f32 %v567, %v568
      %v570 = vrot.slane %v569, 4
      %v571 = vadd.f32 %v569, %v570
      %v572 = vrot.slane %v571, 2
      %v573 = vadd.f32 %v571, %v572
      %v574 = vrot.slane %v573, 1
      %v575 = vadd.f32 %v573, %v574
      %v576 = vmul.f32 %v362, %v362
      %v577 = vmul.f32 %v364, %v364
      %v578 = vmul.f32 %v367, %v367
      %v579 = vmul.f32 %v369, %v369
      %v580 = vmul.f32 %v372, %v372
      %v581 = vmul.f32 %v374, %v374
      %v582 = vmul.f32 %v377, %v377
      %v583 = vmul.f32 %v379, %v379
      %v584 = vmul.f32 %v382, %v382
      %v585 = vmul.f32 %v384, %v384
      %v586 = vmul.f32 %v387, %v387
      %v587 = vmul.f32 %v389, %v389
      %v588 = vmul.f32 %v392, %v392
      %v589 = vmul.f32 %v394, %v394
      %v590 = vmul.f32 %v397, %v397
      %v591 = vmul.f32 %v399, %v399
      %v592 = vmul.f32 %v402, %v402
      %v593 = vmul.f32 %v404, %v404
      %v594 = vmul.f32 %v407, %v407
      %v595 = vmul.f32 %v409, %v409
      %v596 = vmul.f32 %v412, %v412
      %v597 = vmul.f32 %v414, %v414
      %v598 = vmul.f32 %v417, %v417
      %v599 = vmul.f32 %v419, %v419
      %v600 = vmul.f32 %v422, %v422
      %v601 = vmul.f32 %v424, %v424
      %v602 = vmul.f32 %v427, %v427
      %v603 = vmul.f32 %v429, %v429
      %v604 = vmul.f32 %v432, %v432
      %v605 = vmul.f32 %v434, %v434
      %v606 = vmul.f32 %v437, %v437
      %v607 = vmul.f32 %v439, %v439
      %v608 = vsel %vm506, %v576, 0.0
      %v609 = vsel %vm506, %v577, 0.0
      %v610 = vadd.f32 %v608, %v609
      %v611 = vsel %vm506, %v578, 0.0
      %v612 = vadd.f32 %v610, %v611
      %v613 = vsel %vm506, %v579, 0.0
      %v614 = vadd.f32 %v612, %v613
      %v615 = vsel %vm506, %v580, 0.0
      %v616 = vadd.f32 %v614, %v615
      %v617 = vsel %vm506, %v581, 0.0
      %v618 = vadd.f32 %v616, %v617
      %v619 = vsel %vm506, %v582, 0.0
      %v620 = vadd.f32 %v618, %v619
      %v621 = vsel %vm506, %v583, 0.0
      %v622 = vadd.f32 %v620, %v621
      %v623 = vsel %vm506, %v584, 0.0
      %v624 = vadd.f32 %v622, %v623
      %v625 = vsel %vm506, %v585, 0.0
      %v626 = vadd.f32 %v624, %v625
      %v627 = vsel %vm506, %v586, 0.0
      %v628 = vadd.f32 %v626, %v627
      %v629 = vsel %vm506, %v587, 0.0
      %v630 = vadd.f32 %v628, %v629
      %v631 = vsel %vm506, %v588, 0.0
      %v632 = vadd.f32 %v630, %v631
      %v633 = vsel %vm506, %v589, 0.0
      %v634 = vadd.f32 %v632, %v633
      %v635 = vsel %vm506, %v590, 0.0
      %v636 = vadd.f32 %v634, %v635
      %v637 = vsel %vm506, %v591, 0.0
      %v638 = vadd.f32 %v636, %v637
      %v639 = vsel %vm506, %v592, 0.0
      %v640 = vadd.f32 %v638, %v639
      %v641 = vsel %vm506, %v593, 0.0
      %v642 = vadd.f32 %v640, %v641
      %v643 = vsel %vm506, %v594, 0.0
      %v644 = vadd.f32 %v642, %v643
      %v645 = vsel %vm506, %v595, 0.0
      %v646 = vadd.f32 %v644, %v645
      %v647 = vsel %vm506, %v596, 0.0
      %v648 = vadd.f32 %v646, %v647
      %v649 = vsel %vm506, %v597, 0.0
      %v650 = vadd.f32 %v648, %v649
      %v651 = vsel %vm506, %v598, 0.0
      %v652 = vadd.f32 %v650, %v651
      %v653 = vsel %vm506, %v599, 0.0
      %v654 = vadd.f32 %v652, %v653
      %v655 = vsel %vm506, %v600, 0.0
      %v656 = vadd.f32 %v654, %v655
      %v657 = vsel %vm506, %v601, 0.0
      %v658 = vadd.f32 %v656, %v657
      %v659 = vsel %vm506, %v602, 0.0
      %v660 = vadd.f32 %v658, %v659
      %v661 = vsel %vm506, %v603, 0.0
      %v662 = vadd.f32 %v660, %v661
      %v663 = vsel %vm506, %v604, 0.0
      %v664 = vadd.f32 %v662, %v663
      %v665 = vsel %vm506, %v605, 0.0
      %v666 = vadd.f32 %v664, %v665
      %v667 = vsel %vm506, %v606, 0.0
      %v668 = vadd.f32 %v666, %v667
      %v669 = vsel %vm506, %v607, 0.0
      %v670 = vadd.f32 %v668, %v669
      %v671 = vrot.slane %v670, 4
      %v672 = vadd.f32 %v670, %v671
      %v673 = vrot.slane %v672, 2
      %v674 = vadd.f32 %v672, %v673
      %v675 = vrot.slane %v674, 1
      %v676 = vadd.f32 %v674, %v675
      %vm677 = vcmask 1040384
      %v678 = vsel %vm677, %v575, %v676
      %vm679 = vcmask 58368
      %680 = vst.msk [vmem:[%s184] sm:$0x3] %vm679, %v678
      %s681 = smul.u32 32, %s15
      %p682 = scmp.lt.s32.totalorder %s681, 63
      %s683 = scalar_select %p682, %s681, 63
      %s684 = smul.addr %s683, 4
      %s685 = scalar_lea.vmem %s2, %s684
      %p686 = scmp.lt.s32.totalorder %s15, 1
      %s687 = scalar_select %p686, %s15, 1
      %s688 = smul.addr %s687, 2
      %s689 = scalar_lea.vmem %s3, %s688
      // Predicated region
      $region29: #{resid_block.4} parent=27 // pred_check
        %p690 = pneg %p80
      $region30: #{resid_block.4} parent=27 // pred_check_branch
        %692 = sbr.rel (%p690) target = $region32
      $region31: #{resid_block.4} parent=27 // pred_region
        %s693 = smul.u32 32, %s15
      $region32: #{resid_block.4} parent=27 // pred_fallthru
        _
      // Predicated region
      $region33: #{resid_block.4} parent=27 // pred_check
        %p694 = pneg %p106
      $region34: #{resid_block.4} parent=27 // pred_check_branch
        %696 = sbr.rel (%p694) target = $region36
      $region35: #{resid_block.4} parent=27 // pred_region
        _
      $region36: #{resid_block.4} parent=27 // pred_fallthru
        _
    $region28: #{resid_block.4} parent=5 // pred_fallthru
      _
    %p697 = scmp.le.s32.totalorder 2, %s10
    // Predicated region
    $region37: #{resid_block.4} parent=5 // pred_check
      %p698 = pneg %p697
    $region38: #{resid_block.4} parent=5 // pred_check_branch
      %700 = sbr.rel (%p698) target = $region40
    $region39: #{resid_block.4} parent=5 // pred_region
      %s701 = ssub.s32 %s10, 2
      // Predicated region
      $region41: #{resid_block.4} parent=39 // pred_check
        %p702 = pneg %p86
      $region42: #{resid_block.4} parent=39 // pred_check_branch
        %704 = sbr.rel (%p702) target = $region44
      $region43: #{resid_block.4} parent=39 // pred_region
        %s705 = smul.u32 32, %s16
        %p706 = scmp.lt.s32.totalorder %s705, 63
        %s707 = scalar_select %p706, %s705, 63
        %s708 = smul.addr %s707, 4
        %s709 = scalar_lea.vmem %s2, %s708
      $region44: #{resid_block.4} parent=39 // pred_fallthru
        _
      // Predicated region
      $region45: #{resid_block.4} parent=39 // pred_check
        %p710 = pneg %p112
      $region46: #{resid_block.4} parent=39 // pred_check_branch
        %712 = sbr.rel (%p710) target = $region48
      $region47: #{resid_block.4} parent=39 // pred_region
        %p713 = scmp.lt.s32.totalorder %s16, 1
        %s714 = scalar_select %p713, %s16, 1
        %s715 = smul.addr %s714, 2
        %s716 = scalar_lea.vmem %s3, %s715
      $region48: #{resid_block.4} parent=39 // pred_fallthru
        _
    $region40: #{resid_block.4} parent=5 // pred_fallthru
      _
  $region6: #{resid_block.4} parent=0 // loop_footer
    %s14 = sadd.s32 1, %s10
  $region7: #{resid_block.4} parent=0 // loop_footer_branch
    %9 = sbr.rel target = $region3
  $region8: #{resid_block.4} parent=0 // loop_exit
    _

// kernel: resid_block.7
$region0: #{resid_block.7}
  #allocation0 [shape = 'u32[]', space=smem, size = 0x4, offset = 0x4, fixed_abs, tag = 'smem constant byte address 0x4 - core index']
  #allocation1 [shape = 'u32[72,128]{1,0:T(1,128)}', space=vmem, size = 0x9000, scoped, tag = 'internal scratch']
  %s0 = inlined_call_operand.vmem [shape: bf16[128,16], index: 0, kind: input, shape index: {}]
  %s1 = inlined_call_operand.vmem [shape: bf16[128,16], index: 1, kind: input, shape index: {}]
  %s2 = inlined_call_operand.vmem [shape: f32[1,16], index: 2, kind: input, shape index: {}]
  %s3 = inlined_call_operand.vmem [shape: f32[1,16], index: 3, kind: input, shape index: {}]
  %s4 = inlined_call_operand.vmem [shape: f32[1,16], index: 4, kind: input, shape index: {}]
  %s5 = inlined_call_operand.vmem [shape: f32[1,16], index: 5, kind: input, shape index: {}]
  %s6 = inlined_call_operand.hbm [shape: f32[128,16], index: 6, kind: output, shape index: {}]
  %s7 = sld [smem:[#allocation0]]
  $region57: #{resid_block.7} parent=0
    _
  %s9 = ssub.s32 1, %s7
  %s10 = scalar_select 0, %s9, %s7
  $region1: #{resid_block.7} parent=0
    #allocation2 [shape = 'u8[65536]{0}', space=vmem, size = 0x10000, scoped, tag = 'output window, operand 0']
    #allocation3 [shape = 's32[2]{0}', space=sflag, size = 0x8, scoped, tag = 'scoped memory for resid_block.7']
    %11 = vsyncpa [#allocation3], 0
    %s12 = scalar_lea.sflag [#allocation3], 1
    %13 = vsyncpa %s12, 0
    loop: start=0, step=1, limit=4
    $region2: #{resid_block.7} parent=1 // loop_pre_header
      _
    $region3: #{resid_block.7} parent=1 // loop_header
      %s15 = sphi 0, %s19
      %p16 = scmp.ge.s32.totalorder %s15, 4
      %s25 = sphi 0, %s27
      %s28 = sphi 0, %s25
      %s29 = sphi 0, %s28
      %s45 = sphi 0, %s29
      %s51 = sphi 0, %s53
      %s54 = sphi 0, %s51
      %s55 = sphi 0, %s54
      %s71 = sphi 0, %s55
      %s75 = sphi 0, %s75
      %s77 = sphi 0, %s75
      %s78 = sphi 0, %s77
      %s92 = sphi 0, %s78
      %s96 = sphi 0, %s96
      %s98 = sphi 0, %s96
      %s99 = sphi 0, %s98
      %s113 = sphi 0, %s99
      %s117 = sphi 0, %s117
      %s119 = sphi 0, %s117
      %s120 = sphi 0, %s119
      %s134 = sphi 0, %s120
      %s138 = sphi 0, %s138
      %s140 = sphi 0, %s138
      %s141 = sphi 0, %s140
      %s155 = sphi 0, %s141
      %s161 = sphi 0, %s163
      %s164 = sphi 0, %s161
      %s165 = sphi 0, %s164
      %s181 = sphi 0, %s165
    $region4: #{resid_block.7} parent=1 // loop_header_branch
      %18 = sbr.rel (%p16) target = $region8
    $region5: #{resid_block.7} parent=1 // loop_body
      %s20 = ssub.s32 %s15, 1
      %s21 = ssub.s32 %s15, 2
      %s22 = sadd.s32 %s15, 1
      %s23 = ssub.s32 %s15, %s22
      %p24 = scmp.eq.s32.totalorder %s23, 0
      %s26 = sadd.s32 %s25, 1
      %s27 = scalar_select %p24, %s25, %s26
      %p30 = pneg %p24
      %p31 = scmp.eq.s32.totalorder %s15, 1
      %p32 = por %p30, %p31
      %p33 = scmp.ne.s32.totalorder %s25, %s28
      %p34 = scmp.eq.s32.totalorder %s15, 0
      %p35 = por %p33, %p34
      %p36 = scmp.ne.s32.totalorder %s25, %s28
      %p37 = scmp.eq.s32.totalorder %s20, 1
      %p38 = por %p36, %p37
      %p39 = scmp.ne.s32.totalorder %s28, %s29
      %p40 = scmp.eq.s32.totalorder %s20, 0
      %p41 = por %p39, %p40
      %p42 = scmp.ne.s32.totalorder %s28, %s29
      %p43 = scmp.eq.s32.totalorder %s21, 1
      %p44 = por %p42, %p43
      %p46 = scmp.ne.s32.totalorder %s29, %s45
      %p47 = scmp.eq.s32.totalorder %s21, 0
      %p48 = por %p46, %p47
      %s49 = ssub.s32 %s15, %s22
      %p50 = scmp.eq.s32.totalorder %s49, 0
      %s52 = sadd.s32 %s51, 1
      %s53 = scalar_select %p50, %s51, %s52
      %p56 = pneg %p50
      %p57 = scmp.eq.s32.totalorder %s15, 1
      %p58 = por %p56, %p57
      %p59 = scmp.ne.s32.totalorder %s51, %s54
      %p60 = scmp.eq.s32.totalorder %s15, 0
      %p61 = por %p59, %p60
      %p62 = scmp.ne.s32.totalorder %s51, %s54
      %p63 = scmp.eq.s32.totalorder %s20, 1
      %p64 = por %p62, %p63
      %p65 = scmp.ne.s32.totalorder %s54, %s55
      %p66 = scmp.eq.s32.totalorder %s20, 0
      %p67 = por %p65, %p66
      %p68 = scmp.ne.s32.totalorder %s54, %s55
      %p69 = scmp.eq.s32.totalorder %s21, 1
      %p70 = por %p68, %p69
      %p72 = scmp.ne.s32.totalorder %s55, %s71
      %p73 = scmp.eq.s32.totalorder %s21, 0
      %p74 = por %p72, %p73
      %s76 = sadd.s32 %s75, 1
      %p79 = scmp.eq.s32.totalorder %s15, 1
      %p80 = scmp.ne.s32.totalorder %s75, %s77
      %p81 = scmp.eq.s32.totalorder %s15, 0
      %p82 = por %p80, %p81
      %p83 = scmp.ne.s32.totalorder %s75, %s77
      %p84 = scmp.eq.s32.totalorder %s20, 1
      %p85 = por %p83, %p84
      %p86 = scmp.ne.s32.totalorder %s77, %s78
      %p87 = scmp.eq.s32.totalorder %s20, 0
      %p88 = por %p86, %p87
      %p89 = scmp.ne.s32.totalorder %s77, %s78
      %p90 = scmp.eq.s32.totalorder %s21, 1
      %p91 = por %p89, %p90
      %p93 = scmp.ne.s32.totalorder %s78, %s92
      %p94 = scmp.eq.s32.totalorder %s21, 0
      %p95 = por %p93, %p94
      %s97 = sadd.s32 %s96, 1
      %p100 = scmp.eq.s32.totalorder %s15, 1
      %p101 = scmp.ne.s32.totalorder %s96, %s98
      %p102 = scmp.eq.s32.totalorder %s15, 0
      %p103 = por %p101, %p102
      %p104 = scmp.ne.s32.totalorder %s96, %s98
      %p105 = scmp.eq.s32.totalorder %s20, 1
      %p106 = por %p104, %p105
      %p107 = scmp.ne.s32.totalorder %s98, %s99
      %p108 = scmp.eq.s32.totalorder %s20, 0
      %p109 = por %p107, %p108
      %p110 = scmp.ne.s32.totalorder %s98, %s99
      %p111 = scmp.eq.s32.totalorder %s21, 1
      %p112 = por %p110, %p111
      %p114 = scmp.ne.s32.totalorder %s99, %s113
      %p115 = scmp.eq.s32.totalorder %s21, 0
      %p116 = por %p114, %p115
      %s118 = sadd.s32 %s117, 1
      %p121 = scmp.eq.s32.totalorder %s15, 1
      %p122 = scmp.ne.s32.totalorder %s117, %s119
      %p123 = scmp.eq.s32.totalorder %s15, 0
      %p124 = por %p122, %p123
      %p125 = scmp.ne.s32.totalorder %s117, %s119
      %p126 = scmp.eq.s32.totalorder %s20, 1
      %p127 = por %p125, %p126
      %p128 = scmp.ne.s32.totalorder %s119, %s120
      %p129 = scmp.eq.s32.totalorder %s20, 0
      %p130 = por %p128, %p129
      %p131 = scmp.ne.s32.totalorder %s119, %s120
      %p132 = scmp.eq.s32.totalorder %s21, 1
      %p133 = por %p131, %p132
      %p135 = scmp.ne.s32.totalorder %s120, %s134
      %p136 = scmp.eq.s32.totalorder %s21, 0
      %p137 = por %p135, %p136
      %s139 = sadd.s32 %s138, 1
      %p142 = scmp.eq.s32.totalorder %s15, 1
      %p143 = scmp.ne.s32.totalorder %s138, %s140
      %p144 = scmp.eq.s32.totalorder %s15, 0
      %p145 = por %p143, %p144
      %p146 = scmp.ne.s32.totalorder %s138, %s140
      %p147 = scmp.eq.s32.totalorder %s20, 1
      %p148 = por %p146, %p147
      %p149 = scmp.ne.s32.totalorder %s140, %s141
      %p150 = scmp.eq.s32.totalorder %s20, 0
      %p151 = por %p149, %p150
      %p152 = scmp.ne.s32.totalorder %s140, %s141
      %p153 = scmp.eq.s32.totalorder %s21, 1
      %p154 = por %p152, %p153
      %p156 = scmp.ne.s32.totalorder %s141, %s155
      %p157 = scmp.eq.s32.totalorder %s21, 0
      %p158 = por %p156, %p157
      %s159 = ssub.s32 %s15, %s22
      %p160 = scmp.eq.s32.totalorder %s159, 0
      %s162 = sadd.s32 %s161, 1
      %s163 = scalar_select %p160, %s161, %s162
      %p166 = pneg %p160
      %p167 = scmp.eq.s32.totalorder %s15, 1
      %p168 = por %p166, %p167
      %p169 = scmp.ne.s32.totalorder %s161, %s164
      %p170 = scmp.eq.s32.totalorder %s15, 0
      %p171 = por %p169, %p170
      %p172 = scmp.ne.s32.totalorder %s161, %s164
      %p173 = scmp.eq.s32.totalorder %s20, 1
      %p174 = por %p172, %p173
      %p175 = scmp.ne.s32.totalorder %s164, %s165
      %p176 = scmp.eq.s32.totalorder %s20, 0
      %p177 = por %p175, %p176
      %p178 = scmp.ne.s32.totalorder %s164, %s165
      %p179 = scmp.eq.s32.totalorder %s21, 1
      %p180 = por %p178, %p179
      %p182 = scmp.ne.s32.totalorder %s165, %s181
      %p183 = scmp.eq.s32.totalorder %s21, 0
      %p184 = por %p182, %p183
      %p185 = scmp.le.s32.totalorder 1, %s15
      %p186 = scmp.lt.s32.totalorder %s15, 3
      %p187 = pnand %p185, %p186
      %p188 = pneg %p187
      // Predicated region
      $region9: #{resid_block.7} parent=5 // pred_check
        _
      $region10: #{resid_block.7} parent=5 // pred_check_branch
        %190 = sbr.rel (%p187) target = $region12
      $region11: #{resid_block.7} parent=5 // pred_region
        %s191 = ssub.s32 %s15, 1
        // Predicated region
        $region13: #{resid_block.7} parent=11 // pred_check
          %p192 = pneg %p88
        $region14: #{resid_block.7} parent=11 // pred_check_branch
          %194 = sbr.rel (%p192) target = $region16
        $region15: #{resid_block.7} parent=11 // pred_region
          _
        $region16: #{resid_block.7} parent=11 // pred_fallthru
          _
        // Predicated region
        $region17: #{resid_block.7} parent=11 // pred_check
          %p195 = pneg %p109
        $region18: #{resid_block.7} parent=11 // pred_check_branch
          %197 = sbr.rel (%p195) target = $region20
        $region19: #{resid_block.7} parent=11 // pred_region
          _
        $region20: #{resid_block.7} parent=11 // pred_fallthru
          _
        // Predicated region
        $region21: #{resid_block.7} parent=11 // pred_check
          %p198 = pneg %p130
        $region22: #{resid_block.7} parent=11 // pred_check_branch
          %200 = sbr.rel (%p198) target = $region24
        $region23: #{resid_block.7} parent=11 // pred_region
          _
        $region24: #{resid_block.7} parent=11 // pred_fallthru
          _
        // Predicated region
        $region25: #{resid_block.7} parent=11 // pred_check
          %p201 = pneg %p151
        $region26: #{resid_block.7} parent=11 // pred_check_branch
          %203 = sbr.rel (%p201) target = $region28
        $region27: #{resid_block.7} parent=11 // pred_region
          _
        $region28: #{resid_block.7} parent=11 // pred_fallthru
          _
      $region12: #{resid_block.7} parent=5 // pred_fallthru
        _
      %p204 = scmp.lt.s32.totalorder %s15, 2
      // Predicated region
      $region29: #{resid_block.7} parent=5 // pred_check
        %p205 = pneg %p204
      $region30: #{resid_block.7} parent=5 // pred_check_branch
        %207 = sbr.rel (%p205) target = $region32
      $region31: #{resid_block.7} parent=5 // pred_region
        // Predicated region
        $region33: #{resid_block.7} parent=31 // pred_check
          %p208 = pneg %p35
        $region34: #{resid_block.7} parent=31 // pred_check_branch
          %210 = sbr.rel (%p208) target = $region36
        $region35: #{resid_block.7} parent=31 // pred_region
          %s211 = smul.u32 8, %s15
          %p212 = scmp.lt.s32.totalorder %s211, 15
          %s213 = scalar_select %p212, %s211, 15
          %s214 = smul.addr %s213, 4
          %s215 = scalar_lea.vmem %s0, %s214
          %s216 = smul.u32 8, %s15
        $region36: #{resid_block.7} parent=31 // pred_fallthru
          _
        // Predicated region
        $region37: #{resid_block.7} parent=31 // pred_check
          %p217 = pneg %p61
        $region38: #{resid_block.7} parent=31 // pred_check_branch
          %219 = sbr.rel (%p217) target = $region40
        $region39: #{resid_block.7} parent=31 // pred_region
          %s220 = smul.u32 8, %s15
          %p221 = scmp.lt.s32.totalorder %s220, 15
          %s222 = scalar_select %p221, %s220, 15
          %s223 = smul.addr %s222, 4
          %s224 = scalar_lea.vmem %s1, %s223
          %s225 = smul.u32 8, %s15
        $region40: #{resid_block.7} parent=31 // pred_fallthru
          _
      $region32: #{resid_block.7} parent=5 // pred_fallthru
        _
      %p226 = scmp.le.s32.totalorder 1, %s15
      %p227 = scmp.lt.s32.totalorder %s15, 3
      %p228 = pnand %p226, %p227
      %p229 = pneg %p228
      // Predicated region
      $region41: #{resid_block.7} parent=5 // pred_check
        _
      $region42: #{resid_block.7} parent=5 // pred_check_branch
        %231 = sbr.rel (%p228) target = $region44
      $region43: #{resid_block.7} parent=5 // pred_region
        %s232 = ssub.s32 %s15, 1
        %s233 = smul.u32 8, %s20
        %p234 = scmp.lt.s32.totalorder %s233, 15
        %s235 = scalar_select %p234, %s233, 15
        %s236 = smul.addr %s235, 4
        %s237 = scalar_lea.vmem %s0, %s236
        %p238 = pneg %p41
        %p239 = pneg %p38
        %s240 = smul.u32 8, %s20
        %p241 = scmp.lt.s32.totalorder %s240, 15
        %s242 = scalar_select %p241, %s240, 15
        %s243 = smul.addr %s242, 4
        %s244 = scalar_lea.vmem %s1, %s243
        %p245 = pneg %p67
        %p246 = pneg %p64
        %p247 = pneg %p88
        %p248 = pneg %p85
        %p249 = pneg %p109
        %p250 = pneg %p106
        %p251 = pneg %p130
        %p252 = pneg %p127
        %p253 = pneg %p151
        %p254 = pneg %p148
        %p255 = pneg %p177
        %p256 = pneg %p174
        %s257 = sand.u32 %s164, 1
        %s258 = scalar_lea.sflag [#allocation3], %s257
        %s259 = sand.u32 %s164, 1
        %s260 = smul.addr %s259, 64
        %s261 = scalar_lea.vmem [#allocation2], %s260
        %s262 = smul.u32 8, %s20
        %p263 = scmp.lt.s32.totalorder %s262, 15
        %s264 = scalar_select %p263, %s262, 15
        %s265 = smul.addr %s264, 4
        %s266 = scalar_lea.vmem %s0, %s265
        %s267 = smul.u32 8, %s20
        %s268 = smul.u32 8, %s20
        %p269 = scmp.lt.s32.totalorder %s268, 15
        %s270 = scalar_select %p269, %s268, 15
        %s271 = smul.addr %s270, 4
        %s272 = scalar_lea.vmem %s1, %s271
        %s273 = smul.u32 8, %s20
        %s274 = smul.u32 8, %s20
        %v275 = vld [vmem:[%s266] sm:$0xf]
        %v276 = vld [vmem:[%s266 + $0x4] sm:$0xf]
        %v277 = vld [vmem:[%s266 + $0x8] sm:$0xf]
        %v278 = vld [vmem:[%s266 + $0xc] sm:$0xf]
        %v279 = vld [vmem:[%s266 + $0x10] sm:$0xf]
        %v280 = vld [vmem:[%s266 + $0x14] sm:$0xf]
        %v281 = vld [vmem:[%s266 + $0x18] sm:$0xf]
        %v282 = vld [vmem:[%s266 + $0x1c] sm:$0xf]
        %v283 = vunpack.c.l.bf16 %v275
        %v284 = vunpack.c.l.bf16 %v276
        %v285 = vunpack.c.l.bf16 %v277
        %v286 = vunpack.c.l.bf16 %v278
        %v287 = vunpack.c.l.bf16 %v279
        %v288 = vunpack.c.l.bf16 %v280
        %v289 = vunpack.c.l.bf16 %v281
        %v290 = vunpack.c.l.bf16 %v282
        %v291 = vld [vmem:[%s2] sm:$0x1]
        %v293 = vperm.slane %v291, 0
        %v295 = vmul.f32 %v283, %v293
        %v296 = vmul.f32 %v284, %v293
        %v297 = vmul.f32 %v285, %v293
        %v298 = vmul.f32 %v286, %v293
        %v299 = vmul.f32 %v287, %v293
        %v300 = vmul.f32 %v288, %v293
        %v301 = vmul.f32 %v289, %v293
        %v302 = vmul.f32 %v290, %v293
        %v303 = vld [vmem:[%s3] sm:$0x1]
        %v305 = vperm.slane %v303, 0
        %v307 = vadd.f32 %v295, %v305
        %v308 = vadd.f32 %v296, %v305
        %v309 = vadd.f32 %v297, %v305
        %v310 = vadd.f32 %v298, %v305
        %v311 = vadd.f32 %v299, %v305
        %v312 = vadd.f32 %v300, %v305
        %v313 = vadd.f32 %v301, %v305
        %v314 = vadd.f32 %v302, %v305
        %v315 = vld [vmem:[%s272] sm:$0xf]
        %v316 = vld [vmem:[%s272 + $0x4] sm:$0xf]
        %v317 = vld [vmem:[%s272 + $0x8] sm:$0xf]
        %v318 = vld [vmem:[%s272 + $0xc] sm:$0xf]
        %v319 = vld [vmem:[%s272 + $0x10] sm:$0xf]
        %v320 = vld [vmem:[%s272 + $0x14] sm:$0xf]
        %v321 = vld [vmem:[%s272 + $0x18] sm:$0xf]
        %v322 = vld [vmem:[%s272 + $0x1c] sm:$0xf]
        %v323 = vunpack.c.l.bf16 %v315
        %v324 = vunpack.c.l.bf16 %v316
        %v325 = vunpack.c.l.bf16 %v317
        %v326 = vunpack.c.l.bf16 %v318
        %v327 = vunpack.c.l.bf16 %v319
        %v328 = vunpack.c.l.bf16 %v320
        %v329 = vunpack.c.l.bf16 %v321
        %v330 = vunpack.c.l.bf16 %v322
        %v331 = vld [vmem:[%s4] sm:$0x1]
        %v333 = vperm.slane %v331, 0
        %v335 = vmul.f32 %v323, %v333
        %v336 = vmul.f32 %v324, %v333
        %v337 = vmul.f32 %v325, %v333
        %v338 = vmul.f32 %v326, %v333
        %v339 = vmul.f32 %v327, %v333
        %v340 = vmul.f32 %v328, %v333
        %v341 = vmul.f32 %v329, %v333
        %v342 = vmul.f32 %v330, %v333
        %v343 = vadd.f32 %v307, %v335
        %v344 = vadd.f32 %v308, %v336
        %v345 = vadd.f32 %v309, %v337
        %v346 = vadd.f32 %v310, %v338
        %v347 = vadd.f32 %v311, %v339
        %v348 = vadd.f32 %v312, %v340
        %v349 = vadd.f32 %v313, %v341
        %v350 = vadd.f32 %v314, %v342
        %v351 = vld [vmem:[%s5] sm:$0x1]
        %v353 = vperm.slane %v351, 0
        %v355 = vadd.f32 %v343, %v353
        %v356 = vadd.f32 %v344, %v353
        %v357 = vadd.f32 %v345, %v353
        %v358 = vadd.f32 %v346, %v353
        %v359 = vadd.f32 %v347, %v353
        %v360 = vadd.f32 %v348, %v353
        %v361 = vadd.f32 %v349, %v353
        %v362 = vadd.f32 %v350, %v353
        %v363 = vmax.f32 %v355, 0.0
        %v364 = vmax.f32 %v356, 0.0
        %v365 = vmax.f32 %v357, 0.0
        %v366 = vmax.f32 %v358, 0.0
        %v367 = vmax.f32 %v359, 0.0
        %v368 = vmax.f32 %v360, 0.0
        %v369 = vmax.f32 %v361, 0.0
        %v370 = vmax.f32 %v362, 0.0
        %vm371 = vcmask 130048
        %372 = vst.msk [vmem:[%s261] sm:$0xff] %vm371, %v363
        %373 = vst.msk [vmem:[%s261 + $0x8] sm:$0xff] %vm371, %v364
        %374 = vst.msk [vmem:[%s261 + $0x10] sm:$0xff] %vm371, %v365
        %375 = vst.msk [vmem:[%s261 + $0x18] sm:$0xff] %vm371, %v366
        %376 = vst.msk [vmem:[%s261 + $0x20] sm:$0xff] %vm371, %v367
        %377 = vst.msk [vmem:[%s261 + $0x28] sm:$0xff] %vm371, %v368
        %378 = vst.msk [vmem:[%s261 + $0x30] sm:$0xff] %vm371, %v369
        %379 = vst.msk [vmem:[%s261 + $0x38] sm:$0xff] %vm371, %v370
        %s380 = sand.u32 %s164, 1
        %s381 = scalar_lea.sflag [#allocation3], %s380
        %s382 = sand.u32 %s164, 1
        %s383 = smul.addr %s382, 64
        %s384 = scalar_lea.vmem [#allocation2], %s383
        // Predicated region
        $region45: #{resid_block.7} parent=43 // pred_check
          %p385 = pneg %p174
        $region46: #{resid_block.7} parent=43 // pred_check_branch
          %387 = sbr.rel (%p385) target = $region48
        $region47: #{resid_block.7} parent=43 // pred_region
          %s388 = smul.u32 8, %s20
          %390 = vsyncadd %s381, 0
          %s391 = smul.addr %s388, 8
          %s392 = scalar_lea.hbm %s6, %s391
          %s393 = sshll.u32 %s384, 4
          %s394 = int_to_ptr.vmem [resolvable:$true] %s393
          %s395 = sshll.u32 %s392, 4
          %s396 = int_to_ptr.hbm [resolvable:$true] %s395
          %401 = dma.vmem_to_hbm [thread:$0]  %s394, 1024, %s396, %s381, 128, 128, 8
        $region48: #{resid_block.7} parent=43 // pred_fallthru
          _
      $region44: #{resid_block.7} parent=5 // pred_fallthru
        _
      %p402 = scmp.le.s32.totalorder 2, %s15
      // Predicated region
      $region49: #{resid_block.7} parent=5 // pred_check
        %p403 = pneg %p402
      $region50: #{resid_block.7} parent=5 // pred_check_branch
        %405 = sbr.rel (%p403) target = $region52
      $region51: #{resid_block.7} parent=5 // pred_region
        %s406 = ssub.s32 %s15, 2
        // Predicated region
        $region53: #{resid_block.7} parent=51 // pred_check
          %p407 = pneg %p180
        $region54: #{resid_block.7} parent=51 // pred_check_branch
          %409 = sbr.rel (%p407) target = $region56
        $region55: #{resid_block.7} parent=51 // pred_region
          %s410 = sand.u32 %s165, 1
          %s411 = scalar_lea.sflag [#allocation3], %s410
          %s412 = sand.u32 %s165, 1
          %s413 = smul.addr %s412, 64
          %s414 = scalar_lea.vmem [#allocation2], %s413
          %416 = dma.done %s411, 1024
        $region56: #{resid_block.7} parent=51 // pred_fallthru
          _
      $region52: #{resid_block.7} parent=5 // pred_fallthru
        _
    $region6: #{resid_block.7} parent=1 // loop_footer
      %s19 = sadd.s32 1, %s15
    $region7: #{resid_block.7} parent=1 // loop_footer_branch
      %14 = sbr.rel target = $region3
    $region8: #{resid_block.7} parent=1 // loop_exit
      _
    %417 = vsyncpa [#allocation3], 1
    %s418 = scalar_lea.sflag [#allocation3], 1
    %419 = vsyncpa %s418, 1

// kernel: resid_block.6
$region0: #{resid_block.6}
  #allocation0 [shape = 'u32[]', space=smem, size = 0x4, offset = 0x4, fixed_abs, tag = 'smem constant byte address 0x4 - core index']
  #allocation1 [shape = 'u32[72,128]{1,0:T(1,128)}', space=vmem, size = 0x9000, scoped, tag = 'internal scratch']
  %s0 = inlined_call_operand.vmem [shape: bf16[128,8], index: 0, kind: input, shape index: {}]
  %s1 = inlined_call_operand.vmem [shape: f32[1,8], index: 1, kind: input, shape index: {}]
  %s2 = inlined_call_operand.vmem [shape: f32[1,8], index: 2, kind: input, shape index: {}]
  %s3 = inlined_call_operand.vmem [shape: bf16[8,16], index: 3, kind: input, shape index: {}]
  %s4 = inlined_call_operand.vmem [shape: bf16[128,4], index: 4, kind: input, shape index: {}]
  %s5 = inlined_call_operand.vmem [shape: bf16[4,16], index: 5, kind: input, shape index: {}]
  %s6 = inlined_call_operand.vmem [shape: bf16[128,16], index: 6, kind: output, shape index: {0}]
  %s7 = inlined_call_operand.vmem [shape: bf16[128,16], index: 7, kind: output, shape index: {1}]
  %s8 = inlined_call_operand.vmem [shape: f32[2,4,16], index: 8, kind: output, shape index: {2}]
  %9 = xla_tuple %s6, %s7, %s8
  %s10 = sld [smem:[#allocation0]]
  $region73: #{resid_block.6} parent=0
    _
  %s12 = ssub.s32 1, %s10
  %s13 = scalar_select 0, %s12, %s10
  loop: start=0, step=1, limit=4
  $region2: #{resid_block.6} parent=0 // loop_pre_header
    _
  $region3: #{resid_block.6} parent=0 // loop_header
    %s15 = sphi 0, %s19
    %p16 = scmp.ge.s32.totalorder %s15, 4
    %s25 = sphi 0, %s27
    %s28 = sphi 0, %s25
    %s29 = sphi 0, %s28
    %s45 = sphi 0, %s29
    %s49 = sphi 0, %s49
    %s51 = sphi 0, %s49
    %s52 = sphi 0, %s51
    %s66 = sphi 0, %s52
    %s70 = sphi 0, %s70
    %s72 = sphi 0, %s70
    %s73 = sphi 0, %s72
    %s87 = sphi 0, %s73
    %s91 = sphi 0, %s91
    %s93 = sphi 0, %s91
    %s94 = sphi 0, %s93
    %s108 = sphi 0, %s94
    %s114 = sphi 0, %s116
    %s117 = sphi 0, %s114
    %s118 = sphi 0, %s117
    %s134 = sphi 0, %s118
    %s138 = sphi 0, %s138
    %s140 = sphi 0, %s138
    %s141 = sphi 0, %s140
    %s155 = sphi 0, %s141
    %s161 = sphi 0, %s163
    %s164 = sphi 0, %s161
    %s165 = sphi 0, %s164
    %s181 = sphi 0, %s165
    %s187 = sphi 0, %s189
    %s190 = sphi 0, %s187
    %s191 = sphi 0, %s190
    %s207 = sphi 0, %s191
    %s213 = sphi 0, %s215
    %s216 = sphi 0, %s213
    %s217 = sphi 0, %s216
    %s233 = sphi 0, %s217
  $region4: #{resid_block.6} parent=0 // loop_header_branch
    %18 = sbr.rel (%p16) target = $region8
  $region5: #{resid_block.6} parent=0 // loop_body
    %s20 = ssub.s32 %s15, 1
    %s21 = ssub.s32 %s15, 2
    %s22 = sadd.s32 %s15, 1
    %s23 = ssub.s32 %s15, %s22
    %p24 = scmp.eq.s32.totalorder %s23, 0
    %s26 = sadd.s32 %s25, 1
    %s27 = scalar_select %p24, %s25, %s26
    %p30 = pneg %p24
    %p31 = scmp.eq.s32.totalorder %s15, 1
    %p32 = por %p30, %p31
    %p33 = scmp.ne.s32.totalorder %s25, %s28
    %p34 = scmp.eq.s32.totalorder %s15, 0
    %p35 = por %p33, %p34
    %p36 = scmp.ne.s32.totalorder %s25, %s28
    %p37 = scmp.eq.s32.totalorder %s20, 1
    %p38 = por %p36, %p37
    %p39 = scmp.ne.s32.totalorder %s28, %s29
    %p40 = scmp.eq.s32.totalorder %s20, 0
    %p41 = por %p39, %p40
    %p42 = scmp.ne.s32.totalorder %s28, %s29
    %p43 = scmp.eq.s32.totalorder %s21, 1
    %p44 = por %p42, %p43
    %p46 = scmp.ne.s32.totalorder %s29, %s45
    %p47 = scmp.eq.s32.totalorder %s21, 0
    %p48 = por %p46, %p47
    %s50 = sadd.s32 %s49, 1
    %p53 = scmp.eq.s32.totalorder %s15, 1
    %p54 = scmp.ne.s32.totalorder %s49, %s51
    %p55 = scmp.eq.s32.totalorder %s15, 0
    %p56 = por %p54, %p55
    %p57 = scmp.ne.s32.totalorder %s49, %s51
    %p58 = scmp.eq.s32.totalorder %s20, 1
    %p59 = por %p57, %p58
    %p60 = scmp.ne.s32.totalorder %s51, %s52
    %p61 = scmp.eq.s32.totalorder %s20, 0
    %p62 = por %p60, %p61
    %p63 = scmp.ne.s32.totalorder %s51, %s52
    %p64 = scmp.eq.s32.totalorder %s21, 1
    %p65 = por %p63, %p64
    %p67 = scmp.ne.s32.totalorder %s52, %s66
    %p68 = scmp.eq.s32.totalorder %s21, 0
    %p69 = por %p67, %p68
    %s71 = sadd.s32 %s70, 1
    %p74 = scmp.eq.s32.totalorder %s15, 1
    %p75 = scmp.ne.s32.totalorder %s70, %s72
    %p76 = scmp.eq.s32.totalorder %s15, 0
    %p77 = por %p75, %p76
    %p78 = scmp.ne.s32.totalorder %s70, %s72
    %p79 = scmp.eq.s32.totalorder %s20, 1
    %p80 = por %p78, %p79
    %p81 = scmp.ne.s32.totalorder %s72, %s73
    %p82 = scmp.eq.s32.totalorder %s20, 0
    %p83 = por %p81, %p82
    %p84 = scmp.ne.s32.totalorder %s72, %s73
    %p85 = scmp.eq.s32.totalorder %s21, 1
    %p86 = por %p84, %p85
    %p88 = scmp.ne.s32.totalorder %s73, %s87
    %p89 = scmp.eq.s32.totalorder %s21, 0
    %p90 = por %p88, %p89
    %s92 = sadd.s32 %s91, 1
    %p95 = scmp.eq.s32.totalorder %s15, 1
    %p96 = scmp.ne.s32.totalorder %s91, %s93
    %p97 = scmp.eq.s32.totalorder %s15, 0
    %p98 = por %p96, %p97
    %p99 = scmp.ne.s32.totalorder %s91, %s93
    %p100 = scmp.eq.s32.totalorder %s20, 1
    %p101 = por %p99, %p100
    %p102 = scmp.ne.s32.totalorder %s93, %s94
    %p103 = scmp.eq.s32.totalorder %s20, 0
    %p104 = por %p102, %p103
    %p105 = scmp.ne.s32.totalorder %s93, %s94
    %p106 = scmp.eq.s32.totalorder %s21, 1
    %p107 = por %p105, %p106
    %p109 = scmp.ne.s32.totalorder %s94, %s108
    %p110 = scmp.eq.s32.totalorder %s21, 0
    %p111 = por %p109, %p110
    %s112 = ssub.s32 %s15, %s22
    %p113 = scmp.eq.s32.totalorder %s112, 0
    %s115 = sadd.s32 %s114, 1
    %s116 = scalar_select %p113, %s114, %s115
    %p119 = pneg %p113
    %p120 = scmp.eq.s32.totalorder %s15, 1
    %p121 = por %p119, %p120
    %p122 = scmp.ne.s32.totalorder %s114, %s117
    %p123 = scmp.eq.s32.totalorder %s15, 0
    %p124 = por %p122, %p123
    %p125 = scmp.ne.s32.totalorder %s114, %s117
    %p126 = scmp.eq.s32.totalorder %s20, 1
    %p127 = por %p125, %p126
    %p128 = scmp.ne.s32.totalorder %s117, %s118
    %p129 = scmp.eq.s32.totalorder %s20, 0
    %p130 = por %p128, %p129
    %p131 = scmp.ne.s32.totalorder %s117, %s118
    %p132 = scmp.eq.s32.totalorder %s21, 1
    %p133 = por %p131, %p132
    %p135 = scmp.ne.s32.totalorder %s118, %s134
    %p136 = scmp.eq.s32.totalorder %s21, 0
    %p137 = por %p135, %p136
    %s139 = sadd.s32 %s138, 1
    %p142 = scmp.eq.s32.totalorder %s15, 1
    %p143 = scmp.ne.s32.totalorder %s138, %s140
    %p144 = scmp.eq.s32.totalorder %s15, 0
    %p145 = por %p143, %p144
    %p146 = scmp.ne.s32.totalorder %s138, %s140
    %p147 = scmp.eq.s32.totalorder %s20, 1
    %p148 = por %p146, %p147
    %p149 = scmp.ne.s32.totalorder %s140, %s141
    %p150 = scmp.eq.s32.totalorder %s20, 0
    %p151 = por %p149, %p150
    %p152 = scmp.ne.s32.totalorder %s140, %s141
    %p153 = scmp.eq.s32.totalorder %s21, 1
    %p154 = por %p152, %p153
    %p156 = scmp.ne.s32.totalorder %s141, %s155
    %p157 = scmp.eq.s32.totalorder %s21, 0
    %p158 = por %p156, %p157
    %s159 = ssub.s32 %s15, %s22
    %p160 = scmp.eq.s32.totalorder %s159, 0
    %s162 = sadd.s32 %s161, 1
    %s163 = scalar_select %p160, %s161, %s162
    %p166 = pneg %p160
    %p167 = scmp.eq.s32.totalorder %s15, 1
    %p168 = por %p166, %p167
    %p169 = scmp.ne.s32.totalorder %s161, %s164
    %p170 = scmp.eq.s32.totalorder %s15, 0
    %p171 = por %p169, %p170
    %p172 = scmp.ne.s32.totalorder %s161, %s164
    %p173 = scmp.eq.s32.totalorder %s20, 1
    %p174 = por %p172, %p173
    %p175 = scmp.ne.s32.totalorder %s164, %s165
    %p176 = scmp.eq.s32.totalorder %s20, 0
    %p177 = por %p175, %p176
    %p178 = scmp.ne.s32.totalorder %s164, %s165
    %p179 = scmp.eq.s32.totalorder %s21, 1
    %p180 = por %p178, %p179
    %p182 = scmp.ne.s32.totalorder %s165, %s181
    %p183 = scmp.eq.s32.totalorder %s21, 0
    %p184 = por %p182, %p183
    %s185 = ssub.s32 %s15, %s22
    %p186 = scmp.eq.s32.totalorder %s185, 0
    %s188 = sadd.s32 %s187, 1
    %s189 = scalar_select %p186, %s187, %s188
    %p192 = pneg %p186
    %p193 = scmp.eq.s32.totalorder %s15, 1
    %p194 = por %p192, %p193
    %p195 = scmp.ne.s32.totalorder %s187, %s190
    %p196 = scmp.eq.s32.totalorder %s15, 0
    %p197 = por %p195, %p196
    %p198 = scmp.ne.s32.totalorder %s187, %s190
    %p199 = scmp.eq.s32.totalorder %s20, 1
    %p200 = por %p198, %p199
    %p201 = scmp.ne.s32.totalorder %s190, %s191
    %p202 = scmp.eq.s32.totalorder %s20, 0
    %p203 = por %p201, %p202
    %p204 = scmp.ne.s32.totalorder %s190, %s191
    %p205 = scmp.eq.s32.totalorder %s21, 1
    %p206 = por %p204, %p205
    %p208 = scmp.ne.s32.totalorder %s191, %s207
    %p209 = scmp.eq.s32.totalorder %s21, 0
    %p210 = por %p208, %p209
    %s211 = ssub.s32 %s15, %s22
    %p212 = scmp.eq.s32.totalorder %s211, 0
    %s214 = sadd.s32 %s213, 1
    %s215 = scalar_select %p212, %s213, %s214
    %p218 = pneg %p212
    %p219 = scmp.eq.s32.totalorder %s15, 1
    %p220 = por %p218, %p219
    %p221 = scmp.ne.s32.totalorder %s213, %s216
    %p222 = scmp.eq.s32.totalorder %s15, 0
    %p223 = por %p221, %p222
    %p224 = scmp.ne.s32.totalorder %s213, %s216
    %p225 = scmp.eq.s32.totalorder %s20, 1
    %p226 = por %p224, %p225
    %p227 = scmp.ne.s32.totalorder %s216, %s217
    %p228 = scmp.eq.s32.totalorder %s20, 0
    %p229 = por %p227, %p228
    %p230 = scmp.ne.s32.totalorder %s216, %s217
    %p231 = scmp.eq.s32.totalorder %s21, 1
    %p232 = por %p230, %p231
    %p234 = scmp.ne.s32.totalorder %s217, %s233
    %p235 = scmp.eq.s32.totalorder %s21, 0
    %p236 = por %p234, %p235
    %p237 = scmp.le.s32.totalorder 1, %s15
    %p238 = scmp.lt.s32.totalorder %s15, 3
    %p239 = pnand %p237, %p238
    %p240 = pneg %p239
    // Predicated region
    $region9: #{resid_block.6} parent=5 // pred_check
      _
    $region10: #{resid_block.6} parent=5 // pred_check_branch
      %242 = sbr.rel (%p239) target = $region12
    $region11: #{resid_block.6} parent=5 // pred_region
      %s243 = ssub.s32 %s15, 1
      // Predicated region
      $region13: #{resid_block.6} parent=11 // pred_check
        %p244 = pneg %p62
      $region14: #{resid_block.6} parent=11 // pred_check_branch
        %246 = sbr.rel (%p244) target = $region16
      $region15: #{resid_block.6} parent=11 // pred_region
        _
      $region16: #{resid_block.6} parent=11 // pred_fallthru
        _
      // Predicated region
      $region17: #{resid_block.6} parent=11 // pred_check
        %p247 = pneg %p83
      $region18: #{resid_block.6} parent=11 // pred_check_branch
        %249 = sbr.rel (%p247) target = $region20
      $region19: #{resid_block.6} parent=11 // pred_region
        _
      $region20: #{resid_block.6} parent=11 // pred_fallthru
        _
      // Predicated region
      $region21: #{resid_block.6} parent=11 // pred_check
        %p250 = pneg %p104
      $region22: #{resid_block.6} parent=11 // pred_check_branch
        %252 = sbr.rel (%p250) target = $region24
      $region23: #{resid_block.6} parent=11 // pred_region
        _
      $region24: #{resid_block.6} parent=11 // pred_fallthru
        _
      // Predicated region
      $region25: #{resid_block.6} parent=11 // pred_check
        %p253 = pneg %p151
      $region26: #{resid_block.6} parent=11 // pred_check_branch
        %255 = sbr.rel (%p253) target = $region28
      $region27: #{resid_block.6} parent=11 // pred_region
        _
      $region28: #{resid_block.6} parent=11 // pred_fallthru
        _
    $region12: #{resid_block.6} parent=5 // pred_fallthru
      _
    %p256 = scmp.lt.s32.totalorder %s15, 2
    // Predicated region
    $region29: #{resid_block.6} parent=5 // pred_check
      %p257 = pneg %p256
    $region30: #{resid_block.6} parent=5 // pred_check_branch
      %259 = sbr.rel (%p257) target = $region32
    $region31: #{resid_block.6} parent=5 // pred_region
      // Predicated region
      $region33: #{resid_block.6} parent=31 // pred_check
        %p260 = pneg %p35
      $region34: #{resid_block.6} parent=31 // pred_check_branch
        %262 = sbr.rel (%p260) target = $region36
      $region35: #{resid_block.6} parent=31 // pred_region
        %s263 = smul.u32 8, %s15
        %p264 = scmp.lt.s32.totalorder %s263, 15
        %s265 = scalar_select %p264, %s263, 15
        %s266 = smul.addr %s265, 4
        %s267 = scalar_lea.vmem %s0, %s266
        %s268 = smul.u32 8, %s15
      $region36: #{resid_block.6} parent=31 // pred_fallthru
        _
      // Predicated region
      $region37: #{resid_block.6} parent=31 // pred_check
        %p269 = pneg %p124
      $region38: #{resid_block.6} parent=31 // pred_check_branch
        %271 = sbr.rel (%p269) target = $region40
      $region39: #{resid_block.6} parent=31 // pred_region
        %s272 = smul.u32 8, %s15
        %p273 = scmp.lt.s32.totalorder %s272, 15
        %s274 = scalar_select %p273, %s272, 15
        %s275 = smul.addr %s274, 4
        %s276 = scalar_lea.vmem %s4, %s275
        %s277 = smul.u32 8, %s15
      $region40: #{resid_block.6} parent=31 // pred_fallthru
        _
    $region32: #{resid_block.6} parent=5 // pred_fallthru
      _
    %p278 = scmp.le.s32.totalorder 1, %s15
    %p279 = scmp.lt.s32.totalorder %s15, 3
    %p280 = pnand %p278, %p279
    %p281 = pneg %p280
    // Predicated region
    $region41: #{resid_block.6} parent=5 // pred_check
      _
    $region42: #{resid_block.6} parent=5 // pred_check_branch
      %283 = sbr.rel (%p280) target = $region44
    $region43: #{resid_block.6} parent=5 // pred_region
      %s284 = ssub.s32 %s15, 1
      %s285 = smul.u32 8, %s20
      %p286 = scmp.lt.s32.totalorder %s285, 15
      %s287 = scalar_select %p286, %s285, 15
      %s288 = smul.addr %s287, 4
      %s289 = scalar_lea.vmem %s0, %s288
      %p290 = pneg %p41
      %p291 = pneg %p38
      %p292 = pneg %p62
      %p293 = pneg %p59
      %p294 = pneg %p83
      %p295 = pneg %p80
      %p296 = pneg %p104
      %p297 = pneg %p101
      %s298 = smul.u32 8, %s20
      %p299 = scmp.lt.s32.totalorder %s298, 15
      %s300 = scalar_select %p299, %s298, 15
      %s301 = smul.addr %s300, 4
      %s302 = scalar_lea.vmem %s4, %s301
      %p303 = pneg %p130
      %p304 = pneg %p127
      %p305 = pneg %p151
      %p306 = pneg %p148
      %p307 = pneg %p177
      %p308 = pneg %p174
      %s309 = smul.u32 8, %s20
      %p310 = scmp.lt.s32.totalorder %s309, 15
      %s311 = scalar_select %p310, %s309, 15
      %s312 = smul.addr %s311, 4
      %s313 = scalar_lea.vmem %s6, %s312
      %p314 = pneg %p203
      %p315 = pneg %p200
      %s316 = smul.u32 8, %s20
      %p317 = scmp.lt.s32.totalorder %s316, 15
      %s318 = scalar_select %p317, %s316, 15
      %s319 = smul.addr %s318, 4
      %s320 = scalar_lea.vmem %s7, %s319
      %p321 = pneg %p229
      %p322 = pneg %p226
      %p323 = scmp.lt.s32.totalorder %s20, 1
      %s324 = scalar_select %p323, %s20, 1
      %s325 = smul.addr %s324, 4
      %s326 = scalar_lea.vmem %s8, %s325
      %s327 = smul.u32 8, %s20
      %p328 = scmp.lt.s32.totalorder %s327, 15
      %s329 = scalar_select %p328, %s327, 15
      %s330 = smul.addr %s329, 4
      %s331 = scalar_lea.vmem %s0, %s330
      %s332 = smul.u32 8, %s20
      %s333 = smul.u32 8, %s20
      %p334 = scmp.lt.s32.totalorder %s333, 15
      %s335 = scalar_select %p334, %s333, 15
      %s336 = smul.addr %s335, 4
      %s337 = scalar_lea.vmem %s4, %s336
      %s338 = smul.u32 8, %s20
      %s339 = smul.u32 8, %s20
      %p340 = scmp.lt.s32.totalorder %s339, 15
      %s341 = scalar_select %p340, %s339, 15
      %s342 = smul.addr %s341, 4
      %s343 = scalar_lea.vmem %s6, %s342
      %s344 = smul.u32 8, %s20
      %s345 = smul.u32 8, %s20
      %p346 = scmp.lt.s32.totalorder %s345, 15
      %s347 = scalar_select %p346, %s345, 15
      %s348 = smul.addr %s347, 4
      %s349 = scalar_lea.vmem %s7, %s348
      %s350 = smul.u32 8, %s20
      %p351 = scmp.lt.s32.totalorder %s20, 1
      %s352 = scalar_select %p351, %s20, 1
      %s353 = smul.addr %s352, 4
      %s354 = scalar_lea.vmem %s8, %s353
      %v356 = vld [vmem:[%s331] sm:$0xf]
      %v357 = vld [vmem:[%s331 + $0x4] sm:$0xf]
      %v358 = vld [vmem:[%s331 + $0x8] sm:$0xf]
      %v359 = vld [vmem:[%s331 + $0xc] sm:$0xf]
      %v360 = vld [vmem:[%s331 + $0x10] sm:$0xf]
      %v361 = vld [vmem:[%s331 + $0x14] sm:$0xf]
      %v362 = vld [vmem:[%s331 + $0x18] sm:$0xf]
      %v363 = vld [vmem:[%s331 + $0x1c] sm:$0xf]
      %v364 = vunpack.c.l.bf16 %v356
      %v365 = vunpack.c.l.bf16 %v357
      %v366 = vunpack.c.l.bf16 %v358
      %v367 = vunpack.c.l.bf16 %v359
      %v368 = vunpack.c.l.bf16 %v360
      %v369 = vunpack.c.l.bf16 %v361
      %v370 = vunpack.c.l.bf16 %v362
      %v371 = vunpack.c.l.bf16 %v363
      %v372 = vld [vmem:[%s1] sm:$0x1]
      %v374 = vperm.slane %v372, 0
      %v376 = vmul.f32 %v364, %v374
      %v377 = vmul.f32 %v365, %v374
      %v378 = vmul.f32 %v366, %v374
      %v379 = vmul.f32 %v367, %v374
      %v380 = vmul.f32 %v368, %v374
      %v381 = vmul.f32 %v369, %v374
      %v382 = vmul.f32 %v370, %v374
      %v383 = vmul.f32 %v371, %v374
      %v384 = vld [vmem:[%s2] sm:$0x1]
      %v386 = vperm.slane %v384, 0
      %v388 = vadd.f32 %v376, %v386
      %v389 = vadd.f32 %v377, %v386
      %v390 = vadd.f32 %v378, %v386
      %v391 = vadd.f32 %v379, %v386
      %v392 = vadd.f32 %v380, %v386
      %v393 = vadd.f32 %v381, %v386
      %v394 = vadd.f32 %v382, %v386
      %v395 = vadd.f32 %v383, %v386
      %v396 = vmax.f32 %v388, 0.0
      %v397 = vmax.f32 %v389, 0.0
      %v398 = vmax.f32 %v390, 0.0
      %v399 = vmax.f32 %v391, 0.0
      %v400 = vmax.f32 %v392, 0.0
      %v401 = vmax.f32 %v393, 0.0
      %v402 = vmax.f32 %v394, 0.0
      %v403 = vmax.f32 %v395, 0.0
      %v404 = vpack.c.bf16 %v397, %v396
      %v405 = vpack.c.bf16 %v399, %v398
      %v406 = vpack.c.bf16 %v401, %v400
      %v407 = vpack.c.bf16 %v403, %v402
      %v408 = vld [vmem:[%s3] sm:$0xf]
      %vm409 = vcmask 64512
      %v411 = vsel %vm409, %v404, 0
      %v414 = vsel %vm409, %v405, 0
      %v417 = vsel %vm409, %v406, 0
      %v420 = vsel %vm409, %v407, 0
      %vm422 = vcmask 1043456
      %v424 = vsel %vm422, %v408, 0
      %426 = vmatpush.bf16.msra.mxu0 0
      %427 = vmatpush.bf16.msra.mxu0 0
      %428 = vmatpush.bf16.msra.mxu0 0
      %429 = vmatpush.bf16.msra.mxu0 0
      %430 = vmatpush.bf16.msra.mxu0 0
      %431 = vmatpush.bf16.msra.mxu0 0
      %432 = vmatpush.bf16.msra.mxu0 0
      %433 = vmatpush.bf16.msra.mxu0 %v424
      %434 = vmatmul.bf16.gmra.mxu0 %v411
      %v435 = vpop.f32.mrf.mxu0
      %v436 = vadd.f32 0.0, %v435
      %v437 = vpop.f32.mrf.mxu0
      %v438 = vadd.f32 0.0, %v437
      %439 = vmatmul.bf16.gmra.mxu0 %v414
      %v440 = vpop.f32.mrf.mxu0
      %v441 = vadd.f32 0.0, %v440
      %v442 = vpop.f32.mrf.mxu0
      %v443 = vadd.f32 0.0, %v442
      %444 = vmatmul.bf16.gmra.mxu0 %v417
      %v445 = vpop.f32.mrf.mxu0
      %v446 = vadd.f32 0.0, %v445
      %v447 = vpop.f32.mrf.mxu0
      %v448 = vadd.f32 0.0, %v447
      %449 = vmatmul.bf16.gmra.mxu0 %v420
      %v450 = vpop.f32.mrf.mxu0
      %v451 = vadd.f32 0.0, %v450
      %v452 = vpop.f32.mrf.mxu0
      %v453 = vadd.f32 0.0, %v452
      %454 = vdwg.mxu0
      %v455 = vld [vmem:[%s337] sm:$0xf]
      %v456 = vld [vmem:[%s337 + $0x4] sm:$0xf]
      %v457 = vld [vmem:[%s337 + $0x8] sm:$0xf]
      %v458 = vld [vmem:[%s337 + $0xc] sm:$0xf]
      %v459 = vld [vmem:[%s337 + $0x10] sm:$0xf]
      %v460 = vld [vmem:[%s337 + $0x14] sm:$0xf]
      %v461 = vld [vmem:[%s337 + $0x18] sm:$0xf]
      %v462 = vld [vmem:[%s337 + $0x1c] sm:$0xf]
      %v463 = vld [vmem:[%s5] sm:$0x3]
      %v472 = vunpack.c.l.b16 %v455
      %v473 = vunpack.c.l.b16 %v456
      %v474 = vunpack.c.l.b16 %v457
      %v475 = vunpack.c.l.b16 %v458
      %v476 = vunpack.c.l.b16 %v459
      %v477 = vunpack.c.l.b16 %v460
      %v478 = vunpack.c.l.b16 %v461
      %v479 = vunpack.c.l.b16 %v462
      %v480 = vpack.c.b16 %v473, %v472
      %v481 = vpack.c.b16 %v475, %v474
      %v482 = vpack.c.b16 %v477, %v476
      %v483 = vpack.c.b16 %v479, %v478
      %vm484 = vcmask 31744
      %v486 = vsel %vm484, %v480, 0
      %v489 = vsel %vm484, %v481, 0
      %v492 = vsel %vm484, %v482, 0
      %v495 = vsel %vm484, %v483, 0
      %vm497 = vcmask 1041408
      %v499 = vsel %vm497, %v463, 0
      %501 = vmatpush.bf16.msra.mxu0 0
      %502 = vmatpush.bf16.msra.mxu0 0
      %503 = vmatpush.bf16.msra.mxu0 0
      %504 = vmatpush.bf16.msra.mxu0 0
      %505 = vmatpush.bf16.msra.mxu0 0
      %506 = vmatpush.bf16.msra.mxu0 0
      %507 = vmatpush.bf16.msra.mxu0 0
      %508 = vmatpush.bf16.msra.mxu0 %v499
      %509 = vmatmul.bf16.gmra.mxu0 %v486
      %v510 = vpop.f32.mrf.mxu0
      %v511 = vadd.f32 0.0, %v510
      %v512 = vpop.f32.mrf.mxu0
      %v513 = vadd.f32 0.0, %v512
      %514 = vmatmul.bf16.gmra.mxu0 %v489
      %v515 = vpop.f32.mrf.mxu0
      %v516 = vadd.f32 0.0, %v515
      %v517 = vpop.f32.mrf.mxu0
      %v518 = vadd.f32 0.0, %v517
      %519 = vmatmul.bf16.gmra.mxu0 %v492
      %v520 = vpop.f32.mrf.mxu0
      %v521 = vadd.f32 0.0, %v520
      %v522 = vpop.f32.mrf.mxu0
      %v523 = vadd.f32 0.0, %v522
      %524 = vmatmul.bf16.gmra.mxu0 %v495
      %v525 = vpop.f32.mrf.mxu0
      %v526 = vadd.f32 0.0, %v525
      %v527 = vpop.f32.mrf.mxu0
      %v528 = vadd.f32 0.0, %v527
      %529 = vdwg.mxu0
      %v530 = vpack.c.bf16 %v436, %v436
      %v531 = vpack.c.bf16 %v438, %v438
      %v532 = vpack.c.bf16 %v441, %v441
      %v533 = vpack.c.bf16 %v443, %v443
      %v534 = vpack.c.bf16 %v446, %v446
      %v535 = vpack.c.bf16 %v448, %v448
      %v536 = vpack.c.bf16 %v451, %v451
      %v537 = vpack.c.bf16 %v453, %v453
      %vm538 = vcmask 125952
      %539 = vst.msk [vmem:[%s343] sm:$0xf] %vm538, %v530
      %540 = vst.msk [vmem:[%s343 + $0x4] sm:$0xf] %vm538, %v531
      %541 = vst.msk [vmem:[%s343 + $0x8] sm:$0xf] %vm538, %v532
      %542 = vst.msk [vmem:[%s343 + $0xc] sm:$0xf] %vm538, %v533
      %543 = vst.msk [vmem:[%s343 + $0x10] sm:$0xf] %vm538, %v534
      %544 = vst.msk [vmem:[%s343 + $0x14] sm:$0xf] %vm538, %v535
      %545 = vst.msk [vmem:[%s343 + $0x18] sm:$0xf] %vm538, %v536
      %546 = vst.msk [vmem:[%s343 + $0x1c] sm:$0xf] %vm538, %v537
      %v547 = vpack.c.bf16 %v511, %v511
      %v548 = vpack.c.bf16 %v513, %v513
      %v549 = vpack.c.bf16 %v516, %v516
      %v550 = vpack.c.bf16 %v518, %v518
      %v551 = vpack.c.bf16 %v521, %v521
      %v552 = vpack.c.bf16 %v523, %v523
      %v553 = vpack.c.bf16 %v526, %v526
      %v554 = vpack.c.bf16 %v528, %v528
      %555 = vst.msk [vmem:[%s349] sm:$0xf] %vm538, %v547
      %556 = vst.msk [vmem:[%s349 + $0x4] sm:$0xf] %vm538, %v548
      %557 = vst.msk [vmem:[%s349 + $0x8] sm:$0xf] %vm538, %v549
      %558 = vst.msk [vmem:[%s349 + $0xc] sm:$0xf] %vm538, %v550
      %559 = vst.msk [vmem:[%s349 + $0x10] sm:$0xf] %vm538, %v551
      %560 = vst.msk [vmem:[%s349 + $0x14] sm:$0xf] %vm538, %v552
      %561 = vst.msk [vmem:[%s349 + $0x18] sm:$0xf] %vm538, %v553
      %562 = vst.msk [vmem:[%s349 + $0x1c] sm:$0xf] %vm538, %v554
      %vm563 = vcmask 130048
      %v564 = vsel %vm563, %v436, 0.0
      %v565 = vsel %vm563, %v438, 0.0
      %v566 = vadd.f32 %v564, %v565
      %v567 = vsel %vm563, %v441, 0.0
      %v568 = vadd.f32 %v566, %v567
      %v569 = vsel %vm563, %v443, 0.0
      %v570 = vadd.f32 %v568, %v569
      %v571 = vsel %vm563, %v446, 0.0
      %v572 = vadd.f32 %v570, %v571
      %v573 = vsel %vm563, %v448, 0.0
      %v574 = vadd.f32 %v572, %v573
      %v575 = vsel %vm563, %v451, 0.0
      %v576 = vadd.f32 %v574, %v575
      %v577 = vsel %vm563, %v453, 0.0
      %v578 = vadd.f32 %v576, %v577
      %v579 = vrot.slane %v578, 4
      %v580 = vadd.f32 %v578, %v579
      %v581 = vrot.slane %v580, 2
      %v582 = vadd.f32 %v580, %v581
      %v583 = vrot.slane %v582, 1
      %v584 = vadd.f32 %v582, %v583
      %v585 = vmul.f32 %v436, %v436
      %v586 = vmul.f32 %v438, %v438
      %v587 = vmul.f32 %v441, %v441
      %v588 = vmul.f32 %v443, %v443
      %v589 = vmul.f32 %v446, %v446
      %v590 = vmul.f32 %v448, %v448
      %v591 = vmul.f32 %v451, %v451
      %v592 = vmul.f32 %v453, %v453
      %v593 = vsel %vm563, %v585, 0.0
      %v594 = vsel %vm563, %v586, 0.0
      %v595 = vadd.f32 %v593, %v594
      %v596 = vsel %vm563, %v587, 0.0
      %v597 = vadd.f32 %v595, %v596
      %v598 = vsel %vm563, %v588, 0.0
      %v599 = vadd.f32 %v597, %v598
      %v600 = vsel %vm563, %v589, 0.0
      %v601 = vadd.f32 %v599, %v600
      %v602 = vsel %vm563, %v590, 0.0
      %v603 = vadd.f32 %v601, %v602
      %v604 = vsel %vm563, %v591, 0.0
      %v605 = vadd.f32 %v603, %v604
      %v606 = vsel %vm563, %v592, 0.0
      %v607 = vadd.f32 %v605, %v606
      %v608 = vrot.slane %v607, 4
      %v609 = vadd.f32 %v607, %v608
      %v610 = vrot.slane %v609, 2
      %v611 = vadd.f32 %v609, %v610
      %v612 = vrot.slane %v611, 1
      %v613 = vadd.f32 %v611, %v612
      %v614 = vsel %vm563, %v511, 0.0
      %v615 = vsel %vm563, %v513, 0.0
      %v616 = vadd.f32 %v614, %v615
      %v617 = vsel %vm563, %v516, 0.0
      %v618 = vadd.f32 %v616, %v617
      %v619 = vsel %vm563, %v518, 0.0
      %v620 = vadd.f32 %v618, %v619
      %v621 = vsel %vm563, %v521, 0.0
      %v622 = vadd.f32 %v620, %v621
      %v623 = vsel %vm563, %v523, 0.0
      %v624 = vadd.f32 %v622, %v623
      %v625 = vsel %vm563, %v526, 0.0
      %v626 = vadd.f32 %v624, %v625
      %v627 = vsel %vm563, %v528, 0.0
      %v628 = vadd.f32 %v626, %v627
      %v629 = vrot.slane %v628, 4
      %v630 = vadd.f32 %v628, %v629
      %v631 = vrot.slane %v630, 2
      %v632 = vadd.f32 %v630, %v631
      %v633 = vrot.slane %v632, 1
      %v634 = vadd.f32 %v632, %v633
      %v635 = vmul.f32 %v511, %v511
      %v636 = vmul.f32 %v513, %v513
      %v637 = vmul.f32 %v516, %v516
      %v638 = vmul.f32 %v518, %v518
      %v639 = vmul.f32 %v521, %v521
      %v640 = vmul.f32 %v523, %v523
      %v641 = vmul.f32 %v526, %v526
      %v642 = vmul.f32 %v528, %v528
      %v643 = vsel %vm563, %v635, 0.0
      %v644 = vsel %vm563, %v636, 0.0
      %v645 = vadd.f32 %v643, %v644
      %v646 = vsel %vm563, %v637, 0.0
      %v647 = vadd.f32 %v645, %v646
      %v648 = vsel %vm563, %v638, 0.0
      %v649 = vadd.f32 %v647, %v648
      %v650 = vsel %vm563, %v639, 0.0
      %v651 = vadd.f32 %v649, %v650
      %v652 = vsel %vm563, %v640, 0.0
      %v653 = vadd.f32 %v651, %v652
      %v654 = vsel %vm563, %v641, 0.0
      %v655 = vadd.f32 %v653, %v654
      %v656 = vsel %vm563, %v642, 0.0
      %v657 = vadd.f32 %v655, %v656
      %v658 = vrot.slane %v657, 4
      %v659 = vadd.f32 %v657, %v658
      %v660 = vrot.slane %v659, 2
      %v661 = vadd.f32 %v659, %v660
      %v662 = vrot.slane %v661, 1
      %v663 = vadd.f32 %v661, %v662
      %vm664 = vcmask 1040384
      %v665 = vsel %vm664, %v584, %v613
      %v666 = vsel %vm497, %v665, %v634
      %vm667 = vcmask 1042432
      %v668 = vsel %vm667, %v666, %v663
      %669 = vst.msk [vmem:[%s354] sm:$0xf] %vm538, %v668
      %s670 = smul.u32 8, %s20
      %p671 = scmp.lt.s32.totalorder %s670, 15
      %s672 = scalar_select %p671, %s670, 15
      %s673 = smul.addr %s672, 4
      %s674 = scalar_lea.vmem %s6, %s673
      %s675 = smul.u32 8, %s20
      %p676 = scmp.lt.s32.totalorder %s675, 15
      %s677 = scalar_select %p676, %s675, 15
      %s678 = smul.addr %s677, 4
      %s679 = scalar_lea.vmem %s7, %s678
      %p680 = scmp.lt.s32.totalorder %s20, 1
      %s681 = scalar_select %p680, %s20, 1
      %s682 = smul.addr %s681, 4
      %s683 = scalar_lea.vmem %s8, %s682
      // Predicated region
      $region45: #{resid_block.6} parent=43 // pred_check
        %p684 = pneg %p174
      $region46: #{resid_block.6} parent=43 // pred_check_branch
        %686 = sbr.rel (%p684) target = $region48
      $region47: #{resid_block.6} parent=43 // pred_region
        %s687 = smul.u32 8, %s20
      $region48: #{resid_block.6} parent=43 // pred_fallthru
        _
      // Predicated region
      $region49: #{resid_block.6} parent=43 // pred_check
        %p688 = pneg %p200
      $region50: #{resid_block.6} parent=43 // pred_check_branch
        %690 = sbr.rel (%p688) target = $region52
      $region51: #{resid_block.6} parent=43 // pred_region
        %s691 = smul.u32 8, %s20
      $region52: #{resid_block.6} parent=43 // pred_fallthru
        _
      // Predicated region
      $region53: #{resid_block.6} parent=43 // pred_check
        %p692 = pneg %p226
      $region54: #{resid_block.6} parent=43 // pred_check_branch
        %694 = sbr.rel (%p692) target = $region56
      $region55: #{resid_block.6} parent=43 // pred_region
        _
      $region56: #{resid_block.6} parent=43 // pred_fallthru
        _
    $region44: #{resid_block.6} parent=5 // pred_fallthru
      _
    %p695 = scmp.le.s32.totalorder 2, %s15
    // Predicated region
    $region57: #{resid_block.6} parent=5 // pred_check
      %p696 = pneg %p695
    $region58: #{resid_block.6} parent=5 // pred_check_branch
      %698 = sbr.rel (%p696) target = $region60
    $region59: #{resid_block.6} parent=5 // pred_region
      %s699 = ssub.s32 %s15, 2
      // Predicated region
      $region61: #{resid_block.6} parent=59 // pred_check
        %p700 = pneg %p180
      $region62: #{resid_block.6} parent=59 // pred_check_branch
        %702 = sbr.rel (%p700) target = $region64
      $region63: #{resid_block.6} parent=59 // pred_region
        %s703 = smul.u32 8, %s21
        %p704 = scmp.lt.s32.totalorder %s703, 15
        %s705 = scalar_select %p704, %s703, 15
        %s706 = smul.addr %s705, 4
        %s707 = scalar_lea.vmem %s6, %s706
      $region64: #{resid_block.6} parent=59 // pred_fallthru
        _
      // Predicated region
      $region65: #{resid_block.6} parent=59 // pred_check
        %p708 = pneg %p206
      $region66: #{resid_block.6} parent=59 // pred_check_branch
        %710 = sbr.rel (%p708) target = $region68
      $region67: #{resid_block.6} parent=59 // pred_region
        %s711 = smul.u32 8, %s21
        %p712 = scmp.lt.s32.totalorder %s711, 15
        %s713 = scalar_select %p712, %s711, 15
        %s714 = smul.addr %s713, 4
        %s715 = scalar_lea.vmem %s7, %s714
      $region68: #{resid_block.6} parent=59 // pred_fallthru
        _
      // Predicated region
      $region69: #{resid_block.6} parent=59 // pred_check
        %p716 = pneg %p232
      $region70: #{resid_block.6} parent=59 // pred_check_branch
        %718 = sbr.rel (%p716) target = $region72
      $region71: #{resid_block.6} parent=59 // pred_region
        %p719 = scmp.lt.s32.totalorder %s21, 1
        %s720 = scalar_select %p719, %s21, 1
        %s721 = smul.addr %s720, 4
        %s722 = scalar_lea.vmem %s8, %s721
      $region72: #{resid_block.6} parent=59 // pred_fallthru
        _
    $region60: #{resid_block.6} parent=5 // pred_fallthru
      _
  $region6: #{resid_block.6} parent=0 // loop_footer
    %s19 = sadd.s32 1, %s15
  $region7: #{resid_block.6} parent=0 // loop_footer_branch
    %14 = sbr.rel target = $region3
  $region8: #{resid_block.6} parent=0 // loop_exit
    _

// kernel: resid_block.5
$region0: #{resid_block.5}
  #allocation0 [shape = 'u32[]', space=smem, size = 0x4, offset = 0x4, fixed_abs, tag = 'smem constant byte address 0x4 - core index']
  #allocation1 [shape = 'u32[72,128]{1,0:T(1,128)}', space=vmem, size = 0x9000, scoped, tag = 'internal scratch']
  #allocation2 [shape = 'f32[64,8]{1,0:T(8,128)}', space=vmem, size = 0x8000, scoped, tag = 'scratch operand']
  %s0 = inlined_call_operand.vmem [shape: bf16[2,9,9,8], index: 0, kind: input, shape index: {}]
  %s1 = inlined_call_operand.vmem [shape: bf16[2,9,9,8], index: 1, kind: input, shape index: {}]
  %s2 = inlined_call_operand.vmem [shape: bf16[2,9,9,8], index: 2, kind: input, shape index: {}]
  %s3 = inlined_call_operand.vmem [shape: bf16[2,9,9,8], index: 3, kind: input, shape index: {}]
  %s4 = inlined_call_operand.vmem [shape: f32[1,8], index: 4, kind: input, shape index: {}]
  %s5 = inlined_call_operand.vmem [shape: f32[1,8], index: 5, kind: input, shape index: {}]
  %s6 = inlined_call_operand.vmem [shape: bf16[3,24,8], index: 6, kind: input, shape index: {}]
  %s7 = inlined_call_operand.vmem [shape: bf16[2,8,8,8], index: 7, kind: output, shape index: {0}]
  %s8 = inlined_call_operand.vmem [shape: f32[2,2,8], index: 8, kind: output, shape index: {1}]
  %9 = xla_tuple %s7, %s8
  %s10 = sld [smem:[#allocation0]]
  $region69: #{resid_block.5} parent=0
    _
  %s12 = ssub.s32 1, %s10
  %s13 = scalar_select 0, %s12, %s10
  loop: start=0, step=1, limit=4
  $region2: #{resid_block.5} parent=0 // loop_pre_header
    _
  $region3: #{resid_block.5} parent=0 // loop_header
    %s15 = sphi 0, %s19
    %p16 = scmp.ge.s32.totalorder %s15, 4
    %s25 = sphi 0, %s27
    %s28 = sphi 0, %s25
    %s29 = sphi 0, %s28
    %s45 = sphi 0, %s29
    %s51 = sphi 0, %s53
    %s54 = sphi 0, %s51
    %s55 = sphi 0, %s54
    %s71 = sphi 0, %s55
    %s77 = sphi 0, %s79
    %s80 = sphi 0, %s77
    %s81 = sphi 0, %s80
    %s97 = sphi 0, %s81
    %s103 = sphi 0, %s105
    %s106 = sphi 0, %s103
    %s107 = sphi 0, %s106
    %s123 = sphi 0, %s107
    %s127 = sphi 0, %s127
    %s129 = sphi 0, %s127
    %s130 = sphi 0, %s129
    %s144 = sphi 0, %s130
    %s148 = sphi 0, %s148
    %s150 = sphi 0, %s148
    %s151 = sphi 0, %s150
    %s165 = sphi 0, %s151
    %s169 = sphi 0, %s169
    %s171 = sphi 0, %s169
    %s172 = sphi 0, %s171
    %s186 = sphi 0, %s172
    %s192 = sphi 0, %s194
    %s195 = sphi 0, %s192
    %s196 = sphi 0, %s195
    %s212 = sphi 0, %s196
    %s218 = sphi 0, %s220
    %s221 = sphi 0, %s218
    %s222 = sphi 0, %s221
    %s238 = sphi 0, %s222
  $region4: #{resid_block.5} parent=0 // loop_header_branch
    %18 = sbr.rel (%p16) target = $region8
  $region5: #{resid_block.5} parent=0 // loop_body
    %s20 = ssub.s32 %s15, 1
    %s21 = ssub.s32 %s15, 2
    %s22 = sadd.s32 %s15, 1
    %s23 = ssub.s32 %s15, %s22
    %p24 = scmp.eq.s32.totalorder %s23, 0
    %s26 = sadd.s32 %s25, 1
    %s27 = scalar_select %p24, %s25, %s26
    %p30 = pneg %p24
    %p31 = scmp.eq.s32.totalorder %s15, 1
    %p32 = por %p30, %p31
    %p33 = scmp.ne.s32.totalorder %s25, %s28
    %p34 = scmp.eq.s32.totalorder %s15, 0
    %p35 = por %p33, %p34
    %p36 = scmp.ne.s32.totalorder %s25, %s28
    %p37 = scmp.eq.s32.totalorder %s20, 1
    %p38 = por %p36, %p37
    %p39 = scmp.ne.s32.totalorder %s28, %s29
    %p40 = scmp.eq.s32.totalorder %s20, 0
    %p41 = por %p39, %p40
    %p42 = scmp.ne.s32.totalorder %s28, %s29
    %p43 = scmp.eq.s32.totalorder %s21, 1
    %p44 = por %p42, %p43
    %p46 = scmp.ne.s32.totalorder %s29, %s45
    %p47 = scmp.eq.s32.totalorder %s21, 0
    %p48 = por %p46, %p47
    %s49 = ssub.s32 %s15, %s22
    %p50 = scmp.eq.s32.totalorder %s49, 0
    %s52 = sadd.s32 %s51, 1
    %s53 = scalar_select %p50, %s51, %s52
    %p56 = pneg %p50
    %p57 = scmp.eq.s32.totalorder %s15, 1
    %p58 = por %p56, %p57
    %p59 = scmp.ne.s32.totalorder %s51, %s54
    %p60 = scmp.eq.s32.totalorder %s15, 0
    %p61 = por %p59, %p60
    %p62 = scmp.ne.s32.totalorder %s51, %s54
    %p63 = scmp.eq.s32.totalorder %s20, 1
    %p64 = por %p62, %p63
    %p65 = scmp.ne.s32.totalorder %s54, %s55
    %p66 = scmp.eq.s32.totalorder %s20, 0
    %p67 = por %p65, %p66
    %p68 = scmp.ne.s32.totalorder %s54, %s55
    %p69 = scmp.eq.s32.totalorder %s21, 1
    %p70 = por %p68, %p69
    %p72 = scmp.ne.s32.totalorder %s55, %s71
    %p73 = scmp.eq.s32.totalorder %s21, 0
    %p74 = por %p72, %p73
    %s75 = ssub.s32 %s15, %s22
    %p76 = scmp.eq.s32.totalorder %s75, 0
    %s78 = sadd.s32 %s77, 1
    %s79 = scalar_select %p76, %s77, %s78
    %p82 = pneg %p76
    %p83 = scmp.eq.s32.totalorder %s15, 1
    %p84 = por %p82, %p83
    %p85 = scmp.ne.s32.totalorder %s77, %s80
    %p86 = scmp.eq.s32.totalorder %s15, 0
    %p87 = por %p85, %p86
    %p88 = scmp.ne.s32.totalorder %s77, %s80
    %p89 = scmp.eq.s32.totalorder %s20, 1
    %p90 = por %p88, %p89
    %p91 = scmp.ne.s32.totalorder %s80, %s81
    %p92 = scmp.eq.s32.totalorder %s20, 0
    %p93 = por %p91, %p92
    %p94 = scmp.ne.s32.totalorder %s80, %s81
    %p95 = scmp.eq.s32.totalorder %s21, 1
    %p96 = por %p94, %p95
    %p98 = scmp.ne.s32.totalorder %s81, %s97
    %p99 = scmp.eq.s32.totalorder %s21, 0
    %p100 = por %p98, %p99
    %s101 = ssub.s32 %s15, %s22
    %p102 = scmp.eq.s32.totalorder %s101, 0
    %s104 = sadd.s32 %s103, 1
    %s105 = scalar_select %p102, %s103, %s104
    %p108 = pneg %p102
    %p109 = scmp.eq.s32.totalorder %s15, 1
    %p110 = por %p108, %p109
    %p111 = scmp.ne.s32.totalorder %s103, %s106
    %p112 = scmp.eq.s32.totalorder %s15, 0
    %p113 = por %p111, %p112
    %p114 = scmp.ne.s32.totalorder %s103, %s106
    %p115 = scmp.eq.s32.totalorder %s20, 1
    %p116 = por %p114, %p115
    %p117 = scmp.ne.s32.totalorder %s106, %s107
    %p118 = scmp.eq.s32.totalorder %s20, 0
    %p119 = por %p117, %p118
    %p120 = scmp.ne.s32.totalorder %s106, %s107
    %p121 = scmp.eq.s32.totalorder %s21, 1
    %p122 = por %p120, %p121
    %p124 = scmp.ne.s32.totalorder %s107, %s123
    %p125 = scmp.eq.s32.totalorder %s21, 0
    %p126 = por %p124, %p125
    %s128 = sadd.s32 %s127, 1
    %p131 = scmp.eq.s32.totalorder %s15, 1
    %p132 = scmp.ne.s32.totalorder %s127, %s129
    %p133 = scmp.eq.s32.totalorder %s15, 0
    %p134 = por %p132, %p133
    %p135 = scmp.ne.s32.totalorder %s127, %s129
    %p136 = scmp.eq.s32.totalorder %s20, 1
    %p137 = por %p135, %p136
    %p138 = scmp.ne.s32.totalorder %s129, %s130
    %p139 = scmp.eq.s32.totalorder %s20, 0
    %p140 = por %p138, %p139
    %p141 = scmp.ne.s32.totalorder %s129, %s130
    %p142 = scmp.eq.s32.totalorder %s21, 1
    %p143 = por %p141, %p142
    %p145 = scmp.ne.s32.totalorder %s130, %s144
    %p146 = scmp.eq.s32.totalorder %s21, 0
    %p147 = por %p145, %p146
    %s149 = sadd.s32 %s148, 1
    %p152 = scmp.eq.s32.totalorder %s15, 1
    %p153 = scmp.ne.s32.totalorder %s148, %s150
    %p154 = scmp.eq.s32.totalorder %s15, 0
    %p155 = por %p153, %p154
    %p156 = scmp.ne.s32.totalorder %s148, %s150
    %p157 = scmp.eq.s32.totalorder %s20, 1
    %p158 = por %p156, %p157
    %p159 = scmp.ne.s32.totalorder %s150, %s151
    %p160 = scmp.eq.s32.totalorder %s20, 0
    %p161 = por %p159, %p160
    %p162 = scmp.ne.s32.totalorder %s150, %s151
    %p163 = scmp.eq.s32.totalorder %s21, 1
    %p164 = por %p162, %p163
    %p166 = scmp.ne.s32.totalorder %s151, %s165
    %p167 = scmp.eq.s32.totalorder %s21, 0
    %p168 = por %p166, %p167
    %s170 = sadd.s32 %s169, 1
    %p173 = scmp.eq.s32.totalorder %s15, 1
    %p174 = scmp.ne.s32.totalorder %s169, %s171
    %p175 = scmp.eq.s32.totalorder %s15, 0
    %p176 = por %p174, %p175
    %p177 = scmp.ne.s32.totalorder %s169, %s171
    %p178 = scmp.eq.s32.totalorder %s20, 1
    %p179 = por %p177, %p178
    %p180 = scmp.ne.s32.totalorder %s171, %s172
    %p181 = scmp.eq.s32.totalorder %s20, 0
    %p182 = por %p180, %p181
    %p183 = scmp.ne.s32.totalorder %s171, %s172
    %p184 = scmp.eq.s32.totalorder %s21, 1
    %p185 = por %p183, %p184
    %p187 = scmp.ne.s32.totalorder %s172, %s186
    %p188 = scmp.eq.s32.totalorder %s21, 0
    %p189 = por %p187, %p188
    %s190 = ssub.s32 %s15, %s22
    %p191 = scmp.eq.s32.totalorder %s190, 0
    %s193 = sadd.s32 %s192, 1
    %s194 = scalar_select %p191, %s192, %s193
    %p197 = pneg %p191
    %p198 = scmp.eq.s32.totalorder %s15, 1
    %p199 = por %p197, %p198
    %p200 = scmp.ne.s32.totalorder %s192, %s195
    %p201 = scmp.eq.s32.totalorder %s15, 0
    %p202 = por %p200, %p201
    %p203 = scmp.ne.s32.totalorder %s192, %s195
    %p204 = scmp.eq.s32.totalorder %s20, 1
    %p205 = por %p203, %p204
    %p206 = scmp.ne.s32.totalorder %s195, %s196
    %p207 = scmp.eq.s32.totalorder %s20, 0
    %p208 = por %p206, %p207
    %p209 = scmp.ne.s32.totalorder %s195, %s196
    %p210 = scmp.eq.s32.totalorder %s21, 1
    %p211 = por %p209, %p210
    %p213 = scmp.ne.s32.totalorder %s196, %s212
    %p214 = scmp.eq.s32.totalorder %s21, 0
    %p215 = por %p213, %p214
    %s216 = ssub.s32 %s15, %s22
    %p217 = scmp.eq.s32.totalorder %s216, 0
    %s219 = sadd.s32 %s218, 1
    %s220 = scalar_select %p217, %s218, %s219
    %p223 = pneg %p217
    %p224 = scmp.eq.s32.totalorder %s15, 1
    %p225 = por %p223, %p224
    %p226 = scmp.ne.s32.totalorder %s218, %s221
    %p227 = scmp.eq.s32.totalorder %s15, 0
    %p228 = por %p226, %p227
    %p229 = scmp.ne.s32.totalorder %s218, %s221
    %p230 = scmp.eq.s32.totalorder %s20, 1
    %p231 = por %p229, %p230
    %p232 = scmp.ne.s32.totalorder %s221, %s222
    %p233 = scmp.eq.s32.totalorder %s20, 0
    %p234 = por %p232, %p233
    %p235 = scmp.ne.s32.totalorder %s221, %s222
    %p236 = scmp.eq.s32.totalorder %s21, 1
    %p237 = por %p235, %p236
    %p239 = scmp.ne.s32.totalorder %s222, %s238
    %p240 = scmp.eq.s32.totalorder %s21, 0
    %p241 = por %p239, %p240
    %p242 = scmp.le.s32.totalorder 1, %s15
    %p243 = scmp.lt.s32.totalorder %s15, 3
    %p244 = pnand %p242, %p243
    %p245 = pneg %p244
    // Predicated region
    $region9: #{resid_block.5} parent=5 // pred_check
      _
    $region10: #{resid_block.5} parent=5 // pred_check_branch
      %247 = sbr.rel (%p244) target = $region12
    $region11: #{resid_block.5} parent=5 // pred_region
      %s248 = ssub.s32 %s15, 1
      // Predicated region
      $region13: #{resid_block.5} parent=11 // pred_check
        %p249 = pneg %p140
      $region14: #{resid_block.5} parent=11 // pred_check_branch
        %251 = sbr.rel (%p249) target = $region16
      $region15: #{resid_block.5} parent=11 // pred_region
        _
      $region16: #{resid_block.5} parent=11 // pred_fallthru
        _
      // Predicated region
      $region17: #{resid_block.5} parent=11 // pred_check
        %p252 = pneg %p161
      $region18: #{resid_block.5} parent=11 // pred_check_branch
        %254 = sbr.rel (%p252) target = $region20
      $region19: #{resid_block.5} parent=11 // pred_region
        _
      $region20: #{resid_block.5} parent=11 // pred_fallthru
        _
      // Predicated region
      $region21: #{resid_block.5} parent=11 // pred_check
        %p255 = pneg %p182
      $region22: #{resid_block.5} parent=11 // pred_check_branch
        %257 = sbr.rel (%p255) target = $region24
      $region23: #{resid_block.5} parent=11 // pred_region
        _
      $region24: #{resid_block.5} parent=11 // pred_fallthru
        _
    $region12: #{resid_block.5} parent=5 // pred_fallthru
      _
    %p258 = scmp.lt.s32.totalorder %s15, 2
    // Predicated region
    $region25: #{resid_block.5} parent=5 // pred_check
      %p259 = pneg %p258
    $region26: #{resid_block.5} parent=5 // pred_check_branch
      %261 = sbr.rel (%p259) target = $region28
    $region27: #{resid_block.5} parent=5 // pred_region
      // Predicated region
      $region29: #{resid_block.5} parent=27 // pred_check
        %p262 = pneg %p35
      $region30: #{resid_block.5} parent=27 // pred_check_branch
        %264 = sbr.rel (%p262) target = $region32
      $region31: #{resid_block.5} parent=27 // pred_region
        %p265 = scmp.lt.s32.totalorder %s15, 1
        %s266 = scalar_select %p265, %s15, 1
        %s267 = smul.addr %s266, 18
        %s268 = smul.addr %s267, 4
        %s269 = scalar_lea.vmem %s0, %s268
      $region32: #{resid_block.5} parent=27 // pred_fallthru
        _
      // Predicated region
      $region33: #{resid_block.5} parent=27 // pred_check
        %p270 = pneg %p61
      $region34: #{resid_block.5} parent=27 // pred_check_branch
        %272 = sbr.rel (%p270) target = $region36
      $region35: #{resid_block.5} parent=27 // pred_region
        %p273 = scmp.lt.s32.totalorder %s15, 1
        %s274 = scalar_select %p273, %s15, 1
        %s275 = smul.addr %s274, 18
        %s276 = smul.addr %s275, 4
        %s277 = scalar_lea.vmem %s1, %s276
      $region36: #{resid_block.5} parent=27 // pred_fallthru
        _
      // Predicated region
      $region37: #{resid_block.5} parent=27 // pred_check
        %p278 = pneg %p87
      $region38: #{resid_block.5} parent=27 // pred_check_branch
        %280 = sbr.rel (%p278) target = $region40
      $region39: #{resid_block.5} parent=27 // pred_region
        %p281 = scmp.lt.s32.totalorder %s15, 1
        %s282 = scalar_select %p281, %s15, 1
        %s283 = smul.addr %s282, 18
        %s284 = smul.addr %s283, 4
        %s285 = scalar_lea.vmem %s2, %s284
      $region40: #{resid_block.5} parent=27 // pred_fallthru
        _
      // Predicated region
      $region41: #{resid_block.5} parent=27 // pred_check
        %p286 = pneg %p113
      $region42: #{resid_block.5} parent=27 // pred_check_branch
        %288 = sbr.rel (%p286) target = $region44
      $region43: #{resid_block.5} parent=27 // pred_region
        %p289 = scmp.lt.s32.totalorder %s15, 1
        %s290 = scalar_select %p289, %s15, 1
        %s291 = smul.addr %s290, 18
        %s292 = smul.addr %s291, 4
        %s293 = scalar_lea.vmem %s3, %s292
      $region44: #{resid_block.5} parent=27 // pred_fallthru
        _
    $region28: #{resid_block.5} parent=5 // pred_fallthru
      _
    %p294 = scmp.le.s32.totalorder 1, %s15
    %p295 = scmp.lt.s32.totalorder %s15, 3
    %p296 = pnand %p294, %p295
    %p297 = pneg %p296
    // Predicated region
    $region45: #{resid_block.5} parent=5 // pred_check
      _
    $region46: #{resid_block.5} parent=5 // pred_check_branch
      %299 = sbr.rel (%p296) target = $region48
    $region47: #{resid_block.5} parent=5 // pred_region
      %s300 = ssub.s32 %s15, 1
      %p301 = scmp.lt.s32.totalorder %s20, 1
      %s302 = scalar_select %p301, %s20, 1
      %s303 = smul.addr %s302, 18
      %s304 = smul.addr %s303, 4
      %s305 = scalar_lea.vmem %s0, %s304
      %p306 = pneg %p41
      %p307 = pneg %p38
      %p308 = scmp.lt.s32.totalorder %s20, 1
      %s309 = scalar_select %p308, %s20, 1
      %s310 = smul.addr %s309, 18
      %s311 = smul.addr %s310, 4
      %s312 = scalar_lea.vmem %s1, %s311
      %p313 = pneg %p67
      %p314 = pneg %p64
      %p315 = scmp.lt.s32.totalorder %s20, 1
      %s316 = scalar_select %p315, %s20, 1
      %s317 = smul.addr %s316, 18
      %s318 = smul.addr %s317, 4
      %s319 = scalar_lea.vmem %s2, %s318
      %p320 = pneg %p93
      %p321 = pneg %p90
      %p322 = scmp.lt.s32.totalorder %s20, 1
      %s323 = scalar_select %p322, %s20, 1
      %s324 = smul.addr %s323, 18
      %s325 = smul.addr %s324, 4
      %s326 = scalar_lea.vmem %s3, %s325
      %p327 = pneg %p119
      %p328 = pneg %p116
      %p329 = pneg %p140
      %p330 = pneg %p137
      %p331 = pneg %p161
      %p332 = pneg %p158
      %p333 = pneg %p182
      %p334 = pneg %p179
      %p335 = pneg %p208
      %p336 = pneg %p205
      %p337 = scmp.lt.s32.totalorder %s20, 1
      %s338 = scalar_select %p337, %s20, 1
      %s339 = smul.addr %s338, 8
      %s340 = smul.addr %s339, 4
      %s341 = scalar_lea.vmem %s7, %s340
      %p342 = pneg %p234
      %p343 = pneg %p231
      %p344 = scmp.lt.s32.totalorder %s20, 1
      %s345 = scalar_select %p344, %s20, 1
      %s346 = smul.addr %s345, 2
      %s347 = scalar_lea.vmem %s8, %s346
      %p348 = scmp.lt.s32.totalorder %s20, 1
      %s349 = scalar_select %p348, %s20, 1
      %s350 = smul.addr %s349, 18
      %s351 = smul.addr %s350, 4
      %s352 = scalar_lea.vmem %s0, %s351
      %p353 = scmp.lt.s32.totalorder %s20, 1
      %s354 = scalar_select %p353, %s20, 1
      %s355 = smul.addr %s354, 18
      %s356 = smul.addr %s355, 4
      %s357 = scalar_lea.vmem %s1, %s356
      %p358 = scmp.lt.s32.totalorder %s20, 1
      %s359 = scalar_select %p358, %s20, 1
      %s360 = smul.addr %s359, 18
      %s361 = smul.addr %s360, 4
      %s362 = scalar_lea.vmem %s2, %s361
      %p363 = scmp.lt.s32.totalorder %s20, 1
      %s364 = scalar_select %p363, %s20, 1
      %s365 = smul.addr %s364, 18
      %s366 = smul.addr %s365, 4
      %s367 = scalar_lea.vmem %s3, %s366
      %p368 = scmp.lt.s32.totalorder %s20, 1
      %s369 = scalar_select %p368, %s20, 1
      %s370 = smul.addr %s369, 8
      %s371 = smul.addr %s370, 4
      %s372 = scalar_lea.vmem %s7, %s371
      %p373 = scmp.lt.s32.totalorder %s20, 1
      %s374 = scalar_select %p373, %s20, 1
      %s375 = smul.addr %s374, 2
      %s376 = scalar_lea.vmem %s8, %s375
      %v378 = vld [vmem:[%s4] sm:$0x1]
      %v379 = vld [vmem:[%s5] sm:$0x1]
      %v380 = vld [vmem:[%s352] sm:$0xf]
      %v381 = vld [vmem:[%s352 + $0x4] sm:$0x1]
      %v382 = vld [vmem:[%s352 + $0x8] sm:$0xf]
      %v383 = vld [vmem:[%s352 + $0xc] sm:$0x1]
      %v384 = vld [vmem:[%s352 + $0x10] sm:$0xf]
      %v385 = vld [vmem:[%s352 + $0x14] sm:$0x1]
      %v386 = vld [vmem:[%s352 + $0x18] sm:$0xf]
      %v387 = vld [vmem:[%s352 + $0x1c] sm:$0x1]
      %v388 = vld [vmem:[%s352 + $0x20] sm:$0xf]
      %v389 = vld [vmem:[%s352 + $0x24] sm:$0x1]
      %v390 = vld [vmem:[%s352 + $0x28] sm:$0xf]
      %v391 = vld [vmem:[%s352 + $0x2c] sm:$0x1]
      %v392 = vld [vmem:[%s352 + $0x30] sm:$0xf]
      %v393 = vld [vmem:[%s352 + $0x34] sm:$0x1]
      %v394 = vld [vmem:[%s352 + $0x38] sm:$0xf]
      %v395 = vld [vmem:[%s352 + $0x3c] sm:$0x1]
      %v396 = vld [vmem:[%s352 + $0x40] sm:$0xf]
      %v397 = vld [vmem:[%s352 + $0x44] sm:$0x1]
      %v398 = vunpack.c.l.bf16 %v380
      %v399 = vunpack.c.l.bf16 %v381
      %v400 = vunpack.c.l.bf16 %v382
      %v401 = vunpack.c.l.bf16 %v383
      %v402 = vunpack.c.l.bf16 %v384
      %v403 = vunpack.c.l.bf16 %v385
      %v404 = vunpack.c.l.bf16 %v386
      %v405 = vunpack.c.l.bf16 %v387
      %v406 = vunpack.c.l.bf16 %v388
      %v407 = vunpack.c.l.bf16 %v389
      %v408 = vunpack.c.l.bf16 %v390
      %v409 = vunpack.c.l.bf16 %v391
      %v410 = vunpack.c.l.bf16 %v392
      %v411 = vunpack.c.l.bf16 %v393
      %v412 = vunpack.c.l.bf16 %v394
      %v413 = vunpack.c.l.bf16 %v395
      %v414 = vunpack.c.l.bf16 %v396
      %v415 = vunpack.c.l.bf16 %v397
      %v417 = vperm.slane %v378, 0
      %v419 = vmul.f32 %v398, %v417
      %v420 = vmul.f32 %v399, %v417
      %v421 = vmul.f32 %v400, %v417
      %v422 = vmul.f32 %v401, %v417
      %v423 = vmul.f32 %v402, %v417
      %v424 = vmul.f32 %v403, %v417
      %v425 = vmul.f32 %v404, %v417
      %v426 = vmul.f32 %v405, %v417
      %v427 = vmul.f32 %v406, %v417
      %v428 = vmul.f32 %v407, %v417
      %v429 = vmul.f32 %v408, %v417
      %v430 = vmul.f32 %v409, %v417
      %v431 = vmul.f32 %v410, %v417
      %v432 = vmul.f32 %v411, %v417
      %v433 = vmul.f32 %v412, %v417
      %v434 = vmul.f32 %v413, %v417
      %v435 = vmul.f32 %v414, %v417
      %v436 = vmul.f32 %v415, %v417
      %v438 = vperm.slane %v379, 0
      %v440 = vadd.f32 %v419, %v438
      %v441 = vadd.f32 %v420, %v438
      %v442 = vadd.f32 %v421, %v438
      %v443 = vadd.f32 %v422, %v438
      %v444 = vadd.f32 %v423, %v438
      %v445 = vadd.f32 %v424, %v438
      %v446 = vadd.f32 %v425, %v438
      %v447 = vadd.f32 %v426, %v438
      %v448 = vadd.f32 %v427, %v438
      %v449 = vadd.f32 %v428, %v438
      %v450 = vadd.f32 %v429, %v438
      %v451 = vadd.f32 %v430, %v438
      %v452 = vadd.f32 %v431, %v438
      %v453 = vadd.f32 %v432, %v438
      %v454 = vadd.f32 %v433, %v438
      %v455 = vadd.f32 %v434, %v438
      %v456 = vadd.f32 %v435, %v438
      %v457 = vadd.f32 %v436, %v438
      %v458 = vmax.f32 %v440, 0.0
      %v459 = vmax.f32 %v441, 0.0
      %v460 = vmax.f32 %v442, 0.0
      %v461 = vmax.f32 %v443, 0.0
      %v462 = vmax.f32 %v444, 0.0
      %v463 = vmax.f32 %v445, 0.0
      %v464 = vmax.f32 %v446, 0.0
      %v465 = vmax.f32 %v447, 0.0
      %v466 = vmax.f32 %v448, 0.0
      %v467 = vmax.f32 %v449, 0.0
      %v468 = vmax.f32 %v450, 0.0
      %v469 = vmax.f32 %v451, 0.0
      %v470 = vmax.f32 %v452, 0.0
      %v471 = vmax.f32 %v453, 0.0
      %v472 = vmax.f32 %v454, 0.0
      %v473 = vmax.f32 %v455, 0.0
      %v474 = vmax.f32 %v456, 0.0
      %v475 = vmax.f32 %v457, 0.0
      %v476 = vlaneseq
      %v477 = vshrl.u32 %v476, 7
      %v478 = vadd.s32 %v477, 8
      %v479 = vmul.u32 %v477, 2
      %v480 = vmul.u32 %v478, 2
      %vm481 = vcmp.ge.s32.totalorder %v479, 1
      %vm482 = vcmp.ge.s32.totalorder %v480, 1
      %vm483 = vmand 0, %vm481
      %vm484 = vmand 0, %vm482
      %vm485 = vmand 1, %vm481
      %vm486 = vmand 1, %vm482
      %vm487 = vcmp.le.s32.totalorder %v479, 16
      %vm488 = vcmp.le.s32.totalorder %v480, 16
      %vm489 = vmand %vm483, %vm487
      %vm490 = vmand %vm484, %vm488
      %vm491 = vmand %vm485, %vm487
      %vm492 = vmand %vm486, %vm488
      %v493 = vsel %vm489, 1, 0
      %v494 = vsel %vm490, 1, 0
      %v495 = vsel %vm491, 1, 0
      %v496 = vsel %vm492, 1, 0
      %vm497 = vcmp.eq.s32.totalorder %v493, 1
      %vm498 = vcmp.eq.s32.totalorder %v494, 1
      %vm499 = vcmp.eq.s32.totalorder %v495, 1
      %vm500 = vcmp.eq.s32.totalorder %v496, 1
      %v501 = vsel %vm497, %v458, 0.0
      %v502 = vsel %vm498, %v459, 0.0
      %v503 = vsel %vm499, %v460, 0.0
      %v504 = vsel %vm500, %v461, 0.0
      %v505 = vsel %vm499, %v462, 0.0
      %v506 = vsel %vm500, %v463, 0.0
      %v507 = vsel %vm499, %v464, 0.0
      %v508 = vsel %vm500, %v465, 0.0
      %v509 = vsel %vm499, %v466, 0.0
      %v510 = vsel %vm500, %v467, 0.0
      %v511 = vsel %vm499, %v468, 0.0
      %v512 = vsel %vm500, %v469, 0.0
      %v513 = vsel %vm499, %v470, 0.0
      %v514 = vsel %vm500, %v471, 0.0
      %v515 = vsel %vm499, %v472, 0.0
      %v516 = vsel %vm500, %v473, 0.0
      %v517 = vsel %vm499, %v474, 0.0
      %v518 = vsel %vm500, %v475, 0.0
      %v519 = vpack.c.bf16 %v501, %v501
      %v520 = vpack.c.bf16 %v502, %v502
      %v521 = vpack.c.bf16 %v503, %v503
      %v522 = vpack.c.bf16 %v504, %v504
      %v523 = vpack.c.bf16 %v505, %v505
      %v524 = vpack.c.bf16 %v506, %v506
      %v525 = vpack.c.bf16 %v507, %v507
      %v526 = vpack.c.bf16 %v508, %v508
      %v527 = vpack.c.bf16 %v509, %v509
      %v528 = vpack.c.bf16 %v510, %v510
      %v529 = vpack.c.bf16 %v511, %v511
      %v530 = vpack.c.bf16 %v512, %v512
      %v531 = vpack.c.bf16 %v513, %v513
      %v532 = vpack.c.bf16 %v514, %v514
      %v533 = vpack.c.bf16 %v515, %v515
      %v534 = vpack.c.bf16 %v516, %v516
      %v535 = vpack.c.bf16 %v517, %v517
      %v536 = vpack.c.bf16 %v518, %v518
      %v537 = vld [vmem:[%s357] sm:$0xf]
      %v538 = vld [vmem:[%s357 + $0x8] sm:$0xf]
      %v539 = vld [vmem:[%s357 + $0x10] sm:$0xf]
      %v540 = vld [vmem:[%s357 + $0x18] sm:$0xf]
      %v541 = vld [vmem:[%s357 + $0x20] sm:$0xf]
      %v542 = vld [vmem:[%s357 + $0x28] sm:$0xf]
      %v543 = vld [vmem:[%s357 + $0x30] sm:$0xf]
      %v544 = vld [vmem:[%s357 + $0x38] sm:$0xf]
      %v545 = vld [vmem:[%s357 + $0x40] sm:$0xf]
      %v546 = vunpack.c.l.bf16 %v537
      %v547 = vunpack.c.l.bf16 %v538
      %v548 = vunpack.c.l.bf16 %v539
      %v549 = vunpack.c.l.bf16 %v540
      %v550 = vunpack.c.l.bf16 %v541
      %v551 = vunpack.c.l.bf16 %v542
      %v552 = vunpack.c.l.bf16 %v543
      %v553 = vunpack.c.l.bf16 %v544
      %v554 = vunpack.c.l.bf16 %v545
      %v555 = vmul.f32 %v546, %v417
      %v556 = vmul.f32 %v547, %v417
      %v557 = vmul.f32 %v548, %v417
      %v558 = vmul.f32 %v549, %v417
      %v559 = vmul.f32 %v550, %v417
      %v560 = vmul.f32 %v551, %v417
      %v561 = vmul.f32 %v552, %v417
      %v562 = vmul.f32 %v553, %v417
      %v563 = vmul.f32 %v554, %v417
      %v564 = vadd.f32 %v555, %v438
      %v565 = vadd.f32 %v556, %v438
      %v566 = vadd.f32 %v557, %v438
      %v567 = vadd.f32 %v558, %v438
      %v568 = vadd.f32 %v559, %v438
      %v569 = vadd.f32 %v560, %v438
      %v570 = vadd.f32 %v561, %v438
      %v571 = vadd.f32 %v562, %v438
      %v572 = vadd.f32 %v563, %v438
      %v573 = vmax.f32 %v564, 0.0
      %v574 = vmax.f32 %v565, 0.0
      %v575 = vmax.f32 %v566, 0.0
      %v576 = vmax.f32 %v567, 0.0
      %v577 = vmax.f32 %v568, 0.0
      %v578 = vmax.f32 %v569, 0.0
      %v579 = vmax.f32 %v570, 0.0
      %v580 = vmax.f32 %v571, 0.0
      %v581 = vmax.f32 %v572, 0.0
      %v582 = vadd.s32 %v479, 1
      %vm583 = vcmp.ge.s32.totalorder %v582, 1
      %vm584 = vmand 0, %vm583
      %vm585 = vmand 1, %vm583
      %vm586 = vcmp.le.s32.totalorder %v582, 16
      %vm587 = vmand %vm584, %vm586
      %vm588 = vmand %vm585, %vm586
      %v589 = vsel %vm587, 1, 0
      %v590 = vsel %vm588, 1, 0
      %vm591 = vcmp.eq.s32.totalorder %v589, 1
      %vm592 = vcmp.eq.s32.totalorder %v590, 1
      %v593 = vsel %vm591, %v573, 0.0
      %v594 = vsel %vm592, %v574, 0.0
      %v595 = vsel %vm592, %v575, 0.0
      %v596 = vsel %vm592, %v576, 0.0
      %v597 = vsel %vm592, %v577, 0.0
      %v598 = vsel %vm592, %v578, 0.0
      %v599 = vsel %vm592, %v579, 0.0
      %v600 = vsel %vm592, %v580, 0.0
      %v601 = vsel %vm592, %v581, 0.0
      %v602 = vpack.c.bf16 %v593, %v593
      %v603 = vpack.c.bf16 %v594, %v594
      %v604 = vpack.c.bf16 %v595, %v595
      %v605 = vpack.c.bf16 %v596, %v596
      %v606 = vpack.c.bf16 %v597, %v597
      %v607 = vpack.c.bf16 %v598, %v598
      %v608 = vpack.c.bf16 %v599, %v599
      %v609 = vpack.c.bf16 %v600, %v600
      %v610 = vpack.c.bf16 %v601, %v601
      %v611 = vld [vmem:[%s362] sm:$0xf]
      %v612 = vld [vmem:[%s362 + $0x4] sm:$0x1]
      %v613 = vld [vmem:[%s362 + $0x8] sm:$0xf]
      %v614 = vld [vmem:[%s362 + $0xc] sm:$0x1]
      %v615 = vld [vmem:[%s362 + $0x10] sm:$0xf]
      %v616 = vld [vmem:[%s362 + $0x14] sm:$0x1]
      %v617 = vld [vmem:[%s362 + $0x18] sm:$0xf]
      %v618 = vld [vmem:[%s362 + $0x1c] sm:$0x1]
      %v619 = vld [vmem:[%s362 + $0x20] sm:$0xf]
      %v620 = vld [vmem:[%s362 + $0x24] sm:$0x1]
      %v621 = vld [vmem:[%s362 + $0x28] sm:$0xf]
      %v622 = vld [vmem:[%s362 + $0x2c] sm:$0x1]
      %v623 = vld [vmem:[%s362 + $0x30] sm:$0xf]
      %v624 = vld [vmem:[%s362 + $0x34] sm:$0x1]
      %v625 = vld [vmem:[%s362 + $0x38] sm:$0xf]
      %v626 = vld [vmem:[%s362 + $0x3c] sm:$0x1]
      %v627 = vunpack.c.l.bf16 %v611
      %v628 = vunpack.c.l.bf16 %v612
      %v629 = vunpack.c.l.bf16 %v613
      %v630 = vunpack.c.l.bf16 %v614
      %v631 = vunpack.c.l.bf16 %v615
      %v632 = vunpack.c.l.bf16 %v616
      %v633 = vunpack.c.l.bf16 %v617
      %v634 = vunpack.c.l.bf16 %v618
      %v635 = vunpack.c.l.bf16 %v619
      %v636 = vunpack.c.l.bf16 %v620
      %v637 = vunpack.c.l.bf16 %v621
      %v638 = vunpack.c.l.bf16 %v622
      %v639 = vunpack.c.l.bf16 %v623
      %v640 = vunpack.c.l.bf16 %v624
      %v641 = vunpack.c.l.bf16 %v625
      %v642 = vunpack.c.l.bf16 %v626
      %v643 = vmul.f32 %v627, %v417
      %v644 = vmul.f32 %v628, %v417
      %v645 = vmul.f32 %v629, %v417
      %v646 = vmul.f32 %v630, %v417
      %v647 = vmul.f32 %v631, %v417
      %v648 = vmul.f32 %v632, %v417
      %v649 = vmul.f32 %v633, %v417
      %v650 = vmul.f32 %v634, %v417
      %v651 = vmul.f32 %v635, %v417
      %v652 = vmul.f32 %v636, %v417
      %v653 = vmul.f32 %v637, %v417
      %v654 = vmul.f32 %v638, %v417
      %v655 = vmul.f32 %v639, %v417
      %v656 = vmul.f32 %v640, %v417
      %v657 = vmul.f32 %v641, %v417
      %v658 = vmul.f32 %v642, %v417
      %v659 = vadd.f32 %v643, %v438
      %v660 = vadd.f32 %v644, %v438
      %v661 = vadd.f32 %v645, %v438
      %v662 = vadd.f32 %v646, %v438
      %v663 = vadd.f32 %v647, %v438
      %v664 = vadd.f32 %v648, %v438
      %v665 = vadd.f32 %v649, %v438
      %v666 = vadd.f32 %v650, %v438
      %v667 = vadd.f32 %v651, %v438
      %v668 = vadd.f32 %v652, %v438
      %v669 = vadd.f32 %v653, %v438
      %v670 = vadd.f32 %v654, %v438
      %v671 = vadd.f32 %v655, %v438
      %v672 = vadd.f32 %v656, %v438
      %v673 = vadd.f32 %v657, %v438
      %v674 = vadd.f32 %v658, %v438
      %v675 = vmax.f32 %v659, 0.0
      %v676 = vmax.f32 %v660, 0.0
      %v677 = vmax.f32 %v661, 0.0
      %v678 = vmax.f32 %v662, 0.0
      %v679 = vmax.f32 %v663, 0.0
      %v680 = vmax.f32 %v664, 0.0
      %v681 = vmax.f32 %v665, 0.0
      %v682 = vmax.f32 %v666, 0.0
      %v683 = vmax.f32 %v667, 0.0
      %v684 = vmax.f32 %v668, 0.0
      %v685 = vmax.f32 %v669, 0.0
      %v686 = vmax.f32 %v670, 0.0
      %v687 = vmax.f32 %v671, 0.0
      %v688 = vmax.f32 %v672, 0.0
      %v689 = vmax.f32 %v673, 0.0
      %v690 = vmax.f32 %v674, 0.0
      %v691 = vsel %vm499, %v675, 0.0
      %v692 = vsel %vm500, %v676, 0.0
      %v693 = vsel %vm499, %v677, 0.0
      %v694 = vsel %vm500, %v678, 0.0
      %v695 = vsel %vm499, %v679, 0.0
      %v696 = vsel %vm500, %v680, 0.0
      %v697 = vsel %vm499, %v681, 0.0
      %v698 = vsel %vm500, %v682, 0.0
      %v699 = vsel %vm499, %v683, 0.0
      %v700 = vsel %vm500, %v684, 0.0
      %v701 = vsel %vm499, %v685, 0.0
      %v702 = vsel %vm500, %v686, 0.0
      %v703 = vsel %vm499, %v687, 0.0
      %v704 = vsel %vm500, %v688, 0.0
      %v705 = vsel %vm499, %v689, 0.0
      %v706 = vsel %vm500, %v690, 0.0
      %v707 = vpack.c.bf16 %v691, %v691
      %v708 = vpack.c.bf16 %v692, %v692
      %v709 = vpack.c.bf16 %v693, %v693
      %v710 = vpack.c.bf16 %v694, %v694
      %v711 = vpack.c.bf16 %v695, %v695
      %v712 = vpack.c.bf16 %v696, %v696
      %v713 = vpack.c.bf16 %v697, %v697
      %v714 = vpack.c.bf16 %v698, %v698
      %v715 = vpack.c.bf16 %v699, %v699
      %v716 = vpack.c.bf16 %v700, %v700
      %v717 = vpack.c.bf16 %v701, %v701
      %v718 = vpack.c.bf16 %v702, %v702
      %v719 = vpack.c.bf16 %v703, %v703
      %v720 = vpack.c.bf16 %v704, %v704
      %v721 = vpack.c.bf16 %v705, %v705
      %v722 = vpack.c.bf16 %v706, %v706
      %v723 = vld [vmem:[%s367] sm:$0xf]
      %v724 = vld [vmem:[%s367 + $0x8] sm:$0xf]
      %v725 = vld [vmem:[%s367 + $0x10] sm:$0xf]
      %v726 = vld [vmem:[%s367 + $0x18] sm:$0xf]
      %v727 = vld [vmem:[%s367 + $0x20] sm:$0xf]
      %v728 = vld [vmem:[%s367 + $0x28] sm:$0xf]
      %v729 = vld [vmem:[%s367 + $0x30] sm:$0xf]
      %v730 = vld [vmem:[%s367 + $0x38] sm:$0xf]
      %v731 = vunpack.c.l.bf16 %v723
      %v732 = vunpack.c.l.bf16 %v724
      %v733 = vunpack.c.l.bf16 %v725
      %v734 = vunpack.c.l.bf16 %v726
      %v735 = vunpack.c.l.bf16 %v727
      %v736 = vunpack.c.l.bf16 %v728
      %v737 = vunpack.c.l.bf16 %v729
      %v738 = vunpack.c.l.bf16 %v730
      %v739 = vmul.f32 %v731, %v417
      %v740 = vmul.f32 %v732, %v417
      %v741 = vmul.f32 %v733, %v417
      %v742 = vmul.f32 %v734, %v417
      %v743 = vmul.f32 %v735, %v417
      %v744 = vmul.f32 %v736, %v417
      %v745 = vmul.f32 %v737, %v417
      %v746 = vmul.f32 %v738, %v417
      %v747 = vadd.f32 %v739, %v438
      %v748 = vadd.f32 %v740, %v438
      %v749 = vadd.f32 %v741, %v438
      %v750 = vadd.f32 %v742, %v438
      %v751 = vadd.f32 %v743, %v438
      %v752 = vadd.f32 %v744, %v438
      %v753 = vadd.f32 %v745, %v438
      %v754 = vadd.f32 %v746, %v438
      %v755 = vmax.f32 %v747, 0.0
      %v756 = vmax.f32 %v748, 0.0
      %v757 = vmax.f32 %v749, 0.0
      %v758 = vmax.f32 %v750, 0.0
      %v759 = vmax.f32 %v751, 0.0
      %v760 = vmax.f32 %v752, 0.0
      %v761 = vmax.f32 %v753, 0.0
      %v762 = vmax.f32 %v754, 0.0
      %v763 = vsel %vm592, %v755, 0.0
      %v764 = vsel %vm592, %v756, 0.0
      %v765 = vsel %vm592, %v757, 0.0
      %v766 = vsel %vm592, %v758, 0.0
      %v767 = vsel %vm592, %v759, 0.0
      %v768 = vsel %vm592, %v760, 0.0
      %v769 = vsel %vm592, %v761, 0.0
      %v770 = vsel %vm592, %v762, 0.0
      %v771 = vpack.c.bf16 %v763, %v763
      %v772 = vpack.c.bf16 %v764, %v764
      %v773 = vpack.c.bf16 %v765, %v765
      %v774 = vpack.c.bf16 %v766, %v766
      %v775 = vpack.c.bf16 %v767, %v767
      %v776 = vpack.c.bf16 %v768, %v768
      %v777 = vpack.c.bf16 %v769, %v769
      %v778 = vpack.c.bf16 %v770, %v770
      %vm779 = vcmask 64512
      %780 = vst.msk [vmem:[#allocation2] sm:$0xff] %vm779, 0.0
      %781 = vst.msk [vmem:[#allocation2 + $0x8] sm:$0xff] %vm779, 0.0
      %782 = vst.msk [vmem:[#allocation2 + $0x10] sm:$0xff] %vm779, 0.0
      %783 = vst.msk [vmem:[#allocation2 + $0x18] sm:$0xff] %vm779, 0.0
      %784 = vst.msk [vmem:[#allocation2 + $0x20] sm:$0xff] %vm779, 0.0
      %785 = vst.msk [vmem:[#allocation2 + $0x28] sm:$0xff] %vm779, 0.0
      %786 = vst.msk [vmem:[#allocation2 + $0x30] sm:$0xff] %vm779, 0.0
      %787 = vst.msk [vmem:[#allocation2 + $0x38] sm:$0xff] %vm779, 0.0
      %vm788 = vsmask.f32 3328
      %vm789 = vsmask.f32 7440
      %vm790 = vmor %vm788, %vm789
      %v792 = vshrl.u32 %v519, 16
      %v794 = vrot.slane %v792, 4
      %v795 = vshll.u32 %v519, 16
      %v797 = vrot.slane %v795, 5
      %v798 = vor.u32 %v794, %v797
      %v799 = vrot.slane %v798, 4
      %v801 = vshll.u32 %v520, 16
      %v803 = vrot.slane %v801, 5
      %v804 = vsel %vm790, %v799, %v803
      %v806 = vshrl.u32 %v521, 16
      %v808 = vrot.slane %v806, 4
      %v809 = vshll.u32 %v521, 16
      %v811 = vrot.slane %v809, 5
      %v812 = vor.u32 %v808, %v811
      %v813 = vrot.slane %v812, 4
      %v815 = vshll.u32 %v522, 16
      %v817 = vrot.slane %v815, 5
      %v818 = vsel %vm790, %v813, %v817
      %v820 = vshrl.u32 %v523, 16
      %v822 = vrot.slane %v820, 4
      %v823 = vshll.u32 %v523, 16
      %v825 = vrot.slane %v823, 5
      %v826 = vor.u32 %v822, %v825
      %v827 = vrot.slane %v826, 4
      %v829 = vshll.u32 %v524, 16
      %v831 = vrot.slane %v829, 5
      %v832 = vsel %vm790, %v827, %v831
      %v834 = vshrl.u32 %v525, 16
      %v836 = vrot.slane %v834, 4
      %v837 = vshll.u32 %v525, 16
      %v839 = vrot.slane %v837, 5
      %v840 = vor.u32 %v836, %v839
      %v841 = vrot.slane %v840, 4
      %v843 = vshll.u32 %v526, 16
      %v845 = vrot.slane %v843, 5
      %v846 = vsel %vm790, %v841, %v845
      %v848 = vshrl.u32 %v527, 16
      %v850 = vrot.slane %v848, 4
      %v851 = vshll.u32 %v527, 16
      %v853 = vrot.slane %v851, 5
      %v854 = vor.u32 %v850, %v853
      %v855 = vrot.slane %v854, 4
      %v857 = vshll.u32 %v528, 16
      %v859 = vrot.slane %v857, 5
      %v860 = vsel %vm790, %v855, %v859
      %v862 = vshrl.u32 %v529, 16
      %v864 = vrot.slane %v862, 4
      %v865 = vshll.u32 %v529, 16
      %v867 = vrot.slane %v865, 5
      %v868 = vor.u32 %v864, %v867
      %v869 = vrot.slane %v868, 4
      %v871 = vshll.u32 %v530, 16
      %v873 = vrot.slane %v871, 5
      %v874 = vsel %vm790, %v869, %v873
      %v876 = vshrl.u32 %v531, 16
      %v878 = vrot.slane %v876, 4
      %v879 = vshll.u32 %v531, 16
      %v881 = vrot.slane %v879, 5
      %v882 = vor.u32 %v878, %v881
      %v883 = vrot.slane %v882, 4
      %v885 = vshll.u32 %v532, 16
      %v887 = vrot.slane %v885, 5
      %v888 = vsel %vm790, %v883, %v887
      %v890 = vshrl.u32 %v533, 16
      %v892 = vrot.slane %v890, 4
      %v893 = vshll.u32 %v533, 16
      %v895 = vrot.slane %v893, 5
      %v896 = vor.u32 %v892, %v895
      %v897 = vrot.slane %v896, 4
      %v899 = vshll.u32 %v534, 16
      %v901 = vrot.slane %v899, 5
      %v902 = vsel %vm790, %v897, %v901
      %v911 = vunpack.c.l.b16 %v519
      %v912 = vunpack.c.l.b16 %v521
      %v913 = vunpack.c.l.b16 %v523
      %v914 = vunpack.c.l.b16 %v525
      %v915 = vunpack.c.l.b16 %v527
      %v916 = vunpack.c.l.b16 %v529
      %v917 = vunpack.c.l.b16 %v531
      %v918 = vunpack.c.l.b16 %v533
      %v919 = vpack.c.b16 %v912, %v911
      %v920 = vpack.c.b16 %v914, %v913
      %v921 = vpack.c.b16 %v916, %v915
      %v922 = vpack.c.b16 %v918, %v917
      %v931 = vunpack.c.l.b16 %v602
      %v932 = vunpack.c.l.b16 %v603
      %v933 = vunpack.c.l.b16 %v604
      %v934 = vunpack.c.l.b16 %v605
      %v935 = vunpack.c.l.b16 %v606
      %v936 = vunpack.c.l.b16 %v607
      %v937 = vunpack.c.l.b16 %v608
      %v938 = vunpack.c.l.b16 %v609
      %v939 = vpack.c.b16 %v932, %v931
      %v940 = vpack.c.b16 %v934, %v933
      %v941 = vpack.c.b16 %v936, %v935
      %v942 = vpack.c.b16 %v938, %v937
      %943 = vrot.lane.b32.xlu0 %v939, 8
      %v944 = vpop.permute.xlu0 %943
      %945 = vrot.lane.b32.xlu0 %v940, 8
      %v946 = vpop.permute.xlu0 %945
      %947 = vrot.lane.b32.xlu0 %v941, 8
      %v948 = vpop.permute.xlu0 %947
      %949 = vrot.lane.b32.xlu0 %v942, 8
      %v950 = vpop.permute.xlu0 %949
      %v951 = vunpack.c.l.b16 %v804
      %v952 = vunpack.c.l.b16 %v818
      %v953 = vunpack.c.l.b16 %v832
      %v954 = vunpack.c.l.b16 %v846
      %v955 = vunpack.c.l.b16 %v860
      %v956 = vunpack.c.l.b16 %v874
      %v957 = vunpack.c.l.b16 %v888
      %v958 = vunpack.c.l.b16 %v902
      %v959 = vpack.c.b16 %v952, %v951
      %v960 = vpack.c.b16 %v954, %v953
      %v961 = vpack.c.b16 %v956, %v955
      %v962 = vpack.c.b16 %v958, %v957
      %963 = vrot.lane.b32.xlu0 %v959, 16
      %v964 = vpop.permute.xlu0 %963
      %965 = vrot.lane.b32.xlu0 %v960, 16
      %v966 = vpop.permute.xlu0 %965
      %967 = vrot.lane.b32.xlu0 %v961, 16
      %v968 = vpop.permute.xlu0 %967
      %969 = vrot.lane.b32.xlu0 %v962, 16
      %v970 = vpop.permute.xlu0 %969
      %v973 = vsel %vm779, %v919, %v944
      %v976 = vsel %vm779, %v920, %v946
      %v979 = vsel %vm779, %v921, %v948
      %v982 = vsel %vm779, %v922, %v950
      %vm983 = vcmask 130048
      %v985 = vsel %vm983, %v973, %v964
      %v987 = vsel %vm983, %v976, %v966
      %v989 = vsel %vm983, %v979, %v968
      %v991 = vsel %vm983, %v982, %v970
      %v992 = vld [vmem:[#allocation2] sm:$0xff]
      %v993 = vld [vmem:[#allocation2 + $0x8] sm:$0xff]
      %v994 = vld [vmem:[#allocation2 + $0x10] sm:$0xff]
      %v995 = vld [vmem:[#allocation2 + $0x18] sm:$0xff]
      %v996 = vld [vmem:[#allocation2 + $0x20] sm:$0xff]
      %v997 = vld [vmem:[#allocation2 + $0x28] sm:$0xff]
      %v998 = vld [vmem:[#allocation2 + $0x30] sm:$0xff]
      %v999 = vld [vmem:[#allocation2 + $0x38] sm:$0xff]
      %v1000 = vld [vmem:[%s6] sm:$0xf]
      %v1001 = vld [vmem:[%s6 + $0x4] sm:$0xf]
      %v1002 = vld [vmem:[%s6 + $0x8] sm:$0xf]
      %v1006 = vunpack.c.l.b16 %v1000
      %v1007 = vunpack.c.l.b16 %v1001
      %v1008 = vunpack.c.l.b16 %v1002
      %v1009 = vpack.c.b16 %v1007, %v1006
      %v1010 = vpack.c.b16 %v1008, %v1008
      %vm1012 = vcmask 195584
      %v1013 = vsel %vm1012, %v985, 0
      %v1015 = vsel %vm1012, %v987, 0
      %v1017 = vsel %vm1012, %v989, 0
      %v1019 = vsel %vm1012, %v991, 0
      %vm1021 = vcmask 1043456
      %v1023 = vsel %vm1021, %v1010, 0
      %1025 = vmatpush.bf16.msra.mxu0 0
      %1026 = vmatpush.bf16.msra.mxu0 0
      %1027 = vmatpush.bf16.msra.mxu0 0
      %1028 = vmatpush.bf16.msra.mxu0 0
      %1029 = vmatpush.bf16.msra.mxu0 0
      %1030 = vmatpush.bf16.msra.mxu0 0
      %1031 = vmatpush.bf16.msra.mxu0 %v1023
      %1032 = vmatpush.bf16.msra.mxu0 %v1009
      %1033 = vmatmul.bf16.gmra.mxu0 %v1013
      %v1034 = vpop.f32.mrf.mxu0
      %v1035 = vadd.f32 0.0, %v1034
      %v1036 = vpop.f32.mrf.mxu0
      %v1037 = vadd.f32 0.0, %v1036
      %1038 = vmatmul.bf16.gmra.mxu0 %v1015
      %v1039 = vpop.f32.mrf.mxu0
      %v1040 = vadd.f32 0.0, %v1039
      %v1041 = vpop.f32.mrf.mxu0
      %v1042 = vadd.f32 0.0, %v1041
      %1043 = vmatmul.bf16.gmra.mxu0 %v1017
      %v1044 = vpop.f32.mrf.mxu0
      %v1045 = vadd.f32 0.0, %v1044
      %v1046 = vpop.f32.mrf.mxu0
      %v1047 = vadd.f32 0.0, %v1046
      %1048 = vmatmul.bf16.gmra.mxu0 %v1019
      %v1049 = vpop.f32.mrf.mxu0
      %v1050 = vadd.f32 0.0, %v1049
      %v1051 = vpop.f32.mrf.mxu0
      %v1052 = vadd.f32 0.0, %v1051
      %1053 = vdwg.mxu0
      %v1054 = vadd.f32 %v992, %v1035
      %v1055 = vadd.f32 %v993, %v1037
      %v1056 = vadd.f32 %v994, %v1040
      %v1057 = vadd.f32 %v995, %v1042
      %v1058 = vadd.f32 %v996, %v1045
      %v1059 = vadd.f32 %v997, %v1047
      %v1060 = vadd.f32 %v998, %v1050
      %v1061 = vadd.f32 %v999, %v1052
      %1062 = vst.msk [vmem:[#allocation2] sm:$0xff] %vm779, %v1054
      %1063 = vst.msk [vmem:[#allocation2 + $0x8] sm:$0xff] %vm779, %v1055
      %1064 = vst.msk [vmem:[#allocation2 + $0x10] sm:$0xff] %vm779, %v1056
      %1065 = vst.msk [vmem:[#allocation2 + $0x18] sm:$0xff] %vm779, %v1057
      %1066 = vst.msk [vmem:[#allocation2 + $0x20] sm:$0xff] %vm779, %v1058
      %1067 = vst.msk [vmem:[#allocation2 + $0x28] sm:$0xff] %vm779, %v1059
      %1068 = vst.msk [vmem:[#allocation2 + $0x30] sm:$0xff] %vm779, %v1060
      %1069 = vst.msk [vmem:[#allocation2 + $0x38] sm:$0xff] %vm779, %v1061
      %v1071 = vshrl.u32 %v707, 16
      %v1073 = vrot.slane %v1071, 4
      %v1074 = vshll.u32 %v707, 16
      %v1076 = vrot.slane %v1074, 5
      %v1077 = vor.u32 %v1073, %v1076
      %v1078 = vrot.slane %v1077, 4
      %v1080 = vshll.u32 %v708, 16
      %v1082 = vrot.slane %v1080, 5
      %v1083 = vsel %vm790, %v1078, %v1082
      %v1085 = vshrl.u32 %v709, 16
      %v1087 = vrot.slane %v1085, 4
      %v1088 = vshll.u32 %v709, 16
      %v1090 = vrot.slane %v1088, 5
      %v1091 = vor.u32 %v1087, %v1090
      %v1092 = vrot.slane %v1091, 4
      %v1094 = vshll.u32 %v710, 16
      %v1096 = vrot.slane %v1094, 5
      %v1097 = vsel %vm790, %v1092, %v1096
      %v1099 = vshrl.u32 %v711, 16
      %v1101 = vrot.slane %v1099, 4
      %v1102 = vshll.u32 %v711, 16
      %v1104 = vrot.slane %v1102, 5
      %v1105 = vor.u32 %v1101, %v1104
      %v1106 = vrot.slane %v1105, 4
      %v1108 = vshll.u32 %v712, 16
      %v1110 = vrot.slane %v1108, 5
      %v1111 = vsel %vm790, %v1106, %v1110
      %v1113 = vshrl.u32 %v713, 16
      %v1115 = vrot.slane %v1113, 4
      %v1116 = vshll.u32 %v713, 16
      %v1118 = vrot.slane %v1116, 5
      %v1119 = vor.u32 %v1115, %v1118
      %v1120 = vrot.slane %v1119, 4
      %v1122 = vshll.u32 %v714, 16
      %v1124 = vrot.slane %v1122, 5
      %v1125 = vsel %vm790, %v1120, %v1124
      %v1127 = vshrl.u32 %v715, 16
      %v1129 = vrot.slane %v1127, 4
      %v1130 = vshll.u32 %v715, 16
      %v1132 = vrot.slane %v1130, 5
      %v1133 = vor.u32 %v1129, %v1132
      %v1134 = vrot.slane %v1133, 4
      %v1136 = vshll.u32 %v716, 16
      %v1138 = vrot.slane %v1136, 5
      %v1139 = vsel %vm790, %v1134, %v1138
      %v1141 = vshrl.u32 %v717, 16
      %v1143 = vrot.slane %v1141, 4
      %v1144 = vshll.u32 %v717, 16
      %v1146 = vrot.slane %v1144, 5
      %v1147 = vor.u32 %v1143, %v1146
      %v1148 = vrot.slane %v1147, 4
      %v1150 = vshll.u32 %v718, 16
      %v1152 = vrot.slane %v1150, 5
      %v1153 = vsel %vm790, %v1148, %v1152
      %v1155 = vshrl.u32 %v719, 16
      %v1157 = vrot.slane %v1155, 4
      %v1158 = vshll.u32 %v719, 16
      %v1160 = vrot.slane %v1158, 5
      %v1161 = vor.u32 %v1157, %v1160
      %v1162 = vrot.slane %v1161, 4
      %v1164 = vshll.u32 %v720, 16
      %v1166 = vrot.slane %v1164, 5
      %v1167 = vsel %vm790, %v1162, %v1166
      %v1169 = vshrl.u32 %v721, 16
      %v1171 = vrot.slane %v1169, 4
      %v1172 = vshll.u32 %v721, 16
      %v1174 = vrot.slane %v1172, 5
      %v1175 = vor.u32 %v1171, %v1174
      %v1176 = vrot.slane %v1175, 4
      %v1178 = vshll.u32 %v722, 16
      %v1180 = vrot.slane %v1178, 5
      %v1181 = vsel %vm790, %v1176, %v1180
      %v1190 = vunpack.c.l.b16 %v707
      %v1191 = vunpack.c.l.b16 %v709
      %v1192 = vunpack.c.l.b16 %v711
      %v1193 = vunpack.c.l.b16 %v713
      %v1194 = vunpack.c.l.b16 %v715
      %v1195 = vunpack.c.l.b16 %v717
      %v1196 = vunpack.c.l.b16 %v719
      %v1197 = vunpack.c.l.b16 %v721
      %v1198 = vpack.c.b16 %v1191, %v1190
      %v1199 = vpack.c.b16 %v1193, %v1192
      %v1200 = vpack.c.b16 %v1195, %v1194
      %v1201 = vpack.c.b16 %v1197, %v1196
      %v1210 = vunpack.c.l.b16 %v771
      %v1211 = vunpack.c.l.b16 %v772
      %v1212 = vunpack.c.l.b16 %v773
      %v1213 = vunpack.c.l.b16 %v774
      %v1214 = vunpack.c.l.b16 %v775
      %v1215 = vunpack.c.l.b16 %v776
      %v1216 = vunpack.c.l.b16 %v777
      %v1217 = vunpack.c.l.b16 %v778
      %v1218 = vpack.c.b16 %v1211, %v1210
      %v1219 = vpack.c.b16 %v1213, %v1212
      %v1220 = vpack.c.b16 %v1215, %v1214
      %v1221 = vpack.c.b16 %v1217, %v1216
      %1222 = vrot.lane.b32.xlu0 %v1218, 8
      %v1223 = vpop.permute.xlu0 %1222
      %1224 = vrot.lane.b32.xlu0 %v1219, 8
      %v1225 = vpop.permute.xlu0 %1224
      %1226 = vrot.lane.b32.xlu0 %v1220, 8
      %v1227 = vpop.permute.xlu0 %1226
      %1228 = vrot.lane.b32.xlu0 %v1221, 8
      %v1229 = vpop.permute.xlu0 %1228
      %v1230 = vunpack.c.l.b16 %v1083
      %v1231 = vunpack.c.l.b16 %v1097
      %v1232 = vunpack.c.l.b16 %v1111
      %v1233 = vunpack.c.l.b16 %v1125
      %v1234 = vunpack.c.l.b16 %v1139
      %v1235 = vunpack.c.l.b16 %v1153
      %v1236 = vunpack.c.l.b16 %v1167
      %v1237 = vunpack.c.l.b16 %v1181
      %v1238 = vpack.c.b16 %v1231, %v1230
      %v1239 = vpack.c.b16 %v1233, %v1232
      %v1240 = vpack.c.b16 %v1235, %v1234
      %v1241 = vpack.c.b16 %v1237, %v1236
      %1242 = vrot.lane.b32.xlu0 %v1238, 16
      %v1243 = vpop.permute.xlu0 %1242
      %1244 = vrot.lane.b32.xlu0 %v1239, 16
      %v1245 = vpop.permute.xlu0 %1244
      %1246 = vrot.lane.b32.xlu0 %v1240, 16
      %v1247 = vpop.permute.xlu0 %1246
      %1248 = vrot.lane.b32.xlu0 %v1241, 16
      %v1249 = vpop.permute.xlu0 %1248
      %v1252 = vsel %vm779, %v1198, %v1223
      %v1255 = vsel %vm779, %v1199, %v1225
      %v1258 = vsel %vm779, %v1200, %v1227
      %v1261 = vsel %vm779, %v1201, %v1229
      %v1263 = vsel %vm983, %v1252, %v1243
      %v1265 = vsel %vm983, %v1255, %v1245
      %v1267 = vsel %vm983, %v1258, %v1247
      %v1269 = vsel %vm983, %v1261, %v1249
      %v1270 = vld [vmem:[#allocation2] sm:$0xff]
      %v1271 = vld [vmem:[#allocation2 + $0x8] sm:$0xff]
      %v1272 = vld [vmem:[#allocation2 + $0x10] sm:$0xff]
      %v1273 = vld [vmem:[#allocation2 + $0x18] sm:$0xff]
      %v1274 = vld [vmem:[#allocation2 + $0x20] sm:$0xff]
      %v1275 = vld [vmem:[#allocation2 + $0x28] sm:$0xff]
      %v1276 = vld [vmem:[#allocation2 + $0x30] sm:$0xff]
      %v1277 = vld [vmem:[#allocation2 + $0x38] sm:$0xff]
      %s1278 = scalar_lea.vmem %s6, 12
      %v1279 = vld [vmem:[%s1278] sm:$0xf]
      %v1280 = vld [vmem:[%s1278 + $0x4] sm:$0xf]
      %v1281 = vld [vmem:[%s1278 + $0x8] sm:$0xf]
      %v1285 = vunpack.c.l.b16 %v1279
      %v1286 = vunpack.c.l.b16 %v1280
      %v1287 = vunpack.c.l.b16 %v1281
      %v1288 = vpack.c.b16 %v1286, %v1285
      %v1289 = vpack.c.b16 %v1287, %v1287
      %v1291 = vsel %vm1012, %v1263, 0
      %v1293 = vsel %vm1012, %v1265, 0
      %v1295 = vsel %vm1012, %v1267, 0
      %v1297 = vsel %vm1012, %v1269, 0
      %v1300 = vsel %vm1021, %v1289, 0
      %1302 = vmatpush.bf16.msra.mxu0 0
      %1303 = vmatpush.bf16.msra.mxu0 0
      %1304 = vmatpush.bf16.msra.mxu0 0
      %1305 = vmatpush.bf16.msra.mxu0 0
      %1306 = vmatpush.bf16.msra.mxu0 0
      %1307 = vmatpush.bf16.msra.mxu0 0
      %1308 = vmatpush.bf16.msra.mxu0 %v1300
      %1309 = vmatpush.bf16.msra.mxu0 %v1288
      %1310 = vmatmul.bf16.gmra.mxu0 %v1291
      %v1311 = vpop.f32.mrf.mxu0
      %v1312 = vadd.f32 0.0, %v1311
      %v1313 = vpop.f32.mrf.mxu0
      %v1314 = vadd.f32 0.0, %v1313
      %1315 = vmatmul.bf16.gmra.mxu0 %v1293
      %v1316 = vpop.f32.mrf.mxu0
      %v1317 = vadd.f32 0.0, %v1316
      %v1318 = vpop.f32.mrf.mxu0
      %v1319 = vadd.f32 0.0, %v1318
      %1320 = vmatmul.bf16.gmra.mxu0 %v1295
      %v1321 = vpop.f32.mrf.mxu0
      %v1322 = vadd.f32 0.0, %v1321
      %v1323 = vpop.f32.mrf.mxu0
      %v1324 = vadd.f32 0.0, %v1323
      %1325 = vmatmul.bf16.gmra.mxu0 %v1297
      %v1326 = vpop.f32.mrf.mxu0
      %v1327 = vadd.f32 0.0, %v1326
      %v1328 = vpop.f32.mrf.mxu0
      %v1329 = vadd.f32 0.0, %v1328
      %1330 = vdwg.mxu0
      %v1331 = vadd.f32 %v1270, %v1312
      %v1332 = vadd.f32 %v1271, %v1314
      %v1333 = vadd.f32 %v1272, %v1317
      %v1334 = vadd.f32 %v1273, %v1319
      %v1335 = vadd.f32 %v1274, %v1322
      %v1336 = vadd.f32 %v1275, %v1324
      %v1337 = vadd.f32 %v1276, %v1327
      %v1338 = vadd.f32 %v1277, %v1329
      %1339 = vst.msk [vmem:[#allocation2] sm:$0xff] %vm779, %v1331
      %1340 = vst.msk [vmem:[#allocation2 + $0x8] sm:$0xff] %vm779, %v1332
      %1341 = vst.msk [vmem:[#allocation2 + $0x10] sm:$0xff] %vm779, %v1333
      %1342 = vst.msk [vmem:[#allocation2 + $0x18] sm:$0xff] %vm779, %v1334
      %1343 = vst.msk [vmem:[#allocation2 + $0x20] sm:$0xff] %vm779, %v1335
      %1344 = vst.msk [vmem:[#allocation2 + $0x28] sm:$0xff] %vm779, %v1336
      %1345 = vst.msk [vmem:[#allocation2 + $0x30] sm:$0xff] %vm779, %v1337
      %1346 = vst.msk [vmem:[#allocation2 + $0x38] sm:$0xff] %vm779, %v1338
      %v1348 = vshrl.u32 %v535, 16
      %v1350 = vrot.slane %v1348, 4
      %v1351 = vshll.u32 %v535, 16
      %v1353 = vrot.slane %v1351, 5
      %v1354 = vor.u32 %v1350, %v1353
      %v1355 = vrot.slane %v1354, 4
      %v1357 = vshll.u32 %v536, 16
      %v1359 = vrot.slane %v1357, 5
      %v1360 = vsel %vm790, %v1355, %v1359
      %v1362 = vunpack.c.l.b16 %v535
      %v1363 = vpack.c.b16 %v913, %v912
      %v1364 = vpack.c.b16 %v915, %v914
      %v1365 = vpack.c.b16 %v917, %v916
      %v1366 = vpack.c.b16 %v1362, %v918
      %v1368 = vunpack.c.l.b16 %v610
      %v1369 = vpack.c.b16 %v933, %v932
      %v1370 = vpack.c.b16 %v935, %v934
      %v1371 = vpack.c.b16 %v937, %v936
      %v1372 = vpack.c.b16 %v1368, %v938
      %1373 = vrot.lane.b32.xlu0 %v1369, 8
      %v1374 = vpop.permute.xlu0 %1373
      %1375 = vrot.lane.b32.xlu0 %v1370, 8
      %v1376 = vpop.permute.xlu0 %1375
      %1377 = vrot.lane.b32.xlu0 %v1371, 8
      %v1378 = vpop.permute.xlu0 %1377
      %1379 = vrot.lane.b32.xlu0 %v1372, 8
      %v1380 = vpop.permute.xlu0 %1379
      %v1381 = vunpack.c.l.b16 %v1360
      %v1382 = vpack.c.b16 %v953, %v952
      %v1383 = vpack.c.b16 %v955, %v954
      %v1384 = vpack.c.b16 %v957, %v956
      %v1385 = vpack.c.b16 %v1381, %v958
      %1386 = vrot.lane.b32.xlu0 %v1382, 16
      %v1387 = vpop.permute.xlu0 %1386
      %1388 = vrot.lane.b32.xlu0 %v1383, 16
      %v1389 = vpop.permute.xlu0 %1388
      %1390 = vrot.lane.b32.xlu0 %v1384, 16
      %v1391 = vpop.permute.xlu0 %1390
      %1392 = vrot.lane.b32.xlu0 %v1385, 16
      %v1393 = vpop.permute.xlu0 %1392
      %v1396 = vsel %vm779, %v1363, %v1374
      %v1399 = vsel %vm779, %v1364, %v1376
      %v1402 = vsel %vm779, %v1365, %v1378
      %v1405 = vsel %vm779, %v1366, %v1380
      %v1407 = vsel %vm983, %v1396, %v1387
      %v1409 = vsel %vm983, %v1399, %v1389
      %v1411 = vsel %vm983, %v1402, %v1391
      %v1413 = vsel %vm983, %v1405, %v1393
      %v1414 = vld [vmem:[#allocation2] sm:$0xff]
      %v1415 = vld [vmem:[#allocation2 + $0x8] sm:$0xff]
      %v1416 = vld [vmem:[#allocation2 + $0x10] sm:$0xff]
      %v1417 = vld [vmem:[#allocation2 + $0x18] sm:$0xff]
      %v1418 = vld [vmem:[#allocation2 + $0x20] sm:$0xff]
      %v1419 = vld [vmem:[#allocation2 + $0x28] sm:$0xff]
      %v1420 = vld [vmem:[#allocation2 + $0x30] sm:$0xff]
      %v1421 = vld [vmem:[#allocation2 + $0x38] sm:$0xff]
      %s1422 = scalar_lea.vmem %s6, 24
      %v1423 = vld [vmem:[%s1422] sm:$0xf]
      %v1424 = vld [vmem:[%s1422 + $0x4] sm:$0xf]
      %v1425 = vld [vmem:[%s1422 + $0x8] sm:$0xf]
      %v1429 = vunpack.c.l.b16 %v1423
      %v1430 = vunpack.c.l.b16 %v1424
      %v1431 = vunpack.c.l.b16 %v1425
      %v1432 = vpack.c.b16 %v1430, %v1429
      %v1433 = vpack.c.b16 %v1431, %v1431
      %v1435 = vsel %vm1012, %v1407, 0
      %v1437 = vsel %vm1012, %v1409, 0
      %v1439 = vsel %vm1012, %v1411, 0
      %v1441 = vsel %vm1012, %v1413, 0
      %v1444 = vsel %vm1021, %v1433, 0
      %1446 = vmatpush.bf16.msra.mxu0 0
      %1447 = vmatpush.bf16.msra.mxu0 0
      %1448 = vmatpush.bf16.msra.mxu0 0
      %1449 = vmatpush.bf16.msra.mxu0 0
      %1450 = vmatpush.bf16.msra.mxu0 0
      %1451 = vmatpush.bf16.msra.mxu0 0
      %1452 = vmatpush.bf16.msra.mxu0 %v1444
      %1453 = vmatpush.bf16.msra.mxu0 %v1432
      %1454 = vmatmul.bf16.gmra.mxu0 %v1435
      %v1455 = vpop.f32.mrf.mxu0
      %v1456 = vadd.f32 0.0, %v1455
      %v1457 = vpop.f32.mrf.mxu0
      %v1458 = vadd.f32 0.0, %v1457
      %1459 = vmatmul.bf16.gmra.mxu0 %v1437
      %v1460 = vpop.f32.mrf.mxu0
      %v1461 = vadd.f32 0.0, %v1460
      %v1462 = vpop.f32.mrf.mxu0
      %v1463 = vadd.f32 0.0, %v1462
      %1464 = vmatmul.bf16.gmra.mxu0 %v1439
      %v1465 = vpop.f32.mrf.mxu0
      %v1466 = vadd.f32 0.0, %v1465
      %v1467 = vpop.f32.mrf.mxu0
      %v1468 = vadd.f32 0.0, %v1467
      %1469 = vmatmul.bf16.gmra.mxu0 %v1441
      %v1470 = vpop.f32.mrf.mxu0
      %v1471 = vadd.f32 0.0, %v1470
      %v1472 = vpop.f32.mrf.mxu0
      %v1473 = vadd.f32 0.0, %v1472
      %1474 = vdwg.mxu0
      %v1475 = vadd.f32 %v1414, %v1456
      %v1476 = vadd.f32 %v1415, %v1458
      %v1477 = vadd.f32 %v1416, %v1461
      %v1478 = vadd.f32 %v1417, %v1463
      %v1479 = vadd.f32 %v1418, %v1466
      %v1480 = vadd.f32 %v1419, %v1468
      %v1481 = vadd.f32 %v1420, %v1471
      %v1482 = vadd.f32 %v1421, %v1473
      %1483 = vst.msk [vmem:[#allocation2] sm:$0xff] %vm779, %v1475
      %1484 = vst.msk [vmem:[#allocation2 + $0x8] sm:$0xff] %vm779, %v1476
      %1485 = vst.msk [vmem:[#allocation2 + $0x10] sm:$0xff] %vm779, %v1477
      %1486 = vst.msk [vmem:[#allocation2 + $0x18] sm:$0xff] %vm779, %v1478
      %1487 = vst.msk [vmem:[#allocation2 + $0x20] sm:$0xff] %vm779, %v1479
      %1488 = vst.msk [vmem:[#allocation2 + $0x28] sm:$0xff] %vm779, %v1480
      %1489 = vst.msk [vmem:[#allocation2 + $0x30] sm:$0xff] %vm779, %v1481
      %1490 = vst.msk [vmem:[#allocation2 + $0x38] sm:$0xff] %vm779, %v1482
      %v1491 = vld [vmem:[#allocation2] sm:$0xff]
      %v1492 = vld [vmem:[#allocation2 + $0x8] sm:$0xff]
      %v1493 = vld [vmem:[#allocation2 + $0x10] sm:$0xff]
      %v1494 = vld [vmem:[#allocation2 + $0x18] sm:$0xff]
      %v1495 = vld [vmem:[#allocation2 + $0x20] sm:$0xff]
      %v1496 = vld [vmem:[#allocation2 + $0x28] sm:$0xff]
      %v1497 = vld [vmem:[#allocation2 + $0x30] sm:$0xff]
      %v1498 = vld [vmem:[#allocation2 + $0x38] sm:$0xff]
      %v1499 = vpack.c.bf16 %v1491, %v1491
      %v1500 = vpack.c.bf16 %v1492, %v1492
      %v1501 = vpack.c.bf16 %v1493, %v1493
      %v1502 = vpack.c.bf16 %v1494, %v1494
      %v1503 = vpack.c.bf16 %v1495, %v1495
      %v1504 = vpack.c.bf16 %v1496, %v1496
      %v1505 = vpack.c.bf16 %v1497, %v1497
      %v1506 = vpack.c.bf16 %v1498, %v1498
      %vm1507 = vcmask 60416
      %1508 = vst.msk [vmem:[%s372] sm:$0xf] %vm1507, %v1499
      %1509 = vst.msk [vmem:[%s372 + $0x4] sm:$0xf] %vm1507, %v1500
      %1510 = vst.msk [vmem:[%s372 + $0x8] sm:$0xf] %vm1507, %v1501
      %1511 = vst.msk [vmem:[%s372 + $0xc] sm:$0xf] %vm1507, %v1502
      %1512 = vst.msk [vmem:[%s372 + $0x10] sm:$0xf] %vm1507, %v1503
      %1513 = vst.msk [vmem:[%s372 + $0x14] sm:$0xf] %vm1507, %v1504
      %1514 = vst.msk [vmem:[%s372 + $0x18] sm:$0xf] %vm1507, %v1505
      %1515 = vst.msk [vmem:[%s372 + $0x1c] sm:$0xf] %vm1507, %v1506
      %v1516 = vsel %vm779, %v1491, 0.0
      %v1517 = vsel %vm779, %v1492, 0.0
      %v1518 = vadd.f32 %v1516, %v1517
      %v1519 = vsel %vm779, %v1493, 0.0
      %v1520 = vadd.f32 %v1518, %v1519
      %v1521 = vsel %vm779, %v1494, 0.0
      %v1522 = vadd.f32 %v1520, %v1521
      %v1523 = vsel %vm779, %v1495, 0.0
      %v1524 = vadd.f32 %v1522, %v1523
      %v1525 = vsel %vm779, %v1496, 0.0
      %v1526 = vadd.f32 %v1524, %v1525
      %v1527 = vsel %vm779, %v1497, 0.0
      %v1528 = vadd.f32 %v1526, %v1527
      %v1529 = vsel %vm779, %v1498, 0.0
      %v1530 = vadd.f32 %v1528, %v1529
      %v1531 = vrot.slane %v1530, 4
      %v1532 = vadd.f32 %v1530, %v1531
      %v1533 = vrot.slane %v1532, 2
      %v1534 = vadd.f32 %v1532, %v1533
      %v1535 = vrot.slane %v1534, 1
      %v1536 = vadd.f32 %v1534, %v1535
      %v1537 = vmul.f32 %v1491, %v1491
      %v1538 = vmul.f32 %v1492, %v1492
      %v1539 = vmul.f32 %v1493, %v1493
      %v1540 = vmul.f32 %v1494, %v1494
      %v1541 = vmul.f32 %v1495, %v1495
      %v1542 = vmul.f32 %v1496, %v1496
      %v1543 = vmul.f32 %v1497, %v1497
      %v1544 = vmul.f32 %v1498, %v1498
      %v1545 = vsel %vm779, %v1537, 0.0
      %v1546 = vsel %vm779, %v1538, 0.0
      %v1547 = vadd.f32 %v1545, %v1546
      %v1548 = vsel %vm779, %v1539, 0.0
      %v1549 = vadd.f32 %v1547, %v1548
      %v1550 = vsel %vm779, %v1540, 0.0
      %v1551 = vadd.f32 %v1549, %v1550
      %v1552 = vsel %vm779, %v1541, 0.0
      %v1553 = vadd.f32 %v1551, %v1552
      %v1554 = vsel %vm779, %v1542, 0.0
      %v1555 = vadd.f32 %v1553, %v1554
      %v1556 = vsel %vm779, %v1543, 0.0
      %v1557 = vadd.f32 %v1555, %v1556
      %v1558 = vsel %vm779, %v1544, 0.0
      %v1559 = vadd.f32 %v1557, %v1558
      %v1560 = vrot.slane %v1559, 4
      %v1561 = vadd.f32 %v1559, %v1560
      %v1562 = vrot.slane %v1561, 2
      %v1563 = vadd.f32 %v1561, %v1562
      %v1564 = vrot.slane %v1563, 1
      %v1565 = vadd.f32 %v1563, %v1564
      %vm1566 = vcmask 1040384
      %v1567 = vsel %vm1566, %v1536, %v1565
      %vm1568 = vcmask 58368
      %1569 = vst.msk [vmem:[%s376] sm:$0x3] %vm1568, %v1567
      %p1570 = scmp.lt.s32.totalorder %s20, 1
      %s1571 = scalar_select %p1570, %s20, 1
      %s1572 = smul.addr %s1571, 8
      %s1573 = smul.addr %s1572, 4
      %s1574 = scalar_lea.vmem %s7, %s1573
      %p1575 = scmp.lt.s32.totalorder %s20, 1
      %s1576 = scalar_select %p1575, %s20, 1
      %s1577 = smul.addr %s1576, 2
      %s1578 = scalar_lea.vmem %s8, %s1577
      // Predicated region
      $region49: #{resid_block.5} parent=47 // pred_check
        %p1579 = pneg %p205
      $region50: #{resid_block.5} parent=47 // pred_check_branch
        %1581 = sbr.rel (%p1579) target = $region52
      $region51: #{resid_block.5} parent=47 // pred_region
        _
      $region52: #{resid_block.5} parent=47 // pred_fallthru
        _
      // Predicated region
      $region53: #{resid_block.5} parent=47 // pred_check
        %p1582 = pneg %p231
      $region54: #{resid_block.5} parent=47 // pred_check_branch
        %1584 = sbr.rel (%p1582) target = $region56
      $region55: #{resid_block.5} parent=47 // pred_region
        _
      $region56: #{resid_block.5} parent=47 // pred_fallthru
        _
    $region48: #{resid_block.5} parent=5 // pred_fallthru
      _
    %p1585 = scmp.le.s32.totalorder 2, %s15
    // Predicated region
    $region57: #{resid_block.5} parent=5 // pred_check
      %p1586 = pneg %p1585
    $region58: #{resid_block.5} parent=5 // pred_check_branch
      %1588 = sbr.rel (%p1586) target = $region60
    $region59: #{resid_block.5} parent=5 // pred_region
      %s1589 = ssub.s32 %s15, 2
      // Predicated region
      $region61: #{resid_block.5} parent=59 // pred_check
        %p1590 = pneg %p211
      $region62: #{resid_block.5} parent=59 // pred_check_branch
        %1592 = sbr.rel (%p1590) target = $region64
      $region63: #{resid_block.5} parent=59 // pred_region
        %p1593 = scmp.lt.s32.totalorder %s21, 1
        %s1594 = scalar_select %p1593, %s21, 1
        %s1595 = smul.addr %s1594, 8
        %s1596 = smul.addr %s1595, 4
        %s1597 = scalar_lea.vmem %s7, %s1596
      $region64: #{resid_block.5} parent=59 // pred_fallthru
        _
      // Predicated region
      $region65: #{resid_block.5} parent=59 // pred_check
        %p1598 = pneg %p237
      $region66: #{resid_block.5} parent=59 // pred_check_branch
        %1600 = sbr.rel (%p1598) target = $region68
      $region67: #{resid_block.5} parent=59 // pred_region
        %p1601 = scmp.lt.s32.totalorder %s21, 1
        %s1602 = scalar_select %p1601, %s21, 1
        %s1603 = smul.addr %s1602, 2
        %s1604 = scalar_lea.vmem %s8, %s1603
      $region68: #{resid_block.5} parent=59 // pred_fallthru
        _
    $region60: #{resid_block.5} parent=5 // pred_fallthru
      _
  $region6: #{resid_block.5} parent=0 // loop_footer
    %s19 = sadd.s32 1, %s15
  $region7: #{resid_block.5} parent=0 // loop_footer_branch
    %14 = sbr.rel target = $region3
  $region8: #{resid_block.5} parent=0 // loop_exit
    _

</llo_original>
